<compile_context>
chip_gen: v7x
topology: tpu7x:2x2x1
jax: 0.10.0
libtpu: 0.0.40
codegen_flags: <defaults>
</compile_context>

<pallas_src>
import jax
import jax.numpy as jnp
from jax.experimental import pallas as pl
from jax.experimental.pallas import tpu as pltpu

INPUT_DIM = 512
HIDDEN_DIM = 256
LATENT_DIM = 20


def _round_up(x, m):
    return ((x + m - 1) // m) * m


def _vae_kernel(
    x_ref, eps_ref,
    # encoder trunk weights/biases (pre-transposed to [in, out])
    ew1, eb1, ew2, eb2, ew3, eb3,
    # encoder head, pre-split so mean/log_var never require an in-vreg slice
    ewm, ebm, ewl, ebl,
    # decoder weights/biases
    dw1, db1, dw2, db2, dw3, db3, dw4, db4,
    # outputs
    xrec_ref, mean_ref, logvar_ref,
):
    # MXU operand dtype is baked into the (pre-cast) weights; f32 gives the
    # exact path, bf16 the fast path.  Accumulation is always f32.
    cdt = ew1.dtype

    def dense(h, w_ref, b_ref):
        return jnp.dot(h, w_ref[...], preferred_element_type=jnp.float32) + b_ref[...]

    def relu_c(h):            # elementwise in f32, store once in MXU dtype
        return jnp.maximum(h, 0.0).astype(cdt)

    def sigmoid_c(h):
        return jax.nn.sigmoid(h).astype(cdt)

    x = x_ref[...]            # already in cdt (cast in the wrapper)

    # ---------------- encoder ----------------
    h = relu_c(dense(x, ew1, eb1))        # Linear(512->256) + ReLU
    h = sigmoid_c(dense(h, ew2, eb2))     # Linear(256->128) + Sigmoid
    h = relu_c(dense(h, ew3, eb3))        # Linear(128->64)  + ReLU
    mean = dense(h, ewm, ebm)             # head, mean half    (f32)
    log_var = dense(h, ewl, ebl)          # head, log_var half (f32)

    # ---------------- reparameterize (f32) ----------------
    # Padded batch rows have x=0, eps=0 -> log_var is finite for these
    # weights; padded rows are sliced off in the wrapper anyway.
    z = mean + eps_ref[...] * jnp.exp(0.5 * log_var)

    # ---------------- decoder ----------------
    d = relu_c(dense(z.astype(cdt), dw1, db1))   # Linear(20->64)   + ReLU
    d = sigmoid_c(dense(d, dw2, db2))            # Linear(64->128)  + Sigmoid
    d = relu_c(dense(d, dw3, db3))               # Linear(128->256) + ReLU
    d = jax.nn.sigmoid(dense(d, dw4, db4))       # Linear(256->512) + Sigmoid (f32 out)

    xrec_ref[...] = d
    mean_ref[...] = mean
    logvar_ref[...] = log_var


def init_params(key, input_dim=INPUT_DIM, hidden_dim=HIDDEN_DIM,
                latent_dim=LATENT_DIM):
    """Deterministic synthetic parameters. Weights stored as [in, out]."""
    enc_dims = [(input_dim, hidden_dim),
                (hidden_dim, hidden_dim // 2),
                (hidden_dim // 2, hidden_dim // 4),
                (hidden_dim // 4, latent_dim * 2)]
    dec_dims = [(latent_dim, hidden_dim // 4),
                (hidden_dim // 4, hidden_dim // 2),
                (hidden_dim // 2, hidden_dim),
                (hidden_dim, input_dim)]
    params = []
    for (din, dout) in enc_dims + dec_dims:
        key, kw, kb = jax.random.split(key, 3)
        w = jax.random.normal(kw, (din, dout), dtype=jnp.float32) * 0.05
        b = jax.random.normal(kb, (1, dout), dtype=jnp.float32) * 0.01
        params.append((w, b))
    return params


def prepare_params(params, matmul_dtype=jnp.bfloat16):
    """One-time prep: split encoder head into mean/log_var matrices and cast
    weights to the MXU operand dtype (biases stay f32).  Do this once, not per
    forward call."""
    (ew1, eb1), (ew2, eb2), (ew3, eb3), (ew4, eb4) = params[:4]
    (dw1, db1), (dw2, db2), (dw3, db3), (dw4, db4) = params[4:]
    ewm, ewl = ew4[:, :LATENT_DIM], ew4[:, LATENT_DIM:]
    ebm, ebl = eb4[:, :LATENT_DIM], eb4[:, LATENT_DIM:]

    weights = [ew1, ew2, ew3, ewm, ewl, dw1, dw2, dw3, dw4]
    biases = [eb1, eb2, eb3, ebm, ebl, db1, db2, db3, db4]
    flat = []
    for w, b in zip(weights, biases):
        flat.append(w.astype(matmul_dtype))
        flat.append(b.astype(jnp.float32))
    return flat


def vae_forward(x, eps, flat_params, *, block_b=512):
    """Fused VAE forward.

    flat_params: output of prepare_params() (weights already in the MXU dtype).
    block_b:     max batch-tile size.  512 fills the 256-row MXU on v6e/v7x
                 and keeps per-step VMEM ~5 MiB; the tile is shrunk so the
                 grid has >= 2 steps when B allows (v7x megacore + pipelining).
    """
    matmul_dtype = flat_params[0].dtype
    B = x.shape[0]

    # Sublane-aligned batch tile, preferring >= 2 grid steps.
    tb = min(block_b, max(8, _round_up(pl.cdiv(B, 2), 8)))
    b_pad = _round_up(B, tb)
    grid = (b_pad // tb,)

    x = x.astype(matmul_dtype)                    # cast once in the wrapper
    if b_pad != B:
        x = jnp.pad(x, ((0, b_pad - B), (0, 0)))
        eps = jnp.pad(eps, ((0, b_pad - B), (0, 0)))

    row_spec = lambda d: pl.BlockSpec((tb, d), lambda i: (i, 0))
    # Constant index_map -> each weight/bias is DMA'd once and stays resident
    # in VMEM across grid steps.
    const_spec = lambda p: pl.BlockSpec(p.shape, lambda i: (0, 0))

    in_specs = ([row_spec(INPUT_DIM), row_spec(LATENT_DIM)] +
                [const_spec(p) for p in flat_params])
    out_specs = (row_spec(INPUT_DIM), row_spec(LATENT_DIM), row_spec(LATENT_DIM))
    out_shape = (
        jax.ShapeDtypeStruct((b_pad, INPUT_DIM), jnp.float32),   # x_recon
        jax.ShapeDtypeStruct((b_pad, LATENT_DIM), jnp.float32),  # mean
        jax.ShapeDtypeStruct((b_pad, LATENT_DIM), jnp.float32),  # log_var
    )

    # ---- cost estimate (advisory for XLA's scheduler) ----
    layer_dims = [(INPUT_DIM, HIDDEN_DIM), (HIDDEN_DIM, HIDDEN_DIM // 2),
                  (HIDDEN_DIM // 2, HIDDEN_DIM // 4),
                  (HIDDEN_DIM // 4, 2 * LATENT_DIM),
                  (LATENT_DIM, HIDDEN_DIM // 4),
                  (HIDDEN_DIM // 4, HIDDEN_DIM // 2),
                  (HIDDEN_DIM // 2, HIDDEN_DIM), (HIDDEN_DIM, INPUT_DIM)]
    flops = 2 * b_pad * sum(din * dout for din, dout in layer_dims)
    transcendentals = b_pad * (HIDDEN_DIM // 2 + LATENT_DIM
                               + HIDDEN_DIM // 2 + INPUT_DIM)
    param_bytes = sum(int(p.size) * p.dtype.itemsize for p in flat_params)
    io_bytes = (b_pad * INPUT_DIM * x.dtype.itemsize          # x in
                + b_pad * LATENT_DIM * 4                      # eps in
                + b_pad * (INPUT_DIM + 2 * LATENT_DIM) * 4)   # outputs
    cost = pl.CostEstimate(flops=int(flops),
                           transcendentals=int(transcendentals),
                           bytes_accessed=int(param_bytes + io_bytes))

    x_recon, mean, log_var = pl.pallas_call(
        _vae_kernel,
        out_shape=out_shape,
        grid=grid,
        in_specs=in_specs,
        out_specs=out_specs,
        compiler_params=pltpu.CompilerParams(
            dimension_semantics=("parallel",)),
        cost_estimate=cost,
    )(x, eps, *flat_params)

    return x_recon[:B], mean[:B], log_var[:B]


def vae_forward_ref(x, eps, params):
    """Pure-JAX f32 reference for correctness checking."""
    h = x
    acts = [jax.nn.relu, jax.nn.sigmoid, jax.nn.relu, None]
    for (w, b), act in zip(params[:4], acts):
        h = h @ w + b
        if act is not None:
            h = act(h)
    mean, log_var = h[:, :LATENT_DIM], h[:, LATENT_DIM:]
    z = mean + eps * jnp.exp(0.5 * log_var)
    d = z
    dacts = [jax.nn.relu, jax.nn.sigmoid, jax.nn.relu, jax.nn.sigmoid]
    for (w, b), act in zip(params[4:], dacts):
        d = act(d @ w + b)
    return d, mean, log_var


if __name__ == "__main__":
    key = jax.random.PRNGKey(0)
    kx, keps, kparams = jax.random.split(key, 3)

    B = 256  # -> tb=128, two grid steps (exercises the batch pipeline)
    x = jax.random.normal(kx, (B, INPUT_DIM), dtype=jnp.float32)
    eps = jax.random.normal(keps, (B, LATENT_DIM), dtype=jnp.float32)
    params = init_params(kparams)

    xr_ref, m_ref, lv_ref = vae_forward_ref(x, eps, params)

    # f32 MXU path: exact check against the pure-JAX reference.
    flat_f32 = prepare_params(params, jnp.float32)
    xr32, m32, lv32 = jax.block_until_ready(vae_forward(x, eps, flat_f32))
    assert xr32.shape == (B, INPUT_DIM)
    assert m32.shape == (B, LATENT_DIM) and lv32.shape == (B, LATENT_DIM)
    assert jnp.allclose(xr32, xr_ref, atol=1e-5)
    assert jnp.allclose(m32, m_ref, atol=1e-5)
    assert jnp.allclose(lv32, lv_ref, atol=1e-5)

    # bf16 MXU path (default / fast path on v5e, v6e and v7x): loose check —
    # f32 accumulation and f32 elementwise math keep numerics within VAE
    # tolerance.
    flat_bf16 = prepare_params(params, jnp.bfloat16)
    xr16, m16, lv16 = jax.block_until_ready(vae_forward(x, eps, flat_bf16))
    assert jnp.all(jnp.isfinite(xr16))
    assert jnp.allclose(xr16, xr_ref, atol=1e-1, rtol=1e-1)
    assert jnp.allclose(m16, m_ref, atol=1e-1, rtol=1e-1)
    assert jnp.allclose(lv16, lv_ref, atol=1e-1, rtol=1e-1)

    print("KERNEL_OK")
</pallas_src>

<mosaic_0001>
module attributes {stable_mosaic.version = 11 : i64} {
  func.func @_vae_kernel(%arg0: i32, %arg1: memref<128x512xf32, #tpu.memory_space<vmem>>, %arg2: memref<128x20xf32, #tpu.memory_space<vmem>>, %arg3: memref<512x256xf32, #tpu.memory_space<vmem>>, %arg4: memref<1x256xf32, #tpu.memory_space<vmem>>, %arg5: memref<256x128xf32, #tpu.memory_space<vmem>>, %arg6: memref<1x128xf32, #tpu.memory_space<vmem>>, %arg7: memref<128x64xf32, #tpu.memory_space<vmem>>, %arg8: memref<1x64xf32, #tpu.memory_space<vmem>>, %arg9: memref<64x20xf32, #tpu.memory_space<vmem>>, %arg10: memref<1x20xf32, #tpu.memory_space<vmem>>, %arg11: memref<64x20xf32, #tpu.memory_space<vmem>>, %arg12: memref<1x20xf32, #tpu.memory_space<vmem>>, %arg13: memref<20x64xf32, #tpu.memory_space<vmem>>, %arg14: memref<1x64xf32, #tpu.memory_space<vmem>>, %arg15: memref<64x128xf32, #tpu.memory_space<vmem>>, %arg16: memref<1x128xf32, #tpu.memory_space<vmem>>, %arg17: memref<128x256xf32, #tpu.memory_space<vmem>>, %arg18: memref<1x256xf32, #tpu.memory_space<vmem>>, %arg19: memref<256x512xf32, #tpu.memory_space<vmem>>, %arg20: memref<1x512xf32, #tpu.memory_space<vmem>>, %arg21: memref<128x512xf32, #tpu.memory_space<vmem>>, %arg22: memref<128x20xf32, #tpu.memory_space<vmem>>, %arg23: memref<128x20xf32, #tpu.memory_space<vmem>>) attributes {dimension_semantics = [#tpu.dimension_semantics<parallel>], iteration_bounds = array<i64: 2>, scalar_prefetch = 0 : i64, scratch_operands = 0 : i64, tpu.core_type = #tpu.core_type<tc>, window_params = [{transform_indices = @transform_0, window_bounds = array<i64: 128, 512>}, {transform_indices = @transform_1, window_bounds = array<i64: 128, 20>}, {pipeline_mode = #tpu.pipeline_mode<synchronous>, transform_indices = @transform_2, window_bounds = array<i64: 512, 256>}, {pipeline_mode = #tpu.pipeline_mode<synchronous>, transform_indices = @transform_3, window_bounds = array<i64: 1, 256>}, {pipeline_mode = #tpu.pipeline_mode<synchronous>, transform_indices = @transform_4, window_bounds = array<i64: 256, 128>}, {pipeline_mode = #tpu.pipeline_mode<synchronous>, transform_indices = @transform_5, window_bounds = array<i64: 1, 128>}, {pipeline_mode = #tpu.pipeline_mode<synchronous>, transform_indices = @transform_6, window_bounds = array<i64: 128, 64>}, {pipeline_mode = #tpu.pipeline_mode<synchronous>, transform_indices = @transform_7, window_bounds = array<i64: 1, 64>}, {pipeline_mode = #tpu.pipeline_mode<synchronous>, transform_indices = @transform_8, window_bounds = array<i64: 64, 20>}, {pipeline_mode = #tpu.pipeline_mode<synchronous>, transform_indices = @transform_9, window_bounds = array<i64: 1, 20>}, {pipeline_mode = #tpu.pipeline_mode<synchronous>, transform_indices = @transform_10, window_bounds = array<i64: 64, 20>}, {pipeline_mode = #tpu.pipeline_mode<synchronous>, transform_indices = @transform_11, window_bounds = array<i64: 1, 20>}, {pipeline_mode = #tpu.pipeline_mode<synchronous>, transform_indices = @transform_12, window_bounds = array<i64: 20, 64>}, {pipeline_mode = #tpu.pipeline_mode<synchronous>, transform_indices = @transform_13, window_bounds = array<i64: 1, 64>}, {pipeline_mode = #tpu.pipeline_mode<synchronous>, transform_indices = @transform_14, window_bounds = array<i64: 64, 128>}, {pipeline_mode = #tpu.pipeline_mode<synchronous>, transform_indices = @transform_15, window_bounds = array<i64: 1, 128>}, {pipeline_mode = #tpu.pipeline_mode<synchronous>, transform_indices = @transform_16, window_bounds = array<i64: 128, 256>}, {pipeline_mode = #tpu.pipeline_mode<synchronous>, transform_indices = @transform_17, window_bounds = array<i64: 1, 256>}, {pipeline_mode = #tpu.pipeline_mode<synchronous>, transform_indices = @transform_18, window_bounds = array<i64: 256, 512>}, {pipeline_mode = #tpu.pipeline_mode<synchronous>, transform_indices = @transform_19, window_bounds = array<i64: 1, 512>}, {transform_indices = @transform_20, window_bounds = array<i64: 128, 512>}, {transform_indices = @transform_21, window_bounds = array<i64: 128, 20>}, {transform_indices = @transform_22, window_bounds = array<i64: 128, 20>}]} {
    %c0 = arith.constant 0 : index
    %c0_0 = arith.constant 0 : index
    %0 = vector.load %arg1[%c0, %c0_0] : memref<128x512xf32, #tpu.memory_space<vmem>>, vector<128x512xf32>
    %c0_1 = arith.constant 0 : index
    %c0_2 = arith.constant 0 : index
    %1 = vector.load %arg3[%c0_1, %c0_2] : memref<512x256xf32, #tpu.memory_space<vmem>>, vector<512x256xf32>
    %cst = arith.constant dense<0.000000e+00> : vector<128x256xf32>
    %2 = tpu.matmul %0, %1, %cst {dimension_numbers = #tpu.dot_dimension_numbers<[1], [0], [0], [1], [0, 0, 1, 1], [], []>} : vector<128x512xf32>, vector<512x256xf32>, vector<128x256xf32> -> vector<128x256xf32>
    %c0_3 = arith.constant 0 : index
    %c0_4 = arith.constant 0 : index
    %3 = vector.load %arg4[%c0_3, %c0_4] : memref<1x256xf32, #tpu.memory_space<vmem>>, vector<1x256xf32>
    %4 = vector.broadcast %3 : vector<1x256xf32> to vector<128x256xf32>
    %5 = arith.addf %2, %4 : vector<128x256xf32>
    %cst_5 = arith.constant 0.000000e+00 : f32
    %6 = vector.broadcast %cst_5 : f32 to vector<128x256xf32>
    %7 = arith.maximumf %5, %6 : vector<128x256xf32>
    %c0_6 = arith.constant 0 : index
    %c0_7 = arith.constant 0 : index
    %8 = vector.load %arg5[%c0_6, %c0_7] : memref<256x128xf32, #tpu.memory_space<vmem>>, vector<256x128xf32>
    %cst_8 = arith.constant dense<0.000000e+00> : vector<128x128xf32>
    %9 = tpu.matmul %7, %8, %cst_8 {dimension_numbers = #tpu.dot_dimension_numbers<[1], [0], [0], [1], [0, 0, 1, 1], [], []>} : vector<128x256xf32>, vector<256x128xf32>, vector<128x128xf32> -> vector<128x128xf32>
    %c0_9 = arith.constant 0 : index
    %c0_10 = arith.constant 0 : index
    %10 = vector.load %arg6[%c0_9, %c0_10] : memref<1x128xf32, #tpu.memory_space<vmem>>, vector<1x128xf32>
    %11 = vector.broadcast %10 : vector<1x128xf32> to vector<128x128xf32>
    %12 = arith.addf %9, %11 : vector<128x128xf32>
    %13 = arith.negf %12 : vector<128x128xf32>
    %14 = math.exp %13 : vector<128x128xf32>
    %cst_11 = arith.constant 1.000000e+00 : f32
    %15 = vector.broadcast %cst_11 : f32 to vector<128x128xf32>
    %16 = arith.addf %15, %14 : vector<128x128xf32>
    %17 = arith.divf %15, %16 : vector<128x128xf32>
    %c0_12 = arith.constant 0 : index
    %c0_13 = arith.constant 0 : index
    %18 = vector.load %arg7[%c0_12, %c0_13] : memref<128x64xf32, #tpu.memory_space<vmem>>, vector<128x64xf32>
    %cst_14 = arith.constant dense<0.000000e+00> : vector<128x64xf32>
    %19 = tpu.matmul %17, %18, %cst_14 {dimension_numbers = #tpu.dot_dimension_numbers<[1], [0], [0], [1], [0, 0, 1, 1], [], []>} : vector<128x128xf32>, vector<128x64xf32>, vector<128x64xf32> -> vector<128x64xf32>
    %c0_15 = arith.constant 0 : index
    %c0_16 = arith.constant 0 : index
    %20 = vector.load %arg8[%c0_15, %c0_16] : memref<1x64xf32, #tpu.memory_space<vmem>>, vector<1x64xf32>
    %21 = vector.broadcast %20 : vector<1x64xf32> to vector<128x64xf32>
    %22 = arith.addf %19, %21 : vector<128x64xf32>
    %cst_17 = arith.constant 0.000000e+00 : f32
    %23 = vector.broadcast %cst_17 : f32 to vector<128x64xf32>
    %24 = arith.maximumf %22, %23 : vector<128x64xf32>
    %c0_18 = arith.constant 0 : index
    %c0_19 = arith.constant 0 : index
    %25 = vector.load %arg9[%c0_18, %c0_19] : memref<64x20xf32, #tpu.memory_space<vmem>>, vector<64x20xf32>
    %cst_20 = arith.constant dense<0.000000e+00> : vector<128x20xf32>
    %26 = tpu.matmul %24, %25, %cst_20 {dimension_numbers = #tpu.dot_dimension_numbers<[1], [0], [0], [1], [0, 0, 1, 1], [], []>} : vector<128x64xf32>, vector<64x20xf32>, vector<128x20xf32> -> vector<128x20xf32>
    %c0_21 = arith.constant 0 : index
    %c0_22 = arith.constant 0 : index
    %27 = vector.load %arg10[%c0_21, %c0_22] : memref<1x20xf32, #tpu.memory_space<vmem>>, vector<1x20xf32>
    %28 = vector.broadcast %27 : vector<1x20xf32> to vector<128x20xf32>
    %29 = arith.addf %26, %28 : vector<128x20xf32>
    %c0_23 = arith.constant 0 : index
    %c0_24 = arith.constant 0 : index
    %30 = vector.load %arg11[%c0_23, %c0_24] : memref<64x20xf32, #tpu.memory_space<vmem>>, vector<64x20xf32>
    %cst_25 = arith.constant dense<0.000000e+00> : vector<128x20xf32>
    %31 = tpu.matmul %24, %30, %cst_25 {dimension_numbers = #tpu.dot_dimension_numbers<[1], [0], [0], [1], [0, 0, 1, 1], [], []>} : vector<128x64xf32>, vector<64x20xf32>, vector<128x20xf32> -> vector<128x20xf32>
    %c0_26 = arith.constant 0 : index
    %c0_27 = arith.constant 0 : index
    %32 = vector.load %arg12[%c0_26, %c0_27] : memref<1x20xf32, #tpu.memory_space<vmem>>, vector<1x20xf32>
    %33 = vector.broadcast %32 : vector<1x20xf32> to vector<128x20xf32>
    %34 = arith.addf %31, %33 : vector<128x20xf32>
    %c0_28 = arith.constant 0 : index
    %c0_29 = arith.constant 0 : index
    %35 = vector.load %arg2[%c0_28, %c0_29] : memref<128x20xf32, #tpu.memory_space<vmem>>, vector<128x20xf32>
    %cst_30 = arith.constant 5.000000e-01 : f32
    %36 = vector.broadcast %cst_30 : f32 to vector<128x20xf32>
    %37 = arith.mulf %36, %34 : vector<128x20xf32>
    %38 = math.exp %37 : vector<128x20xf32>
    %39 = arith.mulf %35, %38 : vector<128x20xf32>
    %40 = arith.addf %29, %39 : vector<128x20xf32>
    %c0_31 = arith.constant 0 : index
    %c0_32 = arith.constant 0 : index
    %41 = vector.load %arg13[%c0_31, %c0_32] : memref<20x64xf32, #tpu.memory_space<vmem>>, vector<20x64xf32>
    %cst_33 = arith.constant dense<0.000000e+00> : vector<128x64xf32>
    %42 = tpu.matmul %40, %41, %cst_33 {dimension_numbers = #tpu.dot_dimension_numbers<[1], [0], [0], [1], [0, 0, 1, 1], [], []>} : vector<128x20xf32>, vector<20x64xf32>, vector<128x64xf32> -> vector<128x64xf32>
    %c0_34 = arith.constant 0 : index
    %c0_35 = arith.constant 0 : index
    %43 = vector.load %arg14[%c0_34, %c0_35] : memref<1x64xf32, #tpu.memory_space<vmem>>, vector<1x64xf32>
    %44 = vector.broadcast %43 : vector<1x64xf32> to vector<128x64xf32>
    %45 = arith.addf %42, %44 : vector<128x64xf32>
    %cst_36 = arith.constant 0.000000e+00 : f32
    %46 = vector.broadcast %cst_36 : f32 to vector<128x64xf32>
    %47 = arith.maximumf %45, %46 : vector<128x64xf32>
    %c0_37 = arith.constant 0 : index
    %c0_38 = arith.constant 0 : index
    %48 = vector.load %arg15[%c0_37, %c0_38] : memref<64x128xf32, #tpu.memory_space<vmem>>, vector<64x128xf32>
    %cst_39 = arith.constant dense<0.000000e+00> : vector<128x128xf32>
    %49 = tpu.matmul %47, %48, %cst_39 {dimension_numbers = #tpu.dot_dimension_numbers<[1], [0], [0], [1], [0, 0, 1, 1], [], []>} : vector<128x64xf32>, vector<64x128xf32>, vector<128x128xf32> -> vector<128x128xf32>
    %c0_40 = arith.constant 0 : index
    %c0_41 = arith.constant 0 : index
    %50 = vector.load %arg16[%c0_40, %c0_41] : memref<1x128xf32, #tpu.memory_space<vmem>>, vector<1x128xf32>
    %51 = vector.broadcast %50 : vector<1x128xf32> to vector<128x128xf32>
    %52 = arith.addf %49, %51 : vector<128x128xf32>
    %53 = arith.negf %52 : vector<128x128xf32>
    %54 = math.exp %53 : vector<128x128xf32>
    %cst_42 = arith.constant 1.000000e+00 : f32
    %55 = vector.broadcast %cst_42 : f32 to vector<128x128xf32>
    %56 = arith.addf %55, %54 : vector<128x128xf32>
    %57 = arith.divf %55, %56 : vector<128x128xf32>
    %c0_43 = arith.constant 0 : index
    %c0_44 = arith.constant 0 : index
    %58 = vector.load %arg17[%c0_43, %c0_44] : memref<128x256xf32, #tpu.memory_space<vmem>>, vector<128x256xf32>
    %cst_45 = arith.constant dense<0.000000e+00> : vector<128x256xf32>
    %59 = tpu.matmul %57, %58, %cst_45 {dimension_numbers = #tpu.dot_dimension_numbers<[1], [0], [0], [1], [0, 0, 1, 1], [], []>} : vector<128x128xf32>, vector<128x256xf32>, vector<128x256xf32> -> vector<128x256xf32>
    %c0_46 = arith.constant 0 : index
    %c0_47 = arith.constant 0 : index
    %60 = vector.load %arg18[%c0_46, %c0_47] : memref<1x256xf32, #tpu.memory_space<vmem>>, vector<1x256xf32>
    %61 = vector.broadcast %60 : vector<1x256xf32> to vector<128x256xf32>
    %62 = arith.addf %59, %61 : vector<128x256xf32>
    %cst_48 = arith.constant 0.000000e+00 : f32
    %63 = vector.broadcast %cst_48 : f32 to vector<128x256xf32>
    %64 = arith.maximumf %62, %63 : vector<128x256xf32>
    %c0_49 = arith.constant 0 : index
    %c0_50 = arith.constant 0 : index
    %65 = vector.load %arg19[%c0_49, %c0_50] : memref<256x512xf32, #tpu.memory_space<vmem>>, vector<256x512xf32>
    %cst_51 = arith.constant dense<0.000000e+00> : vector<128x512xf32>
    %66 = tpu.matmul %64, %65, %cst_51 {dimension_numbers = #tpu.dot_dimension_numbers<[1], [0], [0], [1], [0, 0, 1, 1], [], []>} : vector<128x256xf32>, vector<256x512xf32>, vector<128x512xf32> -> vector<128x512xf32>
    %c0_52 = arith.constant 0 : index
    %c0_53 = arith.constant 0 : index
    %67 = vector.load %arg20[%c0_52, %c0_53] : memref<1x512xf32, #tpu.memory_space<vmem>>, vector<1x512xf32>
    %68 = vector.broadcast %67 : vector<1x512xf32> to vector<128x512xf32>
    %69 = arith.addf %66, %68 : vector<128x512xf32>
    %70 = arith.negf %69 : vector<128x512xf32>
    %71 = math.exp %70 : vector<128x512xf32>
    %cst_54 = arith.constant 1.000000e+00 : f32
    %72 = vector.broadcast %cst_54 : f32 to vector<128x512xf32>
    %73 = arith.addf %72, %71 : vector<128x512xf32>
    %74 = arith.divf %72, %73 : vector<128x512xf32>
    %c0_55 = arith.constant 0 : index
    %c0_56 = arith.constant 0 : index
    %75 = vector.load %arg21[%c0_55, %c0_56] : memref<128x512xf32, #tpu.memory_space<vmem>>, vector<128x512xf32>
    tpu.vector_store %arg21[%c0_55, %c0_56], %74 {strides = array<i32>} : memref<128x512xf32, #tpu.memory_space<vmem>>, vector<128x512xf32>,
    %c0_57 = arith.constant 0 : index
    %c0_58 = arith.constant 0 : index
    %76 = vector.load %arg22[%c0_57, %c0_58] : memref<128x20xf32, #tpu.memory_space<vmem>>, vector<128x20xf32>
    tpu.vector_store %arg22[%c0_57, %c0_58], %29 {strides = array<i32>} : memref<128x20xf32, #tpu.memory_space<vmem>>, vector<128x20xf32>,
    %c0_59 = arith.constant 0 : index
    %c0_60 = arith.constant 0 : index
    %77 = vector.load %arg23[%c0_59, %c0_60] : memref<128x20xf32, #tpu.memory_space<vmem>>, vector<128x20xf32>
    tpu.vector_store %arg23[%c0_59, %c0_60], %34 {strides = array<i32>} : memref<128x20xf32, #tpu.memory_space<vmem>>, vector<128x20xf32>,
    return
  }
  func.func @transform_0(%arg0: i32) -> (i32, i32) {
    %c0_i32 = arith.constant 0 : i32
    %c0_i32_0 = arith.constant 0 : i32
    return %arg0, %c0_i32 : i32, i32
  }
  func.func @transform_1(%arg0: i32) -> (i32, i32) {
    %c0_i32 = arith.constant 0 : i32
    %c0_i32_0 = arith.constant 0 : i32
    return %arg0, %c0_i32 : i32, i32
  }
  func.func @transform_2(%arg0: i32) -> (i32, i32) {
    %c0_i32 = arith.constant 0 : i32
    %c0_i32_0 = arith.constant 0 : i32
    %c0_i32_1 = arith.constant 0 : i32
    return %c0_i32, %c0_i32_0 : i32, i32
  }
  func.func @transform_3(%arg0: i32) -> (i32, i32) {
    %c0_i32 = arith.constant 0 : i32
    %c0_i32_0 = arith.constant 0 : i32
    %c0_i32_1 = arith.constant 0 : i32
    return %c0_i32, %c0_i32_0 : i32, i32
  }
  func.func @transform_4(%arg0: i32) -> (i32, i32) {
    %c0_i32 = arith.constant 0 : i32
    %c0_i32_0 = arith.constant 0 : i32
    %c0_i32_1 = arith.constant 0 : i32
    return %c0_i32, %c0_i32_0 : i32, i32
  }
  func.func @transform_5(%arg0: i32) -> (i32, i32) {
    %c0_i32 = arith.constant 0 : i32
    %c0_i32_0 = arith.constant 0 : i32
    %c0_i32_1 = arith.constant 0 : i32
    return %c0_i32, %c0_i32_0 : i32, i32
  }
  func.func @transform_6(%arg0: i32) -> (i32, i32) {
    %c0_i32 = arith.constant 0 : i32
    %c0_i32_0 = arith.constant 0 : i32
    %c0_i32_1 = arith.constant 0 : i32
    return %c0_i32, %c0_i32_0 : i32, i32
  }
  func.func @transform_7(%arg0: i32) -> (i32, i32) {
    %c0_i32 = arith.constant 0 : i32
    %c0_i32_0 = arith.constant 0 : i32
    %c0_i32_1 = arith.constant 0 : i32
    return %c0_i32, %c0_i32_0 : i32, i32
  }
  func.func @transform_8(%arg0: i32) -> (i32, i32) {
    %c0_i32 = arith.constant 0 : i32
    %c0_i32_0 = arith.constant 0 : i32
    %c0_i32_1 = arith.constant 0 : i32
    return %c0_i32, %c0_i32_0 : i32, i32
  }
  func.func @transform_9(%arg0: i32) -> (i32, i32) {
    %c0_i32 = arith.constant 0 : i32
    %c0_i32_0 = arith.constant 0 : i32
    %c0_i32_1 = arith.constant 0 : i32
    return %c0_i32, %c0_i32_0 : i32, i32
  }
  func.func @transform_10(%arg0: i32) -> (i32, i32) {
    %c0_i32 = arith.constant 0 : i32
    %c0_i32_0 = arith.constant 0 : i32
    %c0_i32_1 = arith.constant 0 : i32
    return %c0_i32, %c0_i32_0 : i32, i32
  }
  func.func @transform_11(%arg0: i32) -> (i32, i32) {
    %c0_i32 = arith.constant 0 : i32
    %c0_i32_0 = arith.constant 0 : i32
    %c0_i32_1 = arith.constant 0 : i32
    return %c0_i32, %c0_i32_0 : i32, i32
  }
  func.func @transform_12(%arg0: i32) -> (i32, i32) {
    %c0_i32 = arith.constant 0 : i32
    %c0_i32_0 = arith.constant 0 : i32
    %c0_i32_1 = arith.constant 0 : i32
    return %c0_i32, %c0_i32_0 : i32, i32
  }
  func.func @transform_13(%arg0: i32) -> (i32, i32) {
    %c0_i32 = arith.constant 0 : i32
    %c0_i32_0 = arith.constant 0 : i32
    %c0_i32_1 = arith.constant 0 : i32
    return %c0_i32, %c0_i32_0 : i32, i32
  }
  func.func @transform_14(%arg0: i32) -> (i32, i32) {
    %c0_i32 = arith.constant 0 : i32
    %c0_i32_0 = arith.constant 0 : i32
    %c0_i32_1 = arith.constant 0 : i32
    return %c0_i32, %c0_i32_0 : i32, i32
  }
  func.func @transform_15(%arg0: i32) -> (i32, i32) {
    %c0_i32 = arith.constant 0 : i32
    %c0_i32_0 = arith.constant 0 : i32
    %c0_i32_1 = arith.constant 0 : i32
    return %c0_i32, %c0_i32_0 : i32, i32
  }
  func.func @transform_16(%arg0: i32) -> (i32, i32) {
    %c0_i32 = arith.constant 0 : i32
    %c0_i32_0 = arith.constant 0 : i32
    %c0_i32_1 = arith.constant 0 : i32
    return %c0_i32, %c0_i32_0 : i32, i32
  }
  func.func @transform_17(%arg0: i32) -> (i32, i32) {
    %c0_i32 = arith.constant 0 : i32
    %c0_i32_0 = arith.constant 0 : i32
    %c0_i32_1 = arith.constant 0 : i32
    return %c0_i32, %c0_i32_0 : i32, i32
  }
  func.func @transform_18(%arg0: i32) -> (i32, i32) {
    %c0_i32 = arith.constant 0 : i32
    %c0_i32_0 = arith.constant 0 : i32
    %c0_i32_1 = arith.constant 0 : i32
    return %c0_i32, %c0_i32_0 : i32, i32
  }
  func.func @transform_19(%arg0: i32) -> (i32, i32) {
    %c0_i32 = arith.constant 0 : i32
    %c0_i32_0 = arith.constant 0 : i32
    %c0_i32_1 = arith.constant 0 : i32
    return %c0_i32, %c0_i32_0 : i32, i32
  }
  func.func @transform_20(%arg0: i32) -> (i32, i32) {
    %c0_i32 = arith.constant 0 : i32
    %c0_i32_0 = arith.constant 0 : i32
    return %arg0, %c0_i32 : i32, i32
  }
  func.func @transform_21(%arg0: i32) -> (i32, i32) {
    %c0_i32 = arith.constant 0 : i32
    %c0_i32_0 = arith.constant 0 : i32
    return %arg0, %c0_i32 : i32, i32
  }
  func.func @transform_22(%arg0: i32) -> (i32, i32) {
    %c0_i32 = arith.constant 0 : i32
    %c0_i32_0 = arith.constant 0 : i32
    return %arg0, %c0_i32 : i32, i32
  }
}

</mosaic_0001>

<llo_original>
// kernel: tpu_custom_call.1
$region0: #{tpu_custom_call.1}
  #allocation0 [shape = 'u32[]', space=smem, size = 0x4, offset = 0x4, fixed_abs, tag = 'smem constant byte address 0x4 - core index']
  #allocation1 [shape = 'u32[144,128]{1,0:T(1,128)}', space=vmem, size = 0x12000, scoped, tag = 'internal scratch']
  %s0 = inlined_call_operand.hbm [shape: f32[256,512], index: 0, kind: input, shape index: {}]
  %s1 = inlined_call_operand.vmem [shape: f32[256,20], index: 1, kind: input, shape index: {}]
  %s2 = inlined_call_operand.hbm [shape: f32[512,256], index: 2, kind: input, shape index: {}]
  %s3 = inlined_call_operand.vmem [shape: f32[1,256], index: 3, kind: input, shape index: {}]
  %s4 = inlined_call_operand.vmem [shape: f32[256,128], index: 4, kind: input, shape index: {}]
  %s5 = inlined_call_operand.vmem [shape: f32[1,128], index: 5, kind: input, shape index: {}]
  %s6 = inlined_call_operand.vmem [shape: f32[128,64], index: 6, kind: input, shape index: {}]
  %s7 = inlined_call_operand.vmem [shape: f32[1,64], index: 7, kind: input, shape index: {}]
  %s8 = inlined_call_operand.vmem [shape: f32[64,20], index: 8, kind: input, shape index: {}]
  %s9 = inlined_call_operand.vmem [shape: f32[1,20], index: 9, kind: input, shape index: {}]
  %s10 = inlined_call_operand.vmem [shape: f32[64,20], index: 10, kind: input, shape index: {}]
  %s11 = inlined_call_operand.vmem [shape: f32[1,20], index: 11, kind: input, shape index: {}]
  %s12 = inlined_call_operand.vmem [shape: f32[20,64], index: 12, kind: input, shape index: {}]
  %s13 = inlined_call_operand.vmem [shape: f32[1,64], index: 13, kind: input, shape index: {}]
  %s14 = inlined_call_operand.vmem [shape: f32[64,128], index: 14, kind: input, shape index: {}]
  %s15 = inlined_call_operand.vmem [shape: f32[1,128], index: 15, kind: input, shape index: {}]
  %s16 = inlined_call_operand.vmem [shape: f32[128,256], index: 16, kind: input, shape index: {}]
  %s17 = inlined_call_operand.vmem [shape: f32[1,256], index: 17, kind: input, shape index: {}]
  %s18 = inlined_call_operand.hbm [shape: f32[256,512], index: 18, kind: input, shape index: {}]
  %s19 = inlined_call_operand.vmem [shape: f32[1,512], index: 19, kind: input, shape index: {}]
  %s20 = inlined_call_operand.hbm [shape: f32[256,512], index: 20, kind: output, shape index: {0}]
  %s21 = inlined_call_operand.vmem [shape: f32[256,20], index: 21, kind: output, shape index: {1}]
  %s22 = inlined_call_operand.vmem [shape: f32[256,20], index: 22, kind: output, shape index: {2}]
  %23 = xla_tuple %s20, %s21, %s22
  %s24 = sld [smem:[#allocation0]]
  $region141: #{tpu_custom_call.1} parent=0
    _
  %s26 = ssub.s32 1, %s24
  %s27 = scalar_select 0, %s26, %s24
  $region1: #{tpu_custom_call.1} parent=0
    #allocation2 [shape = 'u8[524288]{0}', space=vmem, size = 0x80000, scoped, tag = 'input window, operand 0']
    #allocation3 [shape = 's32[2]{0}', space=sflag, size = 0x8, scoped, tag = 'scoped memory for tpu_custom_call.1']
    #allocation4 [shape = 's32[2]{0}', space=sflag, size = 0x8, scoped, tag = 'scoped memory for tpu_custom_call.1']
    #allocation5 [shape = 'u8[524288]{0}', space=vmem, size = 0x80000, scoped, tag = 'input window, operand 2, single buffered']
    #allocation6 [shape = 's32[1]{0}', space=sflag, size = 0x4, scoped, tag = 'scoped memory for tpu_custom_call.1']
    #allocation7 [shape = 'u8[524288]{0}', space=vmem, size = 0x80000, scoped, tag = 'input window, operand 18, single buffered']
    #allocation8 [shape = 'u8[524288]{0}', space=vmem, size = 0x80000, scoped, tag = 'output window, operand 0']
    %28 = vsyncpa [#allocation3], 0
    %s29 = scalar_lea.sflag [#allocation3], 1
    %30 = vsyncpa %s29, 0
    %31 = vsyncpa [#allocation6], 0
    %32 = vsyncpa [#allocation4], 0
    %s33 = scalar_lea.sflag [#allocation4], 1
    %34 = vsyncpa %s33, 0
    loop: start=0, step=1, limit=4
    $region2: #{tpu_custom_call.1} parent=1 // loop_pre_header
      _
    $region3: #{tpu_custom_call.1} parent=1 // loop_header
      %s36 = sphi 0, %s40
      %p37 = scmp.ge.s32.totalorder %s36, 4
      %s46 = sphi 0, %s48
      %s49 = sphi 0, %s46
      %s50 = sphi 0, %s49
      %s66 = sphi 0, %s50
      %s72 = sphi 0, %s74
      %s75 = sphi 0, %s72
      %s76 = sphi 0, %s75
      %s92 = sphi 0, %s76
      %s96 = sphi 0, %s96
      %s98 = sphi 0, %s96
      %s99 = sphi 0, %s98
      %s113 = sphi 0, %s99
      %s117 = sphi 0, %s117
      %s119 = sphi 0, %s117
      %s120 = sphi 0, %s119
      %s134 = sphi 0, %s120
      %s138 = sphi 0, %s138
      %s140 = sphi 0, %s138
      %s141 = sphi 0, %s140
      %s155 = sphi 0, %s141
      %s159 = sphi 0, %s159
      %s161 = sphi 0, %s159
      %s162 = sphi 0, %s161
      %s176 = sphi 0, %s162
      %s180 = sphi 0, %s180
      %s182 = sphi 0, %s180
      %s183 = sphi 0, %s182
      %s197 = sphi 0, %s183
      %s201 = sphi 0, %s201
      %s203 = sphi 0, %s201
      %s204 = sphi 0, %s203
      %s218 = sphi 0, %s204
      %s222 = sphi 0, %s222
      %s224 = sphi 0, %s222
      %s225 = sphi 0, %s224
      %s239 = sphi 0, %s225
      %s243 = sphi 0, %s243
      %s245 = sphi 0, %s243
      %s246 = sphi 0, %s245
      %s260 = sphi 0, %s246
      %s264 = sphi 0, %s264
      %s266 = sphi 0, %s264
      %s267 = sphi 0, %s266
      %s281 = sphi 0, %s267
      %s285 = sphi 0, %s285
      %s287 = sphi 0, %s285
      %s288 = sphi 0, %s287
      %s302 = sphi 0, %s288
      %s306 = sphi 0, %s306
      %s308 = sphi 0, %s306
      %s309 = sphi 0, %s308
      %s323 = sphi 0, %s309
      %s327 = sphi 0, %s327
      %s329 = sphi 0, %s327
      %s330 = sphi 0, %s329
      %s344 = sphi 0, %s330
      %s348 = sphi 0, %s348
      %s350 = sphi 0, %s348
      %s351 = sphi 0, %s350
      %s365 = sphi 0, %s351
      %s369 = sphi 0, %s369
      %s371 = sphi 0, %s369
      %s372 = sphi 0, %s371
      %s386 = sphi 0, %s372
      %s390 = sphi 0, %s390
      %s392 = sphi 0, %s390
      %s393 = sphi 0, %s392
      %s407 = sphi 0, %s393
      %s411 = sphi 0, %s411
      %s413 = sphi 0, %s411
      %s414 = sphi 0, %s413
      %s428 = sphi 0, %s414
      %s432 = sphi 0, %s432
      %s434 = sphi 0, %s432
      %s435 = sphi 0, %s434
      %s449 = sphi 0, %s435
      %s453 = sphi 0, %s453
      %s455 = sphi 0, %s453
      %s456 = sphi 0, %s455
      %s470 = sphi 0, %s456
      %s476 = sphi 0, %s478
      %s479 = sphi 0, %s476
      %s480 = sphi 0, %s479
      %s496 = sphi 0, %s480
      %s502 = sphi 0, %s504
      %s505 = sphi 0, %s502
      %s506 = sphi 0, %s505
      %s522 = sphi 0, %s506
      %s528 = sphi 0, %s530
      %s531 = sphi 0, %s528
      %s532 = sphi 0, %s531
      %s548 = sphi 0, %s532
    $region4: #{tpu_custom_call.1} parent=1 // loop_header_branch
      %39 = sbr.rel (%p37) target = $region8
    $region5: #{tpu_custom_call.1} parent=1 // loop_body
      %s41 = ssub.s32 %s36, 1
      %s42 = ssub.s32 %s36, 2
      %s43 = sadd.s32 %s36, 1
      %s44 = ssub.s32 %s36, %s43
      %p45 = scmp.eq.s32.totalorder %s44, 0
      %s47 = sadd.s32 %s46, 1
      %s48 = scalar_select %p45, %s46, %s47
      %p51 = pneg %p45
      %p52 = scmp.eq.s32.totalorder %s36, 1
      %p53 = por %p51, %p52
      %p54 = scmp.ne.s32.totalorder %s46, %s49
      %p55 = scmp.eq.s32.totalorder %s36, 0
      %p56 = por %p54, %p55
      %p57 = scmp.ne.s32.totalorder %s46, %s49
      %p58 = scmp.eq.s32.totalorder %s41, 1
      %p59 = por %p57, %p58
      %p60 = scmp.ne.s32.totalorder %s49, %s50
      %p61 = scmp.eq.s32.totalorder %s41, 0
      %p62 = por %p60, %p61
      %p63 = scmp.ne.s32.totalorder %s49, %s50
      %p64 = scmp.eq.s32.totalorder %s42, 1
      %p65 = por %p63, %p64
      %p67 = scmp.ne.s32.totalorder %s50, %s66
      %p68 = scmp.eq.s32.totalorder %s42, 0
      %p69 = por %p67, %p68
      %s70 = ssub.s32 %s36, %s43
      %p71 = scmp.eq.s32.totalorder %s70, 0
      %s73 = sadd.s32 %s72, 1
      %s74 = scalar_select %p71, %s72, %s73
      %p77 = pneg %p71
      %p78 = scmp.eq.s32.totalorder %s36, 1
      %p79 = por %p77, %p78
      %p80 = scmp.ne.s32.totalorder %s72, %s75
      %p81 = scmp.eq.s32.totalorder %s36, 0
      %p82 = por %p80, %p81
      %p83 = scmp.ne.s32.totalorder %s72, %s75
      %p84 = scmp.eq.s32.totalorder %s41, 1
      %p85 = por %p83, %p84
      %p86 = scmp.ne.s32.totalorder %s75, %s76
      %p87 = scmp.eq.s32.totalorder %s41, 0
      %p88 = por %p86, %p87
      %p89 = scmp.ne.s32.totalorder %s75, %s76
      %p90 = scmp.eq.s32.totalorder %s42, 1
      %p91 = por %p89, %p90
      %p93 = scmp.ne.s32.totalorder %s76, %s92
      %p94 = scmp.eq.s32.totalorder %s42, 0
      %p95 = por %p93, %p94
      %s97 = sadd.s32 %s96, 1
      %p100 = scmp.eq.s32.totalorder %s36, 1
      %p101 = scmp.ne.s32.totalorder %s96, %s98
      %p102 = scmp.eq.s32.totalorder %s36, 0
      %p103 = por %p101, %p102
      %p104 = scmp.ne.s32.totalorder %s96, %s98
      %p105 = scmp.eq.s32.totalorder %s41, 1
      %p106 = por %p104, %p105
      %p107 = scmp.ne.s32.totalorder %s98, %s99
      %p108 = scmp.eq.s32.totalorder %s41, 0
      %p109 = por %p107, %p108
      %p110 = scmp.ne.s32.totalorder %s98, %s99
      %p111 = scmp.eq.s32.totalorder %s42, 1
      %p112 = por %p110, %p111
      %p114 = scmp.ne.s32.totalorder %s99, %s113
      %p115 = scmp.eq.s32.totalorder %s42, 0
      %p116 = por %p114, %p115
      %s118 = sadd.s32 %s117, 1
      %p121 = scmp.eq.s32.totalorder %s36, 1
      %p122 = scmp.ne.s32.totalorder %s117, %s119
      %p123 = scmp.eq.s32.totalorder %s36, 0
      %p124 = por %p122, %p123
      %p125 = scmp.ne.s32.totalorder %s117, %s119
      %p126 = scmp.eq.s32.totalorder %s41, 1
      %p127 = por %p125, %p126
      %p128 = scmp.ne.s32.totalorder %s119, %s120
      %p129 = scmp.eq.s32.totalorder %s41, 0
      %p130 = por %p128, %p129
      %p131 = scmp.ne.s32.totalorder %s119, %s120
      %p132 = scmp.eq.s32.totalorder %s42, 1
      %p133 = por %p131, %p132
      %p135 = scmp.ne.s32.totalorder %s120, %s134
      %p136 = scmp.eq.s32.totalorder %s42, 0
      %p137 = por %p135, %p136
      %s139 = sadd.s32 %s138, 1
      %p142 = scmp.eq.s32.totalorder %s36, 1
      %p143 = scmp.ne.s32.totalorder %s138, %s140
      %p144 = scmp.eq.s32.totalorder %s36, 0
      %p145 = por %p143, %p144
      %p146 = scmp.ne.s32.totalorder %s138, %s140
      %p147 = scmp.eq.s32.totalorder %s41, 1
      %p148 = por %p146, %p147
      %p149 = scmp.ne.s32.totalorder %s140, %s141
      %p150 = scmp.eq.s32.totalorder %s41, 0
      %p151 = por %p149, %p150
      %p152 = scmp.ne.s32.totalorder %s140, %s141
      %p153 = scmp.eq.s32.totalorder %s42, 1
      %p154 = por %p152, %p153
      %p156 = scmp.ne.s32.totalorder %s141, %s155
      %p157 = scmp.eq.s32.totalorder %s42, 0
      %p158 = por %p156, %p157
      %s160 = sadd.s32 %s159, 1
      %p163 = scmp.eq.s32.totalorder %s36, 1
      %p164 = scmp.ne.s32.totalorder %s159, %s161
      %p165 = scmp.eq.s32.totalorder %s36, 0
      %p166 = por %p164, %p165
      %p167 = scmp.ne.s32.totalorder %s159, %s161
      %p168 = scmp.eq.s32.totalorder %s41, 1
      %p169 = por %p167, %p168
      %p170 = scmp.ne.s32.totalorder %s161, %s162
      %p171 = scmp.eq.s32.totalorder %s41, 0
      %p172 = por %p170, %p171
      %p173 = scmp.ne.s32.totalorder %s161, %s162
      %p174 = scmp.eq.s32.totalorder %s42, 1
      %p175 = por %p173, %p174
      %p177 = scmp.ne.s32.totalorder %s162, %s176
      %p178 = scmp.eq.s32.totalorder %s42, 0
      %p179 = por %p177, %p178
      %s181 = sadd.s32 %s180, 1
      %p184 = scmp.eq.s32.totalorder %s36, 1
      %p185 = scmp.ne.s32.totalorder %s180, %s182
      %p186 = scmp.eq.s32.totalorder %s36, 0
      %p187 = por %p185, %p186
      %p188 = scmp.ne.s32.totalorder %s180, %s182
      %p189 = scmp.eq.s32.totalorder %s41, 1
      %p190 = por %p188, %p189
      %p191 = scmp.ne.s32.totalorder %s182, %s183
      %p192 = scmp.eq.s32.totalorder %s41, 0
      %p193 = por %p191, %p192
      %p194 = scmp.ne.s32.totalorder %s182, %s183
      %p195 = scmp.eq.s32.totalorder %s42, 1
      %p196 = por %p194, %p195
      %p198 = scmp.ne.s32.totalorder %s183, %s197
      %p199 = scmp.eq.s32.totalorder %s42, 0
      %p200 = por %p198, %p199
      %s202 = sadd.s32 %s201, 1
      %p205 = scmp.eq.s32.totalorder %s36, 1
      %p206 = scmp.ne.s32.totalorder %s201, %s203
      %p207 = scmp.eq.s32.totalorder %s36, 0
      %p208 = por %p206, %p207
      %p209 = scmp.ne.s32.totalorder %s201, %s203
      %p210 = scmp.eq.s32.totalorder %s41, 1
      %p211 = por %p209, %p210
      %p212 = scmp.ne.s32.totalorder %s203, %s204
      %p213 = scmp.eq.s32.totalorder %s41, 0
      %p214 = por %p212, %p213
      %p215 = scmp.ne.s32.totalorder %s203, %s204
      %p216 = scmp.eq.s32.totalorder %s42, 1
      %p217 = por %p215, %p216
      %p219 = scmp.ne.s32.totalorder %s204, %s218
      %p220 = scmp.eq.s32.totalorder %s42, 0
      %p221 = por %p219, %p220
      %s223 = sadd.s32 %s222, 1
      %p226 = scmp.eq.s32.totalorder %s36, 1
      %p227 = scmp.ne.s32.totalorder %s222, %s224
      %p228 = scmp.eq.s32.totalorder %s36, 0
      %p229 = por %p227, %p228
      %p230 = scmp.ne.s32.totalorder %s222, %s224
      %p231 = scmp.eq.s32.totalorder %s41, 1
      %p232 = por %p230, %p231
      %p233 = scmp.ne.s32.totalorder %s224, %s225
      %p234 = scmp.eq.s32.totalorder %s41, 0
      %p235 = por %p233, %p234
      %p236 = scmp.ne.s32.totalorder %s224, %s225
      %p237 = scmp.eq.s32.totalorder %s42, 1
      %p238 = por %p236, %p237
      %p240 = scmp.ne.s32.totalorder %s225, %s239
      %p241 = scmp.eq.s32.totalorder %s42, 0
      %p242 = por %p240, %p241
      %s244 = sadd.s32 %s243, 1
      %p247 = scmp.eq.s32.totalorder %s36, 1
      %p248 = scmp.ne.s32.totalorder %s243, %s245
      %p249 = scmp.eq.s32.totalorder %s36, 0
      %p250 = por %p248, %p249
      %p251 = scmp.ne.s32.totalorder %s243, %s245
      %p252 = scmp.eq.s32.totalorder %s41, 1
      %p253 = por %p251, %p252
      %p254 = scmp.ne.s32.totalorder %s245, %s246
      %p255 = scmp.eq.s32.totalorder %s41, 0
      %p256 = por %p254, %p255
      %p257 = scmp.ne.s32.totalorder %s245, %s246
      %p258 = scmp.eq.s32.totalorder %s42, 1
      %p259 = por %p257, %p258
      %p261 = scmp.ne.s32.totalorder %s246, %s260
      %p262 = scmp.eq.s32.totalorder %s42, 0
      %p263 = por %p261, %p262
      %s265 = sadd.s32 %s264, 1
      %p268 = scmp.eq.s32.totalorder %s36, 1
      %p269 = scmp.ne.s32.totalorder %s264, %s266
      %p270 = scmp.eq.s32.totalorder %s36, 0
      %p271 = por %p269, %p270
      %p272 = scmp.ne.s32.totalorder %s264, %s266
      %p273 = scmp.eq.s32.totalorder %s41, 1
      %p274 = por %p272, %p273
      %p275 = scmp.ne.s32.totalorder %s266, %s267
      %p276 = scmp.eq.s32.totalorder %s41, 0
      %p277 = por %p275, %p276
      %p278 = scmp.ne.s32.totalorder %s266, %s267
      %p279 = scmp.eq.s32.totalorder %s42, 1
      %p280 = por %p278, %p279
      %p282 = scmp.ne.s32.totalorder %s267, %s281
      %p283 = scmp.eq.s32.totalorder %s42, 0
      %p284 = por %p282, %p283
      %s286 = sadd.s32 %s285, 1
      %p289 = scmp.eq.s32.totalorder %s36, 1
      %p290 = scmp.ne.s32.totalorder %s285, %s287
      %p291 = scmp.eq.s32.totalorder %s36, 0
      %p292 = por %p290, %p291
      %p293 = scmp.ne.s32.totalorder %s285, %s287
      %p294 = scmp.eq.s32.totalorder %s41, 1
      %p295 = por %p293, %p294
      %p296 = scmp.ne.s32.totalorder %s287, %s288
      %p297 = scmp.eq.s32.totalorder %s41, 0
      %p298 = por %p296, %p297
      %p299 = scmp.ne.s32.totalorder %s287, %s288
      %p300 = scmp.eq.s32.totalorder %s42, 1
      %p301 = por %p299, %p300
      %p303 = scmp.ne.s32.totalorder %s288, %s302
      %p304 = scmp.eq.s32.totalorder %s42, 0
      %p305 = por %p303, %p304
      %s307 = sadd.s32 %s306, 1
      %p310 = scmp.eq.s32.totalorder %s36, 1
      %p311 = scmp.ne.s32.totalorder %s306, %s308
      %p312 = scmp.eq.s32.totalorder %s36, 0
      %p313 = por %p311, %p312
      %p314 = scmp.ne.s32.totalorder %s306, %s308
      %p315 = scmp.eq.s32.totalorder %s41, 1
      %p316 = por %p314, %p315
      %p317 = scmp.ne.s32.totalorder %s308, %s309
      %p318 = scmp.eq.s32.totalorder %s41, 0
      %p319 = por %p317, %p318
      %p320 = scmp.ne.s32.totalorder %s308, %s309
      %p321 = scmp.eq.s32.totalorder %s42, 1
      %p322 = por %p320, %p321
      %p324 = scmp.ne.s32.totalorder %s309, %s323
      %p325 = scmp.eq.s32.totalorder %s42, 0
      %p326 = por %p324, %p325
      %s328 = sadd.s32 %s327, 1
      %p331 = scmp.eq.s32.totalorder %s36, 1
      %p332 = scmp.ne.s32.totalorder %s327, %s329
      %p333 = scmp.eq.s32.totalorder %s36, 0
      %p334 = por %p332, %p333
      %p335 = scmp.ne.s32.totalorder %s327, %s329
      %p336 = scmp.eq.s32.totalorder %s41, 1
      %p337 = por %p335, %p336
      %p338 = scmp.ne.s32.totalorder %s329, %s330
      %p339 = scmp.eq.s32.totalorder %s41, 0
      %p340 = por %p338, %p339
      %p341 = scmp.ne.s32.totalorder %s329, %s330
      %p342 = scmp.eq.s32.totalorder %s42, 1
      %p343 = por %p341, %p342
      %p345 = scmp.ne.s32.totalorder %s330, %s344
      %p346 = scmp.eq.s32.totalorder %s42, 0
      %p347 = por %p345, %p346
      %s349 = sadd.s32 %s348, 1
      %p352 = scmp.eq.s32.totalorder %s36, 1
      %p353 = scmp.ne.s32.totalorder %s348, %s350
      %p354 = scmp.eq.s32.totalorder %s36, 0
      %p355 = por %p353, %p354
      %p356 = scmp.ne.s32.totalorder %s348, %s350
      %p357 = scmp.eq.s32.totalorder %s41, 1
      %p358 = por %p356, %p357
      %p359 = scmp.ne.s32.totalorder %s350, %s351
      %p360 = scmp.eq.s32.totalorder %s41, 0
      %p361 = por %p359, %p360
      %p362 = scmp.ne.s32.totalorder %s350, %s351
      %p363 = scmp.eq.s32.totalorder %s42, 1
      %p364 = por %p362, %p363
      %p366 = scmp.ne.s32.totalorder %s351, %s365
      %p367 = scmp.eq.s32.totalorder %s42, 0
      %p368 = por %p366, %p367
      %s370 = sadd.s32 %s369, 1
      %p373 = scmp.eq.s32.totalorder %s36, 1
      %p374 = scmp.ne.s32.totalorder %s369, %s371
      %p375 = scmp.eq.s32.totalorder %s36, 0
      %p376 = por %p374, %p375
      %p377 = scmp.ne.s32.totalorder %s369, %s371
      %p378 = scmp.eq.s32.totalorder %s41, 1
      %p379 = por %p377, %p378
      %p380 = scmp.ne.s32.totalorder %s371, %s372
      %p381 = scmp.eq.s32.totalorder %s41, 0
      %p382 = por %p380, %p381
      %p383 = scmp.ne.s32.totalorder %s371, %s372
      %p384 = scmp.eq.s32.totalorder %s42, 1
      %p385 = por %p383, %p384
      %p387 = scmp.ne.s32.totalorder %s372, %s386
      %p388 = scmp.eq.s32.totalorder %s42, 0
      %p389 = por %p387, %p388
      %s391 = sadd.s32 %s390, 1
      %p394 = scmp.eq.s32.totalorder %s36, 1
      %p395 = scmp.ne.s32.totalorder %s390, %s392
      %p396 = scmp.eq.s32.totalorder %s36, 0
      %p397 = por %p395, %p396
      %p398 = scmp.ne.s32.totalorder %s390, %s392
      %p399 = scmp.eq.s32.totalorder %s41, 1
      %p400 = por %p398, %p399
      %p401 = scmp.ne.s32.totalorder %s392, %s393
      %p402 = scmp.eq.s32.totalorder %s41, 0
      %p403 = por %p401, %p402
      %p404 = scmp.ne.s32.totalorder %s392, %s393
      %p405 = scmp.eq.s32.totalorder %s42, 1
      %p406 = por %p404, %p405
      %p408 = scmp.ne.s32.totalorder %s393, %s407
      %p409 = scmp.eq.s32.totalorder %s42, 0
      %p410 = por %p408, %p409
      %s412 = sadd.s32 %s411, 1
      %p415 = scmp.eq.s32.totalorder %s36, 1
      %p416 = scmp.ne.s32.totalorder %s411, %s413
      %p417 = scmp.eq.s32.totalorder %s36, 0
      %p418 = por %p416, %p417
      %p419 = scmp.ne.s32.totalorder %s411, %s413
      %p420 = scmp.eq.s32.totalorder %s41, 1
      %p421 = por %p419, %p420
      %p422 = scmp.ne.s32.totalorder %s413, %s414
      %p423 = scmp.eq.s32.totalorder %s41, 0
      %p424 = por %p422, %p423
      %p425 = scmp.ne.s32.totalorder %s413, %s414
      %p426 = scmp.eq.s32.totalorder %s42, 1
      %p427 = por %p425, %p426
      %p429 = scmp.ne.s32.totalorder %s414, %s428
      %p430 = scmp.eq.s32.totalorder %s42, 0
      %p431 = por %p429, %p430
      %s433 = sadd.s32 %s432, 1
      %p436 = scmp.eq.s32.totalorder %s36, 1
      %p437 = scmp.ne.s32.totalorder %s432, %s434
      %p438 = scmp.eq.s32.totalorder %s36, 0
      %p439 = por %p437, %p438
      %p440 = scmp.ne.s32.totalorder %s432, %s434
      %p441 = scmp.eq.s32.totalorder %s41, 1
      %p442 = por %p440, %p441
      %p443 = scmp.ne.s32.totalorder %s434, %s435
      %p444 = scmp.eq.s32.totalorder %s41, 0
      %p445 = por %p443, %p444
      %p446 = scmp.ne.s32.totalorder %s434, %s435
      %p447 = scmp.eq.s32.totalorder %s42, 1
      %p448 = por %p446, %p447
      %p450 = scmp.ne.s32.totalorder %s435, %s449
      %p451 = scmp.eq.s32.totalorder %s42, 0
      %p452 = por %p450, %p451
      %s454 = sadd.s32 %s453, 1
      %p457 = scmp.eq.s32.totalorder %s36, 1
      %p458 = scmp.ne.s32.totalorder %s453, %s455
      %p459 = scmp.eq.s32.totalorder %s36, 0
      %p460 = por %p458, %p459
      %p461 = scmp.ne.s32.totalorder %s453, %s455
      %p462 = scmp.eq.s32.totalorder %s41, 1
      %p463 = por %p461, %p462
      %p464 = scmp.ne.s32.totalorder %s455, %s456
      %p465 = scmp.eq.s32.totalorder %s41, 0
      %p466 = por %p464, %p465
      %p467 = scmp.ne.s32.totalorder %s455, %s456
      %p468 = scmp.eq.s32.totalorder %s42, 1
      %p469 = por %p467, %p468
      %p471 = scmp.ne.s32.totalorder %s456, %s470
      %p472 = scmp.eq.s32.totalorder %s42, 0
      %p473 = por %p471, %p472
      %s474 = ssub.s32 %s36, %s43
      %p475 = scmp.eq.s32.totalorder %s474, 0
      %s477 = sadd.s32 %s476, 1
      %s478 = scalar_select %p475, %s476, %s477
      %p481 = pneg %p475
      %p482 = scmp.eq.s32.totalorder %s36, 1
      %p483 = por %p481, %p482
      %p484 = scmp.ne.s32.totalorder %s476, %s479
      %p485 = scmp.eq.s32.totalorder %s36, 0
      %p486 = por %p484, %p485
      %p487 = scmp.ne.s32.totalorder %s476, %s479
      %p488 = scmp.eq.s32.totalorder %s41, 1
      %p489 = por %p487, %p488
      %p490 = scmp.ne.s32.totalorder %s479, %s480
      %p491 = scmp.eq.s32.totalorder %s41, 0
      %p492 = por %p490, %p491
      %p493 = scmp.ne.s32.totalorder %s479, %s480
      %p494 = scmp.eq.s32.totalorder %s42, 1
      %p495 = por %p493, %p494
      %p497 = scmp.ne.s32.totalorder %s480, %s496
      %p498 = scmp.eq.s32.totalorder %s42, 0
      %p499 = por %p497, %p498
      %s500 = ssub.s32 %s36, %s43
      %p501 = scmp.eq.s32.totalorder %s500, 0
      %s503 = sadd.s32 %s502, 1
      %s504 = scalar_select %p501, %s502, %s503
      %p507 = pneg %p501
      %p508 = scmp.eq.s32.totalorder %s36, 1
      %p509 = por %p507, %p508
      %p510 = scmp.ne.s32.totalorder %s502, %s505
      %p511 = scmp.eq.s32.totalorder %s36, 0
      %p512 = por %p510, %p511
      %p513 = scmp.ne.s32.totalorder %s502, %s505
      %p514 = scmp.eq.s32.totalorder %s41, 1
      %p515 = por %p513, %p514
      %p516 = scmp.ne.s32.totalorder %s505, %s506
      %p517 = scmp.eq.s32.totalorder %s41, 0
      %p518 = por %p516, %p517
      %p519 = scmp.ne.s32.totalorder %s505, %s506
      %p520 = scmp.eq.s32.totalorder %s42, 1
      %p521 = por %p519, %p520
      %p523 = scmp.ne.s32.totalorder %s506, %s522
      %p524 = scmp.eq.s32.totalorder %s42, 0
      %p525 = por %p523, %p524
      %s526 = ssub.s32 %s36, %s43
      %p527 = scmp.eq.s32.totalorder %s526, 0
      %s529 = sadd.s32 %s528, 1
      %s530 = scalar_select %p527, %s528, %s529
      %p533 = pneg %p527
      %p534 = scmp.eq.s32.totalorder %s36, 1
      %p535 = por %p533, %p534
      %p536 = scmp.ne.s32.totalorder %s528, %s531
      %p537 = scmp.eq.s32.totalorder %s36, 0
      %p538 = por %p536, %p537
      %p539 = scmp.ne.s32.totalorder %s528, %s531
      %p540 = scmp.eq.s32.totalorder %s41, 1
      %p541 = por %p539, %p540
      %p542 = scmp.ne.s32.totalorder %s531, %s532
      %p543 = scmp.eq.s32.totalorder %s41, 0
      %p544 = por %p542, %p543
      %p545 = scmp.ne.s32.totalorder %s531, %s532
      %p546 = scmp.eq.s32.totalorder %s42, 1
      %p547 = por %p545, %p546
      %p549 = scmp.ne.s32.totalorder %s532, %s548
      %p550 = scmp.eq.s32.totalorder %s42, 0
      %p551 = por %p549, %p550
      %p552 = scmp.le.s32.totalorder 1, %s36
      %p553 = scmp.lt.s32.totalorder %s36, 3
      %p554 = pnand %p552, %p553
      %p555 = pneg %p554
      // Predicated region
      $region9: #{tpu_custom_call.1} parent=5 // pred_check
        _
      $region10: #{tpu_custom_call.1} parent=5 // pred_check_branch
        %557 = sbr.rel (%p554) target = $region12
      $region11: #{tpu_custom_call.1} parent=5 // pred_region
        %s558 = ssub.s32 %s36, 1
        // Predicated region
        $region13: #{tpu_custom_call.1} parent=11 // pred_check
          %p559 = pneg %p109
        $region14: #{tpu_custom_call.1} parent=11 // pred_check_branch
          %561 = sbr.rel (%p559) target = $region16
        $region15: #{tpu_custom_call.1} parent=11 // pred_region
          %s563 = ssub.s32 16384, 16384
          %564 = vsyncadd [#allocation6], %s563
          %s565 = sshll.u32 [#allocation5], 4
          %s566 = int_to_ptr.vmem [resolvable:$true] %s565
          %571 = dma.hbm_to_vmem [thread:$0]  %s2, 16384, %s566, [#allocation6], 256, 256, 16
        $region16: #{tpu_custom_call.1} parent=11 // pred_fallthru
          _
        // Predicated region
        $region17: #{tpu_custom_call.1} parent=11 // pred_check
          %p572 = pneg %p130
        $region18: #{tpu_custom_call.1} parent=11 // pred_check_branch
          %574 = sbr.rel (%p572) target = $region20
        $region19: #{tpu_custom_call.1} parent=11 // pred_region
          _
        $region20: #{tpu_custom_call.1} parent=11 // pred_fallthru
          _
        // Predicated region
        $region21: #{tpu_custom_call.1} parent=11 // pred_check
          %p575 = pneg %p151
        $region22: #{tpu_custom_call.1} parent=11 // pred_check_branch
          %577 = sbr.rel (%p575) target = $region24
        $region23: #{tpu_custom_call.1} parent=11 // pred_region
          _
        $region24: #{tpu_custom_call.1} parent=11 // pred_fallthru
          _
        // Predicated region
        $region25: #{tpu_custom_call.1} parent=11 // pred_check
          %p578 = pneg %p172
        $region26: #{tpu_custom_call.1} parent=11 // pred_check_branch
          %580 = sbr.rel (%p578) target = $region28
        $region27: #{tpu_custom_call.1} parent=11 // pred_region
          _
        $region28: #{tpu_custom_call.1} parent=11 // pred_fallthru
          _
        // Predicated region
        $region29: #{tpu_custom_call.1} parent=11 // pred_check
          %p581 = pneg %p193
        $region30: #{tpu_custom_call.1} parent=11 // pred_check_branch
          %583 = sbr.rel (%p581) target = $region32
        $region31: #{tpu_custom_call.1} parent=11 // pred_region
          _
        $region32: #{tpu_custom_call.1} parent=11 // pred_fallthru
          _
        // Predicated region
        $region33: #{tpu_custom_call.1} parent=11 // pred_check
          %p584 = pneg %p214
        $region34: #{tpu_custom_call.1} parent=11 // pred_check_branch
          %586 = sbr.rel (%p584) target = $region36
        $region35: #{tpu_custom_call.1} parent=11 // pred_region
          _
        $region36: #{tpu_custom_call.1} parent=11 // pred_fallthru
          _
        // Predicated region
        $region37: #{tpu_custom_call.1} parent=11 // pred_check
          %p587 = pneg %p235
        $region38: #{tpu_custom_call.1} parent=11 // pred_check_branch
          %589 = sbr.rel (%p587) target = $region40
        $region39: #{tpu_custom_call.1} parent=11 // pred_region
          _
        $region40: #{tpu_custom_call.1} parent=11 // pred_fallthru
          _
        // Predicated region
        $region41: #{tpu_custom_call.1} parent=11 // pred_check
          %p590 = pneg %p256
        $region42: #{tpu_custom_call.1} parent=11 // pred_check_branch
          %592 = sbr.rel (%p590) target = $region44
        $region43: #{tpu_custom_call.1} parent=11 // pred_region
          _
        $region44: #{tpu_custom_call.1} parent=11 // pred_fallthru
          _
        // Predicated region
        $region45: #{tpu_custom_call.1} parent=11 // pred_check
          %p593 = pneg %p277
        $region46: #{tpu_custom_call.1} parent=11 // pred_check_branch
          %595 = sbr.rel (%p593) target = $region48
        $region47: #{tpu_custom_call.1} parent=11 // pred_region
          _
        $region48: #{tpu_custom_call.1} parent=11 // pred_fallthru
          _
        // Predicated region
        $region49: #{tpu_custom_call.1} parent=11 // pred_check
          %p596 = pneg %p298
        $region50: #{tpu_custom_call.1} parent=11 // pred_check_branch
          %598 = sbr.rel (%p596) target = $region52
        $region51: #{tpu_custom_call.1} parent=11 // pred_region
          _
        $region52: #{tpu_custom_call.1} parent=11 // pred_fallthru
          _
        // Predicated region
        $region53: #{tpu_custom_call.1} parent=11 // pred_check
          %p599 = pneg %p319
        $region54: #{tpu_custom_call.1} parent=11 // pred_check_branch
          %601 = sbr.rel (%p599) target = $region56
        $region55: #{tpu_custom_call.1} parent=11 // pred_region
          _
        $region56: #{tpu_custom_call.1} parent=11 // pred_fallthru
          _
        // Predicated region
        $region57: #{tpu_custom_call.1} parent=11 // pred_check
          %p602 = pneg %p340
        $region58: #{tpu_custom_call.1} parent=11 // pred_check_branch
          %604 = sbr.rel (%p602) target = $region60
        $region59: #{tpu_custom_call.1} parent=11 // pred_region
          _
        $region60: #{tpu_custom_call.1} parent=11 // pred_fallthru
          _
        // Predicated region
        $region61: #{tpu_custom_call.1} parent=11 // pred_check
          %p605 = pneg %p361
        $region62: #{tpu_custom_call.1} parent=11 // pred_check_branch
          %607 = sbr.rel (%p605) target = $region64
        $region63: #{tpu_custom_call.1} parent=11 // pred_region
          _
        $region64: #{tpu_custom_call.1} parent=11 // pred_fallthru
          _
        // Predicated region
        $region65: #{tpu_custom_call.1} parent=11 // pred_check
          %p608 = pneg %p382
        $region66: #{tpu_custom_call.1} parent=11 // pred_check_branch
          %610 = sbr.rel (%p608) target = $region68
        $region67: #{tpu_custom_call.1} parent=11 // pred_region
          _
        $region68: #{tpu_custom_call.1} parent=11 // pred_fallthru
          _
        // Predicated region
        $region69: #{tpu_custom_call.1} parent=11 // pred_check
          %p611 = pneg %p403
        $region70: #{tpu_custom_call.1} parent=11 // pred_check_branch
          %613 = sbr.rel (%p611) target = $region72
        $region71: #{tpu_custom_call.1} parent=11 // pred_region
          _
        $region72: #{tpu_custom_call.1} parent=11 // pred_fallthru
          _
        // Predicated region
        $region73: #{tpu_custom_call.1} parent=11 // pred_check
          %p614 = pneg %p424
        $region74: #{tpu_custom_call.1} parent=11 // pred_check_branch
          %616 = sbr.rel (%p614) target = $region76
        $region75: #{tpu_custom_call.1} parent=11 // pred_region
          _
        $region76: #{tpu_custom_call.1} parent=11 // pred_fallthru
          _
        // Predicated region
        $region77: #{tpu_custom_call.1} parent=11 // pred_check
          %p617 = pneg %p445
        $region78: #{tpu_custom_call.1} parent=11 // pred_check_branch
          %619 = sbr.rel (%p617) target = $region80
        $region79: #{tpu_custom_call.1} parent=11 // pred_region
          %s621 = ssub.s32 16384, 16384
          %622 = vsyncadd [#allocation6], %s621
          %s623 = sshll.u32 [#allocation7], 4
          %s624 = int_to_ptr.vmem [resolvable:$true] %s623
          %629 = dma.hbm_to_vmem [thread:$0]  %s18, 16384, %s624, [#allocation6], 512, 512, 32
        $region80: #{tpu_custom_call.1} parent=11 // pred_fallthru
          _
        // Predicated region
        $region81: #{tpu_custom_call.1} parent=11 // pred_check
          %p630 = pneg %p466
        $region82: #{tpu_custom_call.1} parent=11 // pred_check_branch
          %632 = sbr.rel (%p630) target = $region84
        $region83: #{tpu_custom_call.1} parent=11 // pred_region
          _
        $region84: #{tpu_custom_call.1} parent=11 // pred_fallthru
          _
      $region12: #{tpu_custom_call.1} parent=5 // pred_fallthru
        _
      %p633 = scmp.lt.s32.totalorder %s36, 2
      // Predicated region
      $region85: #{tpu_custom_call.1} parent=5 // pred_check
        %p634 = pneg %p633
      $region86: #{tpu_custom_call.1} parent=5 // pred_check_branch
        %636 = sbr.rel (%p634) target = $region88
      $region87: #{tpu_custom_call.1} parent=5 // pred_region
        // Predicated region
        $region89: #{tpu_custom_call.1} parent=87 // pred_check
          %p637 = pneg %p56
        $region90: #{tpu_custom_call.1} parent=87 // pred_check_branch
          %639 = sbr.rel (%p637) target = $region92
        $region91: #{tpu_custom_call.1} parent=87 // pred_region
          %s640 = sand.u32 %s46, 1
          %s641 = scalar_lea.sflag [#allocation3], %s640
          %s642 = sand.u32 %s46, 1
          %s643 = smul.addr %s642, 512
          %s644 = scalar_lea.vmem [#allocation2], %s643
          %s645 = smul.u32 16, %s36
          %s647 = ssub.s32 8192, 8192
          %648 = vsyncadd %s641, %s647
          %s649 = smul.addr %s645, 4
          %s650 = smul.addr %s649, 128
          %s651 = scalar_lea.hbm %s0, %s650
          %s652 = sshll.u32 %s644, 4
          %s653 = int_to_ptr.vmem [resolvable:$true] %s652
          %658 = dma.hbm_to_vmem [thread:$0]  %s651, 8192, %s653, %s641, 512, 512, 32
        $region92: #{tpu_custom_call.1} parent=87 // pred_fallthru
          _
        // Predicated region
        $region93: #{tpu_custom_call.1} parent=87 // pred_check
          %p659 = pneg %p82
        $region94: #{tpu_custom_call.1} parent=87 // pred_check_branch
          %661 = sbr.rel (%p659) target = $region96
        $region95: #{tpu_custom_call.1} parent=87 // pred_region
          %s662 = smul.u32 16, %s36
          %p663 = scmp.lt.s32.totalorder %s662, 31
          %s664 = scalar_select %p663, %s662, 31
          %s665 = smul.addr %s664, 8
          %s666 = scalar_lea.vmem %s1, %s665
          %s667 = smul.u32 16, %s36
        $region96: #{tpu_custom_call.1} parent=87 // pred_fallthru
          _
      $region88: #{tpu_custom_call.1} parent=5 // pred_fallthru
        _
      %p668 = scmp.le.s32.totalorder 1, %s36
      %p669 = scmp.lt.s32.totalorder %s36, 3
      %p670 = pnand %p668, %p669
      %p671 = pneg %p670
      // Predicated region
      $region97: #{tpu_custom_call.1} parent=5 // pred_check
        _
      $region98: #{tpu_custom_call.1} parent=5 // pred_check_branch
        %673 = sbr.rel (%p670) target = $region100
      $region99: #{tpu_custom_call.1} parent=5 // pred_region
        %s674 = ssub.s32 %s36, 1
        %s675 = sand.u32 %s49, 1
        %s676 = scalar_lea.sflag [#allocation3], %s675
        %s677 = sand.u32 %s49, 1
        %s678 = smul.addr %s677, 512
        %s679 = scalar_lea.vmem [#allocation2], %s678
        // Predicated region
        $region101: #{tpu_custom_call.1} parent=99 // pred_check
          %p680 = pneg %p62
        $region102: #{tpu_custom_call.1} parent=99 // pred_check_branch
          %682 = sbr.rel (%p680) target = $region104
        $region103: #{tpu_custom_call.1} parent=99 // pred_region
          %683 = dma.done %s676, 8192
        $region104: #{tpu_custom_call.1} parent=99 // pred_fallthru
          _
        // Predicated region
        $region105: #{tpu_custom_call.1} parent=99 // pred_check
          %p684 = pneg %p109
        $region106: #{tpu_custom_call.1} parent=99 // pred_check_branch
          %686 = sbr.rel (%p684) target = $region108
        $region107: #{tpu_custom_call.1} parent=99 // pred_region
          %687 = dma.done [#allocation6], 16384
        $region108: #{tpu_custom_call.1} parent=99 // pred_fallthru
          _
        // Predicated region
        $region109: #{tpu_custom_call.1} parent=99 // pred_check
          %p688 = pneg %p445
        $region110: #{tpu_custom_call.1} parent=99 // pred_check_branch
          %690 = sbr.rel (%p688) target = $region112
        $region111: #{tpu_custom_call.1} parent=99 // pred_region
          %691 = dma.done [#allocation6], 16384
        $region112: #{tpu_custom_call.1} parent=99 // pred_fallthru
          _
        %s692 = sand.u32 %s49, 1
        %s693 = scalar_lea.sflag [#allocation3], %s692
        %s694 = sand.u32 %s49, 1
        %s695 = smul.addr %s694, 512
        %s696 = scalar_lea.vmem [#allocation2], %s695
        %p697 = pneg %p62
        %p698 = pneg %p59
        %s699 = smul.u32 16, %s41
        %p700 = scmp.lt.s32.totalorder %s699, 31
        %s701 = scalar_select %p700, %s699, 31
        %s702 = smul.addr %s701, 8
        %s703 = scalar_lea.vmem %s1, %s702
        %p704 = pneg %p88
        %p705 = pneg %p85
        %p706 = pneg %p109
        %p707 = pneg %p106
        %p708 = pneg %p130
        %p709 = pneg %p127
        %p710 = pneg %p151
        %p711 = pneg %p148
        %p712 = pneg %p172
        %p713 = pneg %p169
        %p714 = pneg %p193
        %p715 = pneg %p190
        %p716 = pneg %p214
        %p717 = pneg %p211
        %p718 = pneg %p235
        %p719 = pneg %p232
        %p720 = pneg %p256
        %p721 = pneg %p253
        %p722 = pneg %p277
        %p723 = pneg %p274
        %p724 = pneg %p298
        %p725 = pneg %p295
        %p726 = pneg %p319
        %p727 = pneg %p316
        %p728 = pneg %p340
        %p729 = pneg %p337
        %p730 = pneg %p361
        %p731 = pneg %p358
        %p732 = pneg %p382
        %p733 = pneg %p379
        %p734 = pneg %p403
        %p735 = pneg %p400
        %p736 = pneg %p424
        %p737 = pneg %p421
        %p738 = pneg %p445
        %p739 = pneg %p442
        %p740 = pneg %p466
        %p741 = pneg %p463
        %p742 = pneg %p492
        %p743 = pneg %p489
        %s744 = sand.u32 %s479, 1
        %s745 = scalar_lea.sflag [#allocation4], %s744
        %s746 = sand.u32 %s479, 1
        %s747 = smul.addr %s746, 512
        %s748 = scalar_lea.vmem [#allocation8], %s747
        %p749 = pneg %p518
        %p750 = pneg %p515
        %s751 = smul.u32 16, %s41
        %p752 = scmp.lt.s32.totalorder %s751, 31
        %s753 = scalar_select %p752, %s751, 31
        %s754 = smul.addr %s753, 8
        %s755 = scalar_lea.vmem %s21, %s754
        %p756 = pneg %p544
        %p757 = pneg %p541
        %s758 = smul.u32 16, %s41
        %p759 = scmp.lt.s32.totalorder %s758, 31
        %s760 = scalar_select %p759, %s758, 31
        %s761 = smul.addr %s760, 8
        %s762 = scalar_lea.vmem %s22, %s761
        %s763 = smul.u32 16, %s41
        %s764 = smul.u32 16, %s41
        %p765 = scmp.lt.s32.totalorder %s764, 31
        %s766 = scalar_select %p765, %s764, 31
        %s767 = smul.addr %s766, 8
        %s768 = scalar_lea.vmem %s1, %s767
        %s769 = smul.u32 16, %s41
        %s770 = smul.u32 16, %s41
        %s771 = smul.u32 16, %s41
        %p772 = scmp.lt.s32.totalorder %s771, 31
        %s773 = scalar_select %p772, %s771, 31
        %s774 = smul.addr %s773, 8
        %s775 = scalar_lea.vmem %s21, %s774
        %s776 = smul.u32 16, %s41
        %s777 = smul.u32 16, %s41
        %p778 = scmp.lt.s32.totalorder %s777, 31
        %s779 = scalar_select %p778, %s777, 31
        %s780 = smul.addr %s779, 8
        %s781 = scalar_lea.vmem %s22, %s780
        %s782 = smul.u32 16, %s41
        %v783 = vld [vmem:[%s679] sm:$0xff]
        %v784 = vld [vmem:[%s679 + $0x8] sm:$0xff]
        %v785 = vld [vmem:[%s679 + $0x10] sm:$0xff]
        %v786 = vld [vmem:[%s679 + $0x18] sm:$0xff]
        %v787 = vld [vmem:[%s679 + $0x20] sm:$0xff]
        %v788 = vld [vmem:[%s679 + $0x28] sm:$0xff]
        %v789 = vld [vmem:[%s679 + $0x30] sm:$0xff]
        %v790 = vld [vmem:[%s679 + $0x38] sm:$0xff]
        %v791 = vld [vmem:[%s679 + $0x40] sm:$0xff]
        %v792 = vld [vmem:[%s679 + $0x48] sm:$0xff]
        %v793 = vld [vmem:[%s679 + $0x50] sm:$0xff]
        %v794 = vld [vmem:[%s679 + $0x58] sm:$0xff]
        %v795 = vld [vmem:[%s679 + $0x60] sm:$0xff]
        %v796 = vld [vmem:[%s679 + $0x68] sm:$0xff]
        %v797 = vld [vmem:[%s679 + $0x70] sm:$0xff]
        %v798 = vld [vmem:[%s679 + $0x78] sm:$0xff]
        %v799 = vld [vmem:[%s679 + $0x80] sm:$0xff]
        %v800 = vld [vmem:[%s679 + $0x88] sm:$0xff]
        %v801 = vld [vmem:[%s679 + $0x90] sm:$0xff]
        %v802 = vld [vmem:[%s679 + $0x98] sm:$0xff]
        %v803 = vld [vmem:[%s679 + $0xa0] sm:$0xff]
        %v804 = vld [vmem:[%s679 + $0xa8] sm:$0xff]
        %v805 = vld [vmem:[%s679 + $0xb0] sm:$0xff]
        %v806 = vld [vmem:[%s679 + $0xb8] sm:$0xff]
        %v807 = vld [vmem:[%s679 + $0xc0] sm:$0xff]
        %v808 = vld [vmem:[%s679 + $0xc8] sm:$0xff]
        %v809 = vld [vmem:[%s679 + $0xd0] sm:$0xff]
        %v810 = vld [vmem:[%s679 + $0xd8] sm:$0xff]
        %v811 = vld [vmem:[%s679 + $0xe0] sm:$0xff]
        %v812 = vld [vmem:[%s679 + $0xe8] sm:$0xff]
        %v813 = vld [vmem:[%s679 + $0xf0] sm:$0xff]
        %v814 = vld [vmem:[%s679 + $0xf8] sm:$0xff]
        %v815 = vld [vmem:[%s679 + $0x100] sm:$0xff]
        %v816 = vld [vmem:[%s679 + $0x108] sm:$0xff]
        %v817 = vld [vmem:[%s679 + $0x110] sm:$0xff]
        %v818 = vld [vmem:[%s679 + $0x118] sm:$0xff]
        %v819 = vld [vmem:[%s679 + $0x120] sm:$0xff]
        %v820 = vld [vmem:[%s679 + $0x128] sm:$0xff]
        %v821 = vld [vmem:[%s679 + $0x130] sm:$0xff]
        %v822 = vld [vmem:[%s679 + $0x138] sm:$0xff]
        %v823 = vld [vmem:[%s679 + $0x140] sm:$0xff]
        %v824 = vld [vmem:[%s679 + $0x148] sm:$0xff]
        %v825 = vld [vmem:[%s679 + $0x150] sm:$0xff]
        %v826 = vld [vmem:[%s679 + $0x158] sm:$0xff]
        %v827 = vld [vmem:[%s679 + $0x160] sm:$0xff]
        %v828 = vld [vmem:[%s679 + $0x168] sm:$0xff]
        %v829 = vld [vmem:[%s679 + $0x170] sm:$0xff]
        %v830 = vld [vmem:[%s679 + $0x178] sm:$0xff]
        %v831 = vld [vmem:[%s679 + $0x180] sm:$0xff]
        %v832 = vld [vmem:[%s679 + $0x188] sm:$0xff]
        %v833 = vld [vmem:[%s679 + $0x190] sm:$0xff]
        %v834 = vld [vmem:[%s679 + $0x198] sm:$0xff]
        %v835 = vld [vmem:[%s679 + $0x1a0] sm:$0xff]
        %v836 = vld [vmem:[%s679 + $0x1a8] sm:$0xff]
        %v837 = vld [vmem:[%s679 + $0x1b0] sm:$0xff]
        %v838 = vld [vmem:[%s679 + $0x1b8] sm:$0xff]
        %v839 = vld [vmem:[%s679 + $0x1c0] sm:$0xff]
        %v840 = vld [vmem:[%s679 + $0x1c8] sm:$0xff]
        %v841 = vld [vmem:[%s679 + $0x1d0] sm:$0xff]
        %v842 = vld [vmem:[%s679 + $0x1d8] sm:$0xff]
        %v843 = vld [vmem:[%s679 + $0x1e0] sm:$0xff]
        %v844 = vld [vmem:[%s679 + $0x1e8] sm:$0xff]
        %v845 = vld [vmem:[%s679 + $0x1f0] sm:$0xff]
        %v846 = vld [vmem:[%s679 + $0x1f8] sm:$0xff]
        %v847 = vld [vmem:[#allocation5] sm:$0xff]
        %v848 = vld [vmem:[#allocation5 + $0x8] sm:$0xff]
        %v849 = vld [vmem:[#allocation5 + $0x10] sm:$0xff]
        %v850 = vld [vmem:[#allocation5 + $0x18] sm:$0xff]
        %v851 = vld [vmem:[#allocation5 + $0x20] sm:$0xff]
        %v852 = vld [vmem:[#allocation5 + $0x28] sm:$0xff]
        %v853 = vld [vmem:[#allocation5 + $0x30] sm:$0xff]
        %v854 = vld [vmem:[#allocation5 + $0x38] sm:$0xff]
        %v855 = vld [vmem:[#allocation5 + $0x40] sm:$0xff]
        %v856 = vld [vmem:[#allocation5 + $0x48] sm:$0xff]
        %v857 = vld [vmem:[#allocation5 + $0x50] sm:$0xff]
        %v858 = vld [vmem:[#allocation5 + $0x58] sm:$0xff]
        %v859 = vld [vmem:[#allocation5 + $0x60] sm:$0xff]
        %v860 = vld [vmem:[#allocation5 + $0x68] sm:$0xff]
        %v861 = vld [vmem:[#allocation5 + $0x70] sm:$0xff]
        %v862 = vld [vmem:[#allocation5 + $0x78] sm:$0xff]
        %v863 = vld [vmem:[#allocation5 + $0x80] sm:$0xff]
        %v864 = vld [vmem:[#allocation5 + $0x88] sm:$0xff]
        %v865 = vld [vmem:[#allocation5 + $0x90] sm:$0xff]
        %v866 = vld [vmem:[#allocation5 + $0x98] sm:$0xff]
        %v867 = vld [vmem:[#allocation5 + $0xa0] sm:$0xff]
        %v868 = vld [vmem:[#allocation5 + $0xa8] sm:$0xff]
        %v869 = vld [vmem:[#allocation5 + $0xb0] sm:$0xff]
        %v870 = vld [vmem:[#allocation5 + $0xb8] sm:$0xff]
        %v871 = vld [vmem:[#allocation5 + $0xc0] sm:$0xff]
        %v872 = vld [vmem:[#allocation5 + $0xc8] sm:$0xff]
        %v873 = vld [vmem:[#allocation5 + $0xd0] sm:$0xff]
        %v874 = vld [vmem:[#allocation5 + $0xd8] sm:$0xff]
        %v875 = vld [vmem:[#allocation5 + $0xe0] sm:$0xff]
        %v876 = vld [vmem:[#allocation5 + $0xe8] sm:$0xff]
        %v877 = vld [vmem:[#allocation5 + $0xf0] sm:$0xff]
        %v878 = vld [vmem:[#allocation5 + $0xf8] sm:$0xff]
        %v879 = vld [vmem:[#allocation5 + $0x100] sm:$0xff]
        %v880 = vld [vmem:[#allocation5 + $0x108] sm:$0xff]
        %v881 = vld [vmem:[#allocation5 + $0x110] sm:$0xff]
        %v882 = vld [vmem:[#allocation5 + $0x118] sm:$0xff]
        %v883 = vld [vmem:[#allocation5 + $0x120] sm:$0xff]
        %v884 = vld [vmem:[#allocation5 + $0x128] sm:$0xff]
        %v885 = vld [vmem:[#allocation5 + $0x130] sm:$0xff]
        %v886 = vld [vmem:[#allocation5 + $0x138] sm:$0xff]
        %v887 = vld [vmem:[#allocation5 + $0x140] sm:$0xff]
        %v888 = vld [vmem:[#allocation5 + $0x148] sm:$0xff]
        %v889 = vld [vmem:[#allocation5 + $0x150] sm:$0xff]
        %v890 = vld [vmem:[#allocation5 + $0x158] sm:$0xff]
        %v891 = vld [vmem:[#allocation5 + $0x160] sm:$0xff]
        %v892 = vld [vmem:[#allocation5 + $0x168] sm:$0xff]
        %v893 = vld [vmem:[#allocation5 + $0x170] sm:$0xff]
        %v894 = vld [vmem:[#allocation5 + $0x178] sm:$0xff]
        %v895 = vld [vmem:[#allocation5 + $0x180] sm:$0xff]
        %v896 = vld [vmem:[#allocation5 + $0x188] sm:$0xff]
        %v897 = vld [vmem:[#allocation5 + $0x190] sm:$0xff]
        %v898 = vld [vmem:[#allocation5 + $0x198] sm:$0xff]
        %v899 = vld [vmem:[#allocation5 + $0x1a0] sm:$0xff]
        %v900 = vld [vmem:[#allocation5 + $0x1a8] sm:$0xff]
        %v901 = vld [vmem:[#allocation5 + $0x1b0] sm:$0xff]
        %v902 = vld [vmem:[#allocation5 + $0x1b8] sm:$0xff]
        %v903 = vld [vmem:[#allocation5 + $0x1c0] sm:$0xff]
        %v904 = vld [vmem:[#allocation5 + $0x1c8] sm:$0xff]
        %v905 = vld [vmem:[#allocation5 + $0x1d0] sm:$0xff]
        %v906 = vld [vmem:[#allocation5 + $0x1d8] sm:$0xff]
        %v907 = vld [vmem:[#allocation5 + $0x1e0] sm:$0xff]
        %v908 = vld [vmem:[#allocation5 + $0x1e8] sm:$0xff]
        %v909 = vld [vmem:[#allocation5 + $0x1f0] sm:$0xff]
        %v910 = vld [vmem:[#allocation5 + $0x1f8] sm:$0xff]
        %v911 = vld [vmem:[#allocation5 + $0x200] sm:$0xff]
        %v912 = vld [vmem:[#allocation5 + $0x208] sm:$0xff]
        %v913 = vld [vmem:[#allocation5 + $0x210] sm:$0xff]
        %v914 = vld [vmem:[#allocation5 + $0x218] sm:$0xff]
        %v915 = vld [vmem:[#allocation5 + $0x220] sm:$0xff]
        %v916 = vld [vmem:[#allocation5 + $0x228] sm:$0xff]
        %v917 = vld [vmem:[#allocation5 + $0x230] sm:$0xff]
        %v918 = vld [vmem:[#allocation5 + $0x238] sm:$0xff]
        %v919 = vld [vmem:[#allocation5 + $0x240] sm:$0xff]
        %v920 = vld [vmem:[#allocation5 + $0x248] sm:$0xff]
        %v921 = vld [vmem:[#allocation5 + $0x250] sm:$0xff]
        %v922 = vld [vmem:[#allocation5 + $0x258] sm:$0xff]
        %v923 = vld [vmem:[#allocation5 + $0x260] sm:$0xff]
        %v924 = vld [vmem:[#allocation5 + $0x268] sm:$0xff]
        %v925 = vld [vmem:[#allocation5 + $0x270] sm:$0xff]
        %v926 = vld [vmem:[#allocation5 + $0x278] sm:$0xff]
        %v927 = vld [vmem:[#allocation5 + $0x280] sm:$0xff]
        %v928 = vld [vmem:[#allocation5 + $0x288] sm:$0xff]
        %v929 = vld [vmem:[#allocation5 + $0x290] sm:$0xff]
        %v930 = vld [vmem:[#allocation5 + $0x298] sm:$0xff]
        %v931 = vld [vmem:[#allocation5 + $0x2a0] sm:$0xff]
        %v932 = vld [vmem:[#allocation5 + $0x2a8] sm:$0xff]
        %v933 = vld [vmem:[#allocation5 + $0x2b0] sm:$0xff]
        %v934 = vld [vmem:[#allocation5 + $0x2b8] sm:$0xff]
        %v935 = vld [vmem:[#allocation5 + $0x2c0] sm:$0xff]
        %v936 = vld [vmem:[#allocation5 + $0x2c8] sm:$0xff]
        %v937 = vld [vmem:[#allocation5 + $0x2d0] sm:$0xff]
        %v938 = vld [vmem:[#allocation5 + $0x2d8] sm:$0xff]
        %v939 = vld [vmem:[#allocation5 + $0x2e0] sm:$0xff]
        %v940 = vld [vmem:[#allocation5 + $0x2e8] sm:$0xff]
        %v941 = vld [vmem:[#allocation5 + $0x2f0] sm:$0xff]
        %v942 = vld [vmem:[#allocation5 + $0x2f8] sm:$0xff]
        %v943 = vld [vmem:[#allocation5 + $0x300] sm:$0xff]
        %v944 = vld [vmem:[#allocation5 + $0x308] sm:$0xff]
        %v945 = vld [vmem:[#allocation5 + $0x310] sm:$0xff]
        %v946 = vld [vmem:[#allocation5 + $0x318] sm:$0xff]
        %v947 = vld [vmem:[#allocation5 + $0x320] sm:$0xff]
        %v948 = vld [vmem:[#allocation5 + $0x328] sm:$0xff]
        %v949 = vld [vmem:[#allocation5 + $0x330] sm:$0xff]
        %v950 = vld [vmem:[#allocation5 + $0x338] sm:$0xff]
        %v951 = vld [vmem:[#allocation5 + $0x340] sm:$0xff]
        %v952 = vld [vmem:[#allocation5 + $0x348] sm:$0xff]
        %v953 = vld [vmem:[#allocation5 + $0x350] sm:$0xff]
        %v954 = vld [vmem:[#allocation5 + $0x358] sm:$0xff]
        %v955 = vld [vmem:[#allocation5 + $0x360] sm:$0xff]
        %v956 = vld [vmem:[#allocation5 + $0x368] sm:$0xff]
        %v957 = vld [vmem:[#allocation5 + $0x370] sm:$0xff]
        %v958 = vld [vmem:[#allocation5 + $0x378] sm:$0xff]
        %v959 = vld [vmem:[#allocation5 + $0x380] sm:$0xff]
        %v960 = vld [vmem:[#allocation5 + $0x388] sm:$0xff]
        %v961 = vld [vmem:[#allocation5 + $0x390] sm:$0xff]
        %v962 = vld [vmem:[#allocation5 + $0x398] sm:$0xff]
        %v963 = vld [vmem:[#allocation5 + $0x3a0] sm:$0xff]
        %v964 = vld [vmem:[#allocation5 + $0x3a8] sm:$0xff]
        %v965 = vld [vmem:[#allocation5 + $0x3b0] sm:$0xff]
        %v966 = vld [vmem:[#allocation5 + $0x3b8] sm:$0xff]
        %v967 = vld [vmem:[#allocation5 + $0x3c0] sm:$0xff]
        %v968 = vld [vmem:[#allocation5 + $0x3c8] sm:$0xff]
        %v969 = vld [vmem:[#allocation5 + $0x3d0] sm:$0xff]
        %v970 = vld [vmem:[#allocation5 + $0x3d8] sm:$0xff]
        %v971 = vld [vmem:[#allocation5 + $0x3e0] sm:$0xff]
        %v972 = vld [vmem:[#allocation5 + $0x3e8] sm:$0xff]
        %v973 = vld [vmem:[#allocation5 + $0x3f0] sm:$0xff]
        %v974 = vld [vmem:[#allocation5 + $0x3f8] sm:$0xff]
        %v975 = vld [vmem:[%s3] sm:$0x3]
        %v977 = vlaneseq
        %v978 = vshrl.u32 %v977, 7
        %v979 = vsub.s32 0, %v978
        %v980 = vrot.slane %v975, %v979
        %v981 = vlaneseq
        %v982 = vshrl.u32 %v981, 7
        %v983 = vsub.s32 1, %v982
        %v984 = vrot.slane %v975, %v983
        %987 = vmatprep.subr.mxu0 %v848
        %988 = vmatpush1.msra.mxu0 %v847
        %989 = vmatprep.subr.mxu0 %v850
        %990 = vmatpush1.msra.mxu0 %v849
        %991 = vmatprep.subr.mxu0 %v852
        %992 = vmatpush1.msra.mxu0 %v851
        %993 = vmatprep.subr.mxu0 %v854
        %994 = vmatpush1.msra.mxu0 %v853
        %995 = vmatprep.subr.mxu0 %v856
        %996 = vmatpush1.msra.mxu0 %v855
        %997 = vmatprep.subr.mxu0 %v858
        %998 = vmatpush1.msra.mxu0 %v857
        %999 = vmatprep.subr.mxu0 %v860
        %1000 = vmatpush1.msra.mxu0 %v859
        %1001 = vmatprep.subr.mxu0 %v862
        %1002 = vmatpush1.msra.mxu0 %v861
        %1003 = vmatprep.subr.mxu0 %v864
        %1004 = vmatpush1.msra.mxu0 %v863
        %1005 = vmatprep.subr.mxu0 %v866
        %1006 = vmatpush1.msra.mxu0 %v865
        %1007 = vmatprep.subr.mxu0 %v868
        %1008 = vmatpush1.msra.mxu0 %v867
        %1009 = vmatprep.subr.mxu0 %v870
        %1010 = vmatpush1.msra.mxu0 %v869
        %1011 = vmatprep.subr.mxu0 %v872
        %1012 = vmatpush1.msra.mxu0 %v871
        %1013 = vmatprep.subr.mxu0 %v874
        %1014 = vmatpush1.msra.mxu0 %v873
        %1015 = vmatprep.subr.mxu0 %v876
        %1016 = vmatpush1.msra.mxu0 %v875
        %1017 = vmatprep.subr.mxu0 %v878
        %1018 = vmatpush1.msra.mxu0 %v877
        %1019 = vmatprep.subr.mxu0 %v880
        %1020 = vmatpush1.msra.mxu0 %v879
        %1021 = vmatprep.subr.mxu0 %v882
        %1022 = vmatpush1.msra.mxu0 %v881
        %1023 = vmatprep.subr.mxu0 %v884
        %1024 = vmatpush1.msra.mxu0 %v883
        %1025 = vmatprep.subr.mxu0 %v886
        %1026 = vmatpush1.msra.mxu0 %v885
        %1027 = vmatprep.subr.mxu0 %v888
        %1028 = vmatpush1.msra.mxu0 %v887
        %1029 = vmatprep.subr.mxu0 %v890
        %1030 = vmatpush1.msra.mxu0 %v889
        %1031 = vmatprep.subr.mxu0 %v892
        %1032 = vmatpush1.msra.mxu0 %v891
        %1033 = vmatprep.subr.mxu0 %v894
        %1034 = vmatpush1.msra.mxu0 %v893
        %1035 = vmatprep.subr.mxu0 %v896
        %1036 = vmatpush1.msra.mxu0 %v895
        %1037 = vmatprep.subr.mxu0 %v898
        %1038 = vmatpush1.msra.mxu0 %v897
        %1039 = vmatprep.subr.mxu0 %v900
        %1040 = vmatpush1.msra.mxu0 %v899
        %1041 = vmatprep.subr.mxu0 %v902
        %1042 = vmatpush1.msra.mxu0 %v901
        %1043 = vmatprep.subr.mxu0 %v904
        %1044 = vmatpush1.msra.mxu0 %v903
        %1045 = vmatprep.subr.mxu0 %v906
        %1046 = vmatpush1.msra.mxu0 %v905
        %1047 = vmatprep.subr.mxu0 %v908
        %1048 = vmatpush1.msra.mxu0 %v907
        %1049 = vmatprep.subr.mxu0 %v910
        %1050 = vmatpush1.msra.mxu0 %v909
        %1051 = vmatprep.mubr.f32.mxu0 %v784
        %1052 = vmatmul.mubr.f32.gmra.mrb[0].mxu0 %v783
        %v1053 = vpop.f32.mrb[0].mxu0
        %v1054 = vadd.f32 %v980, %v1053
        %v1055 = vpop.f32.mrb[0].mxu0
        %v1056 = vadd.f32 %v984, %v1055
        %1057 = vmatprep.mubr.f32.mxu0 %v788
        %1058 = vmatmul.mubr.f32.gmra.mrb[0].mxu0 %v787
        %v1059 = vpop.f32.mrb[0].mxu0
        %v1060 = vadd.f32 %v980, %v1059
        %v1061 = vpop.f32.mrb[0].mxu0
        %v1062 = vadd.f32 %v984, %v1061
        %1063 = vmatprep.mubr.f32.mxu0 %v792
        %1064 = vmatmul.mubr.f32.gmra.mrb[0].mxu0 %v791
        %v1065 = vpop.f32.mrb[0].mxu0
        %v1066 = vadd.f32 %v980, %v1065
        %v1067 = vpop.f32.mrb[0].mxu0
        %v1068 = vadd.f32 %v984, %v1067
        %1069 = vmatprep.mubr.f32.mxu0 %v796
        %1070 = vmatmul.mubr.f32.gmra.mrb[0].mxu0 %v795
        %v1071 = vpop.f32.mrb[0].mxu0
        %v1072 = vadd.f32 %v980, %v1071
        %v1073 = vpop.f32.mrb[0].mxu0
        %v1074 = vadd.f32 %v984, %v1073
        %1075 = vmatprep.mubr.f32.mxu0 %v800
        %1076 = vmatmul.mubr.f32.gmra.mrb[0].mxu0 %v799
        %v1077 = vpop.f32.mrb[0].mxu0
        %v1078 = vadd.f32 %v980, %v1077
        %v1079 = vpop.f32.mrb[0].mxu0
        %v1080 = vadd.f32 %v984, %v1079
        %1081 = vmatprep.mubr.f32.mxu0 %v804
        %1082 = vmatmul.mubr.f32.gmra.mrb[0].mxu0 %v803
        %v1083 = vpop.f32.mrb[0].mxu0
        %v1084 = vadd.f32 %v980, %v1083
        %v1085 = vpop.f32.mrb[0].mxu0
        %v1086 = vadd.f32 %v984, %v1085
        %1087 = vmatprep.mubr.f32.mxu0 %v808
        %1088 = vmatmul.mubr.f32.gmra.mrb[0].mxu0 %v807
        %v1089 = vpop.f32.mrb[0].mxu0
        %v1090 = vadd.f32 %v980, %v1089
        %v1091 = vpop.f32.mrb[0].mxu0
        %v1092 = vadd.f32 %v984, %v1091
        %1093 = vmatprep.mubr.f32.mxu0 %v812
        %1094 = vmatmul.mubr.f32.gmra.mrb[0].mxu0 %v811
        %v1095 = vpop.f32.mrb[0].mxu0
        %v1096 = vadd.f32 %v980, %v1095
        %v1097 = vpop.f32.mrb[0].mxu0
        %v1098 = vadd.f32 %v984, %v1097
        %1099 = vmatprep.mubr.f32.mxu0 %v816
        %1100 = vmatmul.mubr.f32.gmra.mrb[0].mxu0 %v815
        %v1101 = vpop.f32.mrb[0].mxu0
        %v1102 = vadd.f32 %v980, %v1101
        %v1103 = vpop.f32.mrb[0].mxu0
        %v1104 = vadd.f32 %v984, %v1103
        %1105 = vmatprep.mubr.f32.mxu0 %v820
        %1106 = vmatmul.mubr.f32.gmra.mrb[0].mxu0 %v819
        %v1107 = vpop.f32.mrb[0].mxu0
        %v1108 = vadd.f32 %v980, %v1107
        %v1109 = vpop.f32.mrb[0].mxu0
        %v1110 = vadd.f32 %v984, %v1109
        %1111 = vmatprep.mubr.f32.mxu0 %v824
        %1112 = vmatmul.mubr.f32.gmra.mrb[0].mxu0 %v823
        %v1113 = vpop.f32.mrb[0].mxu0
        %v1114 = vadd.f32 %v980, %v1113
        %v1115 = vpop.f32.mrb[0].mxu0
        %v1116 = vadd.f32 %v984, %v1115
        %1117 = vmatprep.mubr.f32.mxu0 %v828
        %1118 = vmatmul.mubr.f32.gmra.mrb[0].mxu0 %v827
        %v1119 = vpop.f32.mrb[0].mxu0
        %v1120 = vadd.f32 %v980, %v1119
        %v1121 = vpop.f32.mrb[0].mxu0
        %v1122 = vadd.f32 %v984, %v1121
        %1123 = vmatprep.mubr.f32.mxu0 %v832
        %1124 = vmatmul.mubr.f32.gmra.mrb[0].mxu0 %v831
        %v1125 = vpop.f32.mrb[0].mxu0
        %v1126 = vadd.f32 %v980, %v1125
        %v1127 = vpop.f32.mrb[0].mxu0
        %v1128 = vadd.f32 %v984, %v1127
        %1129 = vmatprep.mubr.f32.mxu0 %v836
        %1130 = vmatmul.mubr.f32.gmra.mrb[0].mxu0 %v835
        %v1131 = vpop.f32.mrb[0].mxu0
        %v1132 = vadd.f32 %v980, %v1131
        %v1133 = vpop.f32.mrb[0].mxu0
        %v1134 = vadd.f32 %v984, %v1133
        %1135 = vmatprep.mubr.f32.mxu0 %v840
        %1136 = vmatmul.mubr.f32.gmra.mrb[0].mxu0 %v839
        %v1137 = vpop.f32.mrb[0].mxu0
        %v1138 = vadd.f32 %v980, %v1137
        %v1139 = vpop.f32.mrb[0].mxu0
        %v1140 = vadd.f32 %v984, %v1139
        %1141 = vmatprep.mubr.f32.mxu0 %v844
        %1142 = vmatmul.mubr.f32.gmra.mrb[0].mxu0 %v843
        %v1143 = vpop.f32.mrb[0].mxu0
        %v1144 = vadd.f32 %v980, %v1143
        %v1145 = vpop.f32.mrb[0].mxu0
        %v1146 = vadd.f32 %v984, %v1145
        %1147 = vdwg.mxu0
        %1148 = vmatprep.subr.mxu0 %v912
        %1149 = vmatpush1.msra.mxu0 %v911
        %1150 = vmatprep.subr.mxu0 %v914
        %1151 = vmatpush1.msra.mxu0 %v913
        %1152 = vmatprep.subr.mxu0 %v916
        %1153 = vmatpush1.msra.mxu0 %v915
        %1154 = vmatprep.subr.mxu0 %v918
        %1155 = vmatpush1.msra.mxu0 %v917
        %1156 = vmatprep.subr.mxu0 %v920
        %1157 = vmatpush1.msra.mxu0 %v919
        %1158 = vmatprep.subr.mxu0 %v922
        %1159 = vmatpush1.msra.mxu0 %v921
        %1160 = vmatprep.subr.mxu0 %v924
        %1161 = vmatpush1.msra.mxu0 %v923
        %1162 = vmatprep.subr.mxu0 %v926
        %1163 = vmatpush1.msra.mxu0 %v925
        %1164 = vmatprep.subr.mxu0 %v928
        %1165 = vmatpush1.msra.mxu0 %v927
        %1166 = vmatprep.subr.mxu0 %v930
        %1167 = vmatpush1.msra.mxu0 %v929
        %1168 = vmatprep.subr.mxu0 %v932
        %1169 = vmatpush1.msra.mxu0 %v931
        %1170 = vmatprep.subr.mxu0 %v934
        %1171 = vmatpush1.msra.mxu0 %v933
        %1172 = vmatprep.subr.mxu0 %v936
        %1173 = vmatpush1.msra.mxu0 %v935
        %1174 = vmatprep.subr.mxu0 %v938
        %1175 = vmatpush1.msra.mxu0 %v937
        %1176 = vmatprep.subr.mxu0 %v940
        %1177 = vmatpush1.msra.mxu0 %v939
        %1178 = vmatprep.subr.mxu0 %v942
        %1179 = vmatpush1.msra.mxu0 %v941
        %1180 = vmatprep.subr.mxu0 %v944
        %1181 = vmatpush1.msra.mxu0 %v943
        %1182 = vmatprep.subr.mxu0 %v946
        %1183 = vmatpush1.msra.mxu0 %v945
        %1184 = vmatprep.subr.mxu0 %v948
        %1185 = vmatpush1.msra.mxu0 %v947
        %1186 = vmatprep.subr.mxu0 %v950
        %1187 = vmatpush1.msra.mxu0 %v949
        %1188 = vmatprep.subr.mxu0 %v952
        %1189 = vmatpush1.msra.mxu0 %v951
        %1190 = vmatprep.subr.mxu0 %v954
        %1191 = vmatpush1.msra.mxu0 %v953
        %1192 = vmatprep.subr.mxu0 %v956
        %1193 = vmatpush1.msra.mxu0 %v955
        %1194 = vmatprep.subr.mxu0 %v958
        %1195 = vmatpush1.msra.mxu0 %v957
        %1196 = vmatprep.subr.mxu0 %v960
        %1197 = vmatpush1.msra.mxu0 %v959
        %1198 = vmatprep.subr.mxu0 %v962
        %1199 = vmatpush1.msra.mxu0 %v961
        %1200 = vmatprep.subr.mxu0 %v964
        %1201 = vmatpush1.msra.mxu0 %v963
        %1202 = vmatprep.subr.mxu0 %v966
        %1203 = vmatpush1.msra.mxu0 %v965
        %1204 = vmatprep.subr.mxu0 %v968
        %1205 = vmatpush1.msra.mxu0 %v967
        %1206 = vmatprep.subr.mxu0 %v970
        %1207 = vmatpush1.msra.mxu0 %v969
        %1208 = vmatprep.subr.mxu0 %v972
        %1209 = vmatpush1.msra.mxu0 %v971
        %1210 = vmatprep.subr.mxu0 %v974
        %1211 = vmatpush1.msra.mxu0 %v973
        %1212 = vmatprep.mubr.f32.mxu0 %v786
        %1213 = vmatmul.mubr.f32.gmra.mrb[0].mxu0 %v785
        %v1214 = vpop.f32.mrb[0].mxu0
        %v1215 = vadd.f32 %v1054, %v1214
        %v1216 = vpop.f32.mrb[0].mxu0
        %v1217 = vadd.f32 %v1056, %v1216
        %1218 = vmatprep.mubr.f32.mxu0 %v790
        %1219 = vmatmul.mubr.f32.gmra.mrb[0].mxu0 %v789
        %v1220 = vpop.f32.mrb[0].mxu0
        %v1221 = vadd.f32 %v1060, %v1220
        %v1222 = vpop.f32.mrb[0].mxu0
        %v1223 = vadd.f32 %v1062, %v1222
        %1224 = vmatprep.mubr.f32.mxu0 %v794
        %1225 = vmatmul.mubr.f32.gmra.mrb[0].mxu0 %v793
        %v1226 = vpop.f32.mrb[0].mxu0
        %v1227 = vadd.f32 %v1066, %v1226
        %v1228 = vpop.f32.mrb[0].mxu0
        %v1229 = vadd.f32 %v1068, %v1228
        %1230 = vmatprep.mubr.f32.mxu0 %v798
        %1231 = vmatmul.mubr.f32.gmra.mrb[0].mxu0 %v797
        %v1232 = vpop.f32.mrb[0].mxu0
        %v1233 = vadd.f32 %v1072, %v1232
        %v1234 = vpop.f32.mrb[0].mxu0
        %v1235 = vadd.f32 %v1074, %v1234
        %1236 = vmatprep.mubr.f32.mxu0 %v802
        %1237 = vmatmul.mubr.f32.gmra.mrb[0].mxu0 %v801
        %v1238 = vpop.f32.mrb[0].mxu0
        %v1239 = vadd.f32 %v1078, %v1238
        %v1240 = vpop.f32.mrb[0].mxu0
        %v1241 = vadd.f32 %v1080, %v1240
        %1242 = vmatprep.mubr.f32.mxu0 %v806
        %1243 = vmatmul.mubr.f32.gmra.mrb[0].mxu0 %v805
        %v1244 = vpop.f32.mrb[0].mxu0
        %v1245 = vadd.f32 %v1084, %v1244
        %v1246 = vpop.f32.mrb[0].mxu0
        %v1247 = vadd.f32 %v1086, %v1246
        %1248 = vmatprep.mubr.f32.mxu0 %v810
        %1249 = vmatmul.mubr.f32.gmra.mrb[0].mxu0 %v809
        %v1250 = vpop.f32.mrb[0].mxu0
        %v1251 = vadd.f32 %v1090, %v1250
        %v1252 = vpop.f32.mrb[0].mxu0
        %v1253 = vadd.f32 %v1092, %v1252
        %1254 = vmatprep.mubr.f32.mxu0 %v814
        %1255 = vmatmul.mubr.f32.gmra.mrb[0].mxu0 %v813
        %v1256 = vpop.f32.mrb[0].mxu0
        %v1257 = vadd.f32 %v1096, %v1256
        %v1258 = vpop.f32.mrb[0].mxu0
        %v1259 = vadd.f32 %v1098, %v1258
        %1260 = vmatprep.mubr.f32.mxu0 %v818
        %1261 = vmatmul.mubr.f32.gmra.mrb[0].mxu0 %v817
        %v1262 = vpop.f32.mrb[0].mxu0
        %v1263 = vadd.f32 %v1102, %v1262
        %v1264 = vpop.f32.mrb[0].mxu0
        %v1265 = vadd.f32 %v1104, %v1264
        %1266 = vmatprep.mubr.f32.mxu0 %v822
        %1267 = vmatmul.mubr.f32.gmra.mrb[0].mxu0 %v821
        %v1268 = vpop.f32.mrb[0].mxu0
        %v1269 = vadd.f32 %v1108, %v1268
        %v1270 = vpop.f32.mrb[0].mxu0
        %v1271 = vadd.f32 %v1110, %v1270
        %1272 = vmatprep.mubr.f32.mxu0 %v826
        %1273 = vmatmul.mubr.f32.gmra.mrb[0].mxu0 %v825
        %v1274 = vpop.f32.mrb[0].mxu0
        %v1275 = vadd.f32 %v1114, %v1274
        %v1276 = vpop.f32.mrb[0].mxu0
        %v1277 = vadd.f32 %v1116, %v1276
        %1278 = vmatprep.mubr.f32.mxu0 %v830
        %1279 = vmatmul.mubr.f32.gmra.mrb[0].mxu0 %v829
        %v1280 = vpop.f32.mrb[0].mxu0
        %v1281 = vadd.f32 %v1120, %v1280
        %v1282 = vpop.f32.mrb[0].mxu0
        %v1283 = vadd.f32 %v1122, %v1282
        %1284 = vmatprep.mubr.f32.mxu0 %v834
        %1285 = vmatmul.mubr.f32.gmra.mrb[0].mxu0 %v833
        %v1286 = vpop.f32.mrb[0].mxu0
        %v1287 = vadd.f32 %v1126, %v1286
        %v1288 = vpop.f32.mrb[0].mxu0
        %v1289 = vadd.f32 %v1128, %v1288
        %1290 = vmatprep.mubr.f32.mxu0 %v838
        %1291 = vmatmul.mubr.f32.gmra.mrb[0].mxu0 %v837
        %v1292 = vpop.f32.mrb[0].mxu0
        %v1293 = vadd.f32 %v1132, %v1292
        %v1294 = vpop.f32.mrb[0].mxu0
        %v1295 = vadd.f32 %v1134, %v1294
        %1296 = vmatprep.mubr.f32.mxu0 %v842
        %1297 = vmatmul.mubr.f32.gmra.mrb[0].mxu0 %v841
        %v1298 = vpop.f32.mrb[0].mxu0
        %v1299 = vadd.f32 %v1138, %v1298
        %v1300 = vpop.f32.mrb[0].mxu0
        %v1301 = vadd.f32 %v1140, %v1300
        %1302 = vmatprep.mubr.f32.mxu0 %v846
        %1303 = vmatmul.mubr.f32.gmra.mrb[0].mxu0 %v845
        %v1304 = vpop.f32.mrb[0].mxu0
        %v1305 = vadd.f32 %v1144, %v1304
        %v1306 = vpop.f32.mrb[0].mxu0
        %v1307 = vadd.f32 %v1146, %v1306
        %1308 = vdwg.mxu0
        %v1309 = vmax.f32 %v1215, 0.0
        %v1310 = vmax.f32 %v1217, 0.0
        %v1311 = vmax.f32 %v1221, 0.0
        %v1312 = vmax.f32 %v1223, 0.0
        %v1313 = vmax.f32 %v1227, 0.0
        %v1314 = vmax.f32 %v1229, 0.0
        %v1315 = vmax.f32 %v1233, 0.0
        %v1316 = vmax.f32 %v1235, 0.0
        %v1317 = vmax.f32 %v1239, 0.0
        %v1318 = vmax.f32 %v1241, 0.0
        %v1319 = vmax.f32 %v1245, 0.0
        %v1320 = vmax.f32 %v1247, 0.0
        %v1321 = vmax.f32 %v1251, 0.0
        %v1322 = vmax.f32 %v1253, 0.0
        %v1323 = vmax.f32 %v1257, 0.0
        %v1324 = vmax.f32 %v1259, 0.0
        %v1325 = vmax.f32 %v1263, 0.0
        %v1326 = vmax.f32 %v1265, 0.0
        %v1327 = vmax.f32 %v1269, 0.0
        %v1328 = vmax.f32 %v1271, 0.0
        %v1329 = vmax.f32 %v1275, 0.0
        %v1330 = vmax.f32 %v1277, 0.0
        %v1331 = vmax.f32 %v1281, 0.0
        %v1332 = vmax.f32 %v1283, 0.0
        %v1333 = vmax.f32 %v1287, 0.0
        %v1334 = vmax.f32 %v1289, 0.0
        %v1335 = vmax.f32 %v1293, 0.0
        %v1336 = vmax.f32 %v1295, 0.0
        %v1337 = vmax.f32 %v1299, 0.0
        %v1338 = vmax.f32 %v1301, 0.0
        %v1339 = vmax.f32 %v1305, 0.0
        %v1340 = vmax.f32 %v1307, 0.0
        %v1341 = vld [vmem:[%s4] sm:$0xff]
        %v1342 = vld [vmem:[%s4 + $0x8] sm:$0xff]
        %v1343 = vld [vmem:[%s4 + $0x10] sm:$0xff]
        %v1344 = vld [vmem:[%s4 + $0x18] sm:$0xff]
        %v1345 = vld [vmem:[%s4 + $0x20] sm:$0xff]
        %v1346 = vld [vmem:[%s4 + $0x28] sm:$0xff]
        %v1347 = vld [vmem:[%s4 + $0x30] sm:$0xff]
        %v1348 = vld [vmem:[%s4 + $0x38] sm:$0xff]
        %v1349 = vld [vmem:[%s4 + $0x40] sm:$0xff]
        %v1350 = vld [vmem:[%s4 + $0x48] sm:$0xff]
        %v1351 = vld [vmem:[%s4 + $0x50] sm:$0xff]
        %v1352 = vld [vmem:[%s4 + $0x58] sm:$0xff]
        %v1353 = vld [vmem:[%s4 + $0x60] sm:$0xff]
        %v1354 = vld [vmem:[%s4 + $0x68] sm:$0xff]
        %v1355 = vld [vmem:[%s4 + $0x70] sm:$0xff]
        %v1356 = vld [vmem:[%s4 + $0x78] sm:$0xff]
        %v1357 = vld [vmem:[%s4 + $0x80] sm:$0xff]
        %v1358 = vld [vmem:[%s4 + $0x88] sm:$0xff]
        %v1359 = vld [vmem:[%s4 + $0x90] sm:$0xff]
        %v1360 = vld [vmem:[%s4 + $0x98] sm:$0xff]
        %v1361 = vld [vmem:[%s4 + $0xa0] sm:$0xff]
        %v1362 = vld [vmem:[%s4 + $0xa8] sm:$0xff]
        %v1363 = vld [vmem:[%s4 + $0xb0] sm:$0xff]
        %v1364 = vld [vmem:[%s4 + $0xb8] sm:$0xff]
        %v1365 = vld [vmem:[%s4 + $0xc0] sm:$0xff]
        %v1366 = vld [vmem:[%s4 + $0xc8] sm:$0xff]
        %v1367 = vld [vmem:[%s4 + $0xd0] sm:$0xff]
        %v1368 = vld [vmem:[%s4 + $0xd8] sm:$0xff]
        %v1369 = vld [vmem:[%s4 + $0xe0] sm:$0xff]
        %v1370 = vld [vmem:[%s4 + $0xe8] sm:$0xff]
        %v1371 = vld [vmem:[%s4 + $0xf0] sm:$0xff]
        %v1372 = vld [vmem:[%s4 + $0xf8] sm:$0xff]
        %v1373 = vld [vmem:[%s5] sm:$0x1]
        %v1375 = vlaneseq
        %v1376 = vshrl.u32 %v1375, 7
        %v1377 = vsub.s32 0, %v1376
        %v1378 = vrot.slane %v1373, %v1377
        %1380 = vmatprep.subr.mxu0 0.0
        %1381 = vmatpush1.msra.mxu0 %v1341
        %1382 = vmatprep.subr.mxu0 0.0
        %1383 = vmatpush1.msra.mxu0 %v1342
        %1384 = vmatprep.subr.mxu0 0.0
        %1385 = vmatpush1.msra.mxu0 %v1343
        %1386 = vmatprep.subr.mxu0 0.0
        %1387 = vmatpush1.msra.mxu0 %v1344
        %1388 = vmatprep.subr.mxu0 0.0
        %1389 = vmatpush1.msra.mxu0 %v1345
        %1390 = vmatprep.subr.mxu0 0.0
        %1391 = vmatpush1.msra.mxu0 %v1346
        %1392 = vmatprep.subr.mxu0 0.0
        %1393 = vmatpush1.msra.mxu0 %v1347
        %1394 = vmatprep.subr.mxu0 0.0
        %1395 = vmatpush1.msra.mxu0 %v1348
        %1396 = vmatprep.subr.mxu0 0.0
        %1397 = vmatpush1.msra.mxu0 %v1349
        %1398 = vmatprep.subr.mxu0 0.0
        %1399 = vmatpush1.msra.mxu0 %v1350
        %1400 = vmatprep.subr.mxu0 0.0
        %1401 = vmatpush1.msra.mxu0 %v1351
        %1402 = vmatprep.subr.mxu0 0.0
        %1403 = vmatpush1.msra.mxu0 %v1352
        %1404 = vmatprep.subr.mxu0 0.0
        %1405 = vmatpush1.msra.mxu0 %v1353
        %1406 = vmatprep.subr.mxu0 0.0
        %1407 = vmatpush1.msra.mxu0 %v1354
        %1408 = vmatprep.subr.mxu0 0.0
        %1409 = vmatpush1.msra.mxu0 %v1355
        %1410 = vmatprep.subr.mxu0 0.0
        %1411 = vmatpush1.msra.mxu0 %v1356
        %1412 = vmatprep.subr.mxu0 0.0
        %1413 = vmatpush1.msra.mxu0 %v1357
        %1414 = vmatprep.subr.mxu0 0.0
        %1415 = vmatpush1.msra.mxu0 %v1358
        %1416 = vmatprep.subr.mxu0 0.0
        %1417 = vmatpush1.msra.mxu0 %v1359
        %1418 = vmatprep.subr.mxu0 0.0
        %1419 = vmatpush1.msra.mxu0 %v1360
        %1420 = vmatprep.subr.mxu0 0.0
        %1421 = vmatpush1.msra.mxu0 %v1361
        %1422 = vmatprep.subr.mxu0 0.0
        %1423 = vmatpush1.msra.mxu0 %v1362
        %1424 = vmatprep.subr.mxu0 0.0
        %1425 = vmatpush1.msra.mxu0 %v1363
        %1426 = vmatprep.subr.mxu0 0.0
        %1427 = vmatpush1.msra.mxu0 %v1364
        %1428 = vmatprep.subr.mxu0 0.0
        %1429 = vmatpush1.msra.mxu0 %v1365
        %1430 = vmatprep.subr.mxu0 0.0
        %1431 = vmatpush1.msra.mxu0 %v1366
        %1432 = vmatprep.subr.mxu0 0.0
        %1433 = vmatpush1.msra.mxu0 %v1367
        %1434 = vmatprep.subr.mxu0 0.0
        %1435 = vmatpush1.msra.mxu0 %v1368
        %1436 = vmatprep.subr.mxu0 0.0
        %1437 = vmatpush1.msra.mxu0 %v1369
        %1438 = vmatprep.subr.mxu0 0.0
        %1439 = vmatpush1.msra.mxu0 %v1370
        %1440 = vmatprep.subr.mxu0 0.0
        %1441 = vmatpush1.msra.mxu0 %v1371
        %1442 = vmatprep.subr.mxu0 0.0
        %1443 = vmatpush1.msra.mxu0 %v1372
        %1444 = vmatprep.mubr.f32.mxu0 %v1310
        %1445 = vmatmul.mubr.f32.gmra.mrb[0].mxu0 %v1309
        %v1446 = vpop.f32.mrb[0].mxu0
        %v1447 = vadd.f32 %v1378, %v1446
        %v1448 = vpop.f32.mrb[0].mxu0
        %1449 = vmatprep.mubr.f32.mxu0 %v1312
        %1450 = vmatmul.mubr.f32.gmra.mrb[0].mxu0 %v1311
        %v1451 = vpop.f32.mrb[0].mxu0
        %v1452 = vadd.f32 %v1378, %v1451
        %v1453 = vpop.f32.mrb[0].mxu0
        %1454 = vmatprep.mubr.f32.mxu0 %v1314
        %1455 = vmatmul.mubr.f32.gmra.mrb[0].mxu0 %v1313
        %v1456 = vpop.f32.mrb[0].mxu0
        %v1457 = vadd.f32 %v1378, %v1456
        %v1458 = vpop.f32.mrb[0].mxu0
        %1459 = vmatprep.mubr.f32.mxu0 %v1316
        %1460 = vmatmul.mubr.f32.gmra.mrb[0].mxu0 %v1315
        %v1461 = vpop.f32.mrb[0].mxu0
        %v1462 = vadd.f32 %v1378, %v1461
        %v1463 = vpop.f32.mrb[0].mxu0
        %1464 = vmatprep.mubr.f32.mxu0 %v1318
        %1465 = vmatmul.mubr.f32.gmra.mrb[0].mxu0 %v1317
        %v1466 = vpop.f32.mrb[0].mxu0
        %v1467 = vadd.f32 %v1378, %v1466
        %v1468 = vpop.f32.mrb[0].mxu0
        %1469 = vmatprep.mubr.f32.mxu0 %v1320
        %1470 = vmatmul.mubr.f32.gmra.mrb[0].mxu0 %v1319
        %v1471 = vpop.f32.mrb[0].mxu0
        %v1472 = vadd.f32 %v1378, %v1471
        %v1473 = vpop.f32.mrb[0].mxu0
        %1474 = vmatprep.mubr.f32.mxu0 %v1322
        %1475 = vmatmul.mubr.f32.gmra.mrb[0].mxu0 %v1321
        %v1476 = vpop.f32.mrb[0].mxu0
        %v1477 = vadd.f32 %v1378, %v1476
        %v1478 = vpop.f32.mrb[0].mxu0
        %1479 = vmatprep.mubr.f32.mxu0 %v1324
        %1480 = vmatmul.mubr.f32.gmra.mrb[0].mxu0 %v1323
        %v1481 = vpop.f32.mrb[0].mxu0
        %v1482 = vadd.f32 %v1378, %v1481
        %v1483 = vpop.f32.mrb[0].mxu0
        %1484 = vmatprep.mubr.f32.mxu0 %v1326
        %1485 = vmatmul.mubr.f32.gmra.mrb[0].mxu0 %v1325
        %v1486 = vpop.f32.mrb[0].mxu0
        %v1487 = vadd.f32 %v1378, %v1486
        %v1488 = vpop.f32.mrb[0].mxu0
        %1489 = vmatprep.mubr.f32.mxu0 %v1328
        %1490 = vmatmul.mubr.f32.gmra.mrb[0].mxu0 %v1327
        %v1491 = vpop.f32.mrb[0].mxu0
        %v1492 = vadd.f32 %v1378, %v1491
        %v1493 = vpop.f32.mrb[0].mxu0
        %1494 = vmatprep.mubr.f32.mxu0 %v1330
        %1495 = vmatmul.mubr.f32.gmra.mrb[0].mxu0 %v1329
        %v1496 = vpop.f32.mrb[0].mxu0
        %v1497 = vadd.f32 %v1378, %v1496
        %v1498 = vpop.f32.mrb[0].mxu0
        %1499 = vmatprep.mubr.f32.mxu0 %v1332
        %1500 = vmatmul.mubr.f32.gmra.mrb[0].mxu0 %v1331
        %v1501 = vpop.f32.mrb[0].mxu0
        %v1502 = vadd.f32 %v1378, %v1501
        %v1503 = vpop.f32.mrb[0].mxu0
        %1504 = vmatprep.mubr.f32.mxu0 %v1334
        %1505 = vmatmul.mubr.f32.gmra.mrb[0].mxu0 %v1333
        %v1506 = vpop.f32.mrb[0].mxu0
        %v1507 = vadd.f32 %v1378, %v1506
        %v1508 = vpop.f32.mrb[0].mxu0
        %1509 = vmatprep.mubr.f32.mxu0 %v1336
        %1510 = vmatmul.mubr.f32.gmra.mrb[0].mxu0 %v1335
        %v1511 = vpop.f32.mrb[0].mxu0
        %v1512 = vadd.f32 %v1378, %v1511
        %v1513 = vpop.f32.mrb[0].mxu0
        %1514 = vmatprep.mubr.f32.mxu0 %v1338
        %1515 = vmatmul.mubr.f32.gmra.mrb[0].mxu0 %v1337
        %v1516 = vpop.f32.mrb[0].mxu0
        %v1517 = vadd.f32 %v1378, %v1516
        %v1518 = vpop.f32.mrb[0].mxu0
        %1519 = vmatprep.mubr.f32.mxu0 %v1340
        %1520 = vmatmul.mubr.f32.gmra.mrb[0].mxu0 %v1339
        %v1521 = vpop.f32.mrb[0].mxu0
        %v1522 = vadd.f32 %v1378, %v1521
        %v1523 = vpop.f32.mrb[0].mxu0
        %1524 = vdwg.mxu0
        %v1525 = vxor.u32 %v1447, 2147483648
        %v1526 = vxor.u32 %v1452, 2147483648
        %v1527 = vxor.u32 %v1457, 2147483648
        %v1528 = vxor.u32 %v1462, 2147483648
        %v1529 = vxor.u32 %v1467, 2147483648
        %v1530 = vxor.u32 %v1472, 2147483648
        %v1531 = vxor.u32 %v1477, 2147483648
        %v1532 = vxor.u32 %v1482, 2147483648
        %v1533 = vxor.u32 %v1487, 2147483648
        %v1534 = vxor.u32 %v1492, 2147483648
        %v1535 = vxor.u32 %v1497, 2147483648
        %v1536 = vxor.u32 %v1502, 2147483648
        %v1537 = vxor.u32 %v1507, 2147483648
        %v1538 = vxor.u32 %v1512, 2147483648
        %v1539 = vxor.u32 %v1517, 2147483648
        %v1540 = vxor.u32 %v1522, 2147483648
        %v1541 = vmul.f32 %v1525, 1.442695
        %v1542 = vpow.pop %v1541
        %v1543 = vmul.f32 %v1526, 1.442695
        %v1544 = vpow.pop %v1543
        %v1545 = vmul.f32 %v1527, 1.442695
        %v1546 = vpow.pop %v1545
        %v1547 = vmul.f32 %v1528, 1.442695
        %v1548 = vpow.pop %v1547
        %v1549 = vmul.f32 %v1529, 1.442695
        %v1550 = vpow.pop %v1549
        %v1551 = vmul.f32 %v1530, 1.442695
        %v1552 = vpow.pop %v1551
        %v1553 = vmul.f32 %v1531, 1.442695
        %v1554 = vpow.pop %v1553
        %v1555 = vmul.f32 %v1532, 1.442695
        %v1556 = vpow.pop %v1555
        %v1557 = vmul.f32 %v1533, 1.442695
        %v1558 = vpow.pop %v1557
        %v1559 = vmul.f32 %v1534, 1.442695
        %v1560 = vpow.pop %v1559
        %v1561 = vmul.f32 %v1535, 1.442695
        %v1562 = vpow.pop %v1561
        %v1563 = vmul.f32 %v1536, 1.442695
        %v1564 = vpow.pop %v1563
        %v1565 = vmul.f32 %v1537, 1.442695
        %v1566 = vpow.pop %v1565
        %v1567 = vmul.f32 %v1538, 1.442695
        %v1568 = vpow.pop %v1567
        %v1569 = vmul.f32 %v1539, 1.442695
        %v1570 = vpow.pop %v1569
        %v1571 = vmul.f32 %v1540, 1.442695
        %v1572 = vpow.pop %v1571
        %v1573 = vadd.f32 %v1542, 1.0
        %v1574 = vadd.f32 %v1544, 1.0
        %v1575 = vadd.f32 %v1546, 1.0
        %v1576 = vadd.f32 %v1548, 1.0
        %v1577 = vadd.f32 %v1550, 1.0
        %v1578 = vadd.f32 %v1552, 1.0
        %v1579 = vadd.f32 %v1554, 1.0
        %v1580 = vadd.f32 %v1556, 1.0
        %v1581 = vadd.f32 %v1558, 1.0
        %v1582 = vadd.f32 %v1560, 1.0
        %v1583 = vadd.f32 %v1562, 1.0
        %v1584 = vadd.f32 %v1564, 1.0
        %v1585 = vadd.f32 %v1566, 1.0
        %v1586 = vadd.f32 %v1568, 1.0
        %v1587 = vadd.f32 %v1570, 1.0
        %v1588 = vadd.f32 %v1572, 1.0
        %v1589 = vrcp.pop %v1573
        %v1590 = vmul.f32 1.0, %v1589
        %v1591 = vrcp.pop %v1574
        %v1592 = vmul.f32 1.0, %v1591
        %v1593 = vrcp.pop %v1575
        %v1594 = vmul.f32 1.0, %v1593
        %v1595 = vrcp.pop %v1576
        %v1596 = vmul.f32 1.0, %v1595
        %v1597 = vrcp.pop %v1577
        %v1598 = vmul.f32 1.0, %v1597
        %v1599 = vrcp.pop %v1578
        %v1600 = vmul.f32 1.0, %v1599
        %v1601 = vrcp.pop %v1579
        %v1602 = vmul.f32 1.0, %v1601
        %v1603 = vrcp.pop %v1580
        %v1604 = vmul.f32 1.0, %v1603
        %v1605 = vrcp.pop %v1581
        %v1606 = vmul.f32 1.0, %v1605
        %v1607 = vrcp.pop %v1582
        %v1608 = vmul.f32 1.0, %v1607
        %v1609 = vrcp.pop %v1583
        %v1610 = vmul.f32 1.0, %v1609
        %v1611 = vrcp.pop %v1584
        %v1612 = vmul.f32 1.0, %v1611
        %v1613 = vrcp.pop %v1585
        %v1614 = vmul.f32 1.0, %v1613
        %v1615 = vrcp.pop %v1586
        %v1616 = vmul.f32 1.0, %v1615
        %v1617 = vrcp.pop %v1587
        %v1618 = vmul.f32 1.0, %v1617
        %v1619 = vrcp.pop %v1588
        %v1620 = vmul.f32 1.0, %v1619
        %v1621 = vld [vmem:[%s6] sm:$0xff]
        %v1622 = vld [vmem:[%s6 + $0x8] sm:$0xff]
        %v1623 = vld [vmem:[%s6 + $0x10] sm:$0xff]
        %v1624 = vld [vmem:[%s6 + $0x18] sm:$0xff]
        %v1625 = vld [vmem:[%s6 + $0x20] sm:$0xff]
        %v1626 = vld [vmem:[%s6 + $0x28] sm:$0xff]
        %v1627 = vld [vmem:[%s6 + $0x30] sm:$0xff]
        %v1628 = vld [vmem:[%s6 + $0x38] sm:$0xff]
        %v1629 = vld [vmem:[%s6 + $0x40] sm:$0xff]
        %v1630 = vld [vmem:[%s6 + $0x48] sm:$0xff]
        %v1631 = vld [vmem:[%s6 + $0x50] sm:$0xff]
        %v1632 = vld [vmem:[%s6 + $0x58] sm:$0xff]
        %v1633 = vld [vmem:[%s6 + $0x60] sm:$0xff]
        %v1634 = vld [vmem:[%s6 + $0x68] sm:$0xff]
        %v1635 = vld [vmem:[%s6 + $0x70] sm:$0xff]
        %v1636 = vld [vmem:[%s6 + $0x78] sm:$0xff]
        %v1637 = vld [vmem:[%s7] sm:$0x1]
        %v1639 = vlaneseq
        %v1640 = vshrl.u32 %v1639, 7
        %v1641 = vsub.s32 0, %v1640
        %v1642 = vrot.slane %v1637, %v1641
        %1644 = vmatprep.subr.mxu0 0.0
        %1645 = vmatpush1.msra.mxu0 %v1621
        %1646 = vmatprep.subr.mxu0 0.0
        %1647 = vmatpush1.msra.mxu0 %v1622
        %1648 = vmatprep.subr.mxu0 0.0
        %1649 = vmatpush1.msra.mxu0 %v1623
        %1650 = vmatprep.subr.mxu0 0.0
        %1651 = vmatpush1.msra.mxu0 %v1624
        %1652 = vmatprep.subr.mxu0 0.0
        %1653 = vmatpush1.msra.mxu0 %v1625
        %1654 = vmatprep.subr.mxu0 0.0
        %1655 = vmatpush1.msra.mxu0 %v1626
        %1656 = vmatprep.subr.mxu0 0.0
        %1657 = vmatpush1.msra.mxu0 %v1627
        %1658 = vmatprep.subr.mxu0 0.0
        %1659 = vmatpush1.msra.mxu0 %v1628
        %1660 = vmatprep.subr.mxu0 0.0
        %1661 = vmatpush1.msra.mxu0 %v1629
        %1662 = vmatprep.subr.mxu0 0.0
        %1663 = vmatpush1.msra.mxu0 %v1630
        %1664 = vmatprep.subr.mxu0 0.0
        %1665 = vmatpush1.msra.mxu0 %v1631
        %1666 = vmatprep.subr.mxu0 0.0
        %1667 = vmatpush1.msra.mxu0 %v1632
        %1668 = vmatprep.subr.mxu0 0.0
        %1669 = vmatpush1.msra.mxu0 %v1633
        %1670 = vmatprep.subr.mxu0 0.0
        %1671 = vmatpush1.msra.mxu0 %v1634
        %1672 = vmatprep.subr.mxu0 0.0
        %1673 = vmatpush1.msra.mxu0 %v1635
        %1674 = vmatprep.subr.mxu0 0.0
        %1675 = vmatpush1.msra.mxu0 %v1636
        %1676 = vmatprep.subr.mxu0 0.0
        %1677 = vmatpush1.msra.mxu0 0.0
        %1678 = vmatprep.subr.mxu0 0.0
        %1679 = vmatpush1.msra.mxu0 0.0
        %1680 = vmatprep.subr.mxu0 0.0
        %1681 = vmatpush1.msra.mxu0 0.0
        %1682 = vmatprep.subr.mxu0 0.0
        %1683 = vmatpush1.msra.mxu0 0.0
        %1684 = vmatprep.subr.mxu0 0.0
        %1685 = vmatpush1.msra.mxu0 0.0
        %1686 = vmatprep.subr.mxu0 0.0
        %1687 = vmatpush1.msra.mxu0 0.0
        %1688 = vmatprep.subr.mxu0 0.0
        %1689 = vmatpush1.msra.mxu0 0.0
        %1690 = vmatprep.subr.mxu0 0.0
        %1691 = vmatpush1.msra.mxu0 0.0
        %1692 = vmatprep.subr.mxu0 0.0
        %1693 = vmatpush1.msra.mxu0 0.0
        %1694 = vmatprep.subr.mxu0 0.0
        %1695 = vmatpush1.msra.mxu0 0.0
        %1696 = vmatprep.subr.mxu0 0.0
        %1697 = vmatpush1.msra.mxu0 0.0
        %1698 = vmatprep.subr.mxu0 0.0
        %1699 = vmatpush1.msra.mxu0 0.0
        %1700 = vmatprep.subr.mxu0 0.0
        %1701 = vmatpush1.msra.mxu0 0.0
        %1702 = vmatprep.subr.mxu0 0.0
        %1703 = vmatpush1.msra.mxu0 0.0
        %1704 = vmatprep.subr.mxu0 0.0
        %1705 = vmatpush1.msra.mxu0 0.0
        %1706 = vmatprep.subr.mxu0 0.0
        %1707 = vmatpush1.msra.mxu0 0.0
        %1708 = vmatprep.mubr.f32.mxu0 0.0
        %1709 = vmatmul.mubr.f32.gmra.mrb[0].mxu0 %v1590
        %v1710 = vpop.f32.mrb[0].mxu0
        %v1711 = vadd.f32 %v1642, %v1710
        %v1712 = vpop.f32.mrb[0].mxu0
        %1713 = vmatprep.mubr.f32.mxu0 0.0
        %1714 = vmatmul.mubr.f32.gmra.mrb[0].mxu0 %v1592
        %v1715 = vpop.f32.mrb[0].mxu0
        %v1716 = vadd.f32 %v1642, %v1715
        %v1717 = vpop.f32.mrb[0].mxu0
        %1718 = vmatprep.mubr.f32.mxu0 0.0
        %1719 = vmatmul.mubr.f32.gmra.mrb[0].mxu0 %v1594
        %v1720 = vpop.f32.mrb[0].mxu0
        %v1721 = vadd.f32 %v1642, %v1720
        %v1722 = vpop.f32.mrb[0].mxu0
        %1723 = vmatprep.mubr.f32.mxu0 0.0
        %1724 = vmatmul.mubr.f32.gmra.mrb[0].mxu0 %v1596
        %v1725 = vpop.f32.mrb[0].mxu0
        %v1726 = vadd.f32 %v1642, %v1725
        %v1727 = vpop.f32.mrb[0].mxu0
        %1728 = vmatprep.mubr.f32.mxu0 0.0
        %1729 = vmatmul.mubr.f32.gmra.mrb[0].mxu0 %v1598
        %v1730 = vpop.f32.mrb[0].mxu0
        %v1731 = vadd.f32 %v1642, %v1730
        %v1732 = vpop.f32.mrb[0].mxu0
        %1733 = vmatprep.mubr.f32.mxu0 0.0
        %1734 = vmatmul.mubr.f32.gmra.mrb[0].mxu0 %v1600
        %v1735 = vpop.f32.mrb[0].mxu0
        %v1736 = vadd.f32 %v1642, %v1735
        %v1737 = vpop.f32.mrb[0].mxu0
        %1738 = vmatprep.mubr.f32.mxu0 0.0
        %1739 = vmatmul.mubr.f32.gmra.mrb[0].mxu0 %v1602
        %v1740 = vpop.f32.mrb[0].mxu0
        %v1741 = vadd.f32 %v1642, %v1740
        %v1742 = vpop.f32.mrb[0].mxu0
        %1743 = vmatprep.mubr.f32.mxu0 0.0
        %1744 = vmatmul.mubr.f32.gmra.mrb[0].mxu0 %v1604
        %v1745 = vpop.f32.mrb[0].mxu0
        %v1746 = vadd.f32 %v1642, %v1745
        %v1747 = vpop.f32.mrb[0].mxu0
        %1748 = vmatprep.mubr.f32.mxu0 0.0
        %1749 = vmatmul.mubr.f32.gmra.mrb[0].mxu0 %v1606
        %v1750 = vpop.f32.mrb[0].mxu0
        %v1751 = vadd.f32 %v1642, %v1750
        %v1752 = vpop.f32.mrb[0].mxu0
        %1753 = vmatprep.mubr.f32.mxu0 0.0
        %1754 = vmatmul.mubr.f32.gmra.mrb[0].mxu0 %v1608
        %v1755 = vpop.f32.mrb[0].mxu0
        %v1756 = vadd.f32 %v1642, %v1755
        %v1757 = vpop.f32.mrb[0].mxu0
        %1758 = vmatprep.mubr.f32.mxu0 0.0
        %1759 = vmatmul.mubr.f32.gmra.mrb[0].mxu0 %v1610
        %v1760 = vpop.f32.mrb[0].mxu0
        %v1761 = vadd.f32 %v1642, %v1760
        %v1762 = vpop.f32.mrb[0].mxu0
        %1763 = vmatprep.mubr.f32.mxu0 0.0
        %1764 = vmatmul.mubr.f32.gmra.mrb[0].mxu0 %v1612
        %v1765 = vpop.f32.mrb[0].mxu0
        %v1766 = vadd.f32 %v1642, %v1765
        %v1767 = vpop.f32.mrb[0].mxu0
        %1768 = vmatprep.mubr.f32.mxu0 0.0
        %1769 = vmatmul.mubr.f32.gmra.mrb[0].mxu0 %v1614
        %v1770 = vpop.f32.mrb[0].mxu0
        %v1771 = vadd.f32 %v1642, %v1770
        %v1772 = vpop.f32.mrb[0].mxu0
        %1773 = vmatprep.mubr.f32.mxu0 0.0
        %1774 = vmatmul.mubr.f32.gmra.mrb[0].mxu0 %v1616
        %v1775 = vpop.f32.mrb[0].mxu0
        %v1776 = vadd.f32 %v1642, %v1775
        %v1777 = vpop.f32.mrb[0].mxu0
        %1778 = vmatprep.mubr.f32.mxu0 0.0
        %1779 = vmatmul.mubr.f32.gmra.mrb[0].mxu0 %v1618
        %v1780 = vpop.f32.mrb[0].mxu0
        %v1781 = vadd.f32 %v1642, %v1780
        %v1782 = vpop.f32.mrb[0].mxu0
        %1783 = vmatprep.mubr.f32.mxu0 0.0
        %1784 = vmatmul.mubr.f32.gmra.mrb[0].mxu0 %v1620
        %v1785 = vpop.f32.mrb[0].mxu0
        %v1786 = vadd.f32 %v1642, %v1785
        %v1787 = vpop.f32.mrb[0].mxu0
        %1788 = vdwg.mxu0
        %v1789 = vmax.f32 %v1711, 0.0
        %v1790 = vmax.f32 %v1716, 0.0
        %v1791 = vmax.f32 %v1721, 0.0
        %v1792 = vmax.f32 %v1726, 0.0
        %v1793 = vmax.f32 %v1731, 0.0
        %v1794 = vmax.f32 %v1736, 0.0
        %v1795 = vmax.f32 %v1741, 0.0
        %v1796 = vmax.f32 %v1746, 0.0
        %v1797 = vmax.f32 %v1751, 0.0
        %v1798 = vmax.f32 %v1756, 0.0
        %v1799 = vmax.f32 %v1761, 0.0
        %v1800 = vmax.f32 %v1766, 0.0
        %v1801 = vmax.f32 %v1771, 0.0
        %v1802 = vmax.f32 %v1776, 0.0
        %v1803 = vmax.f32 %v1781, 0.0
        %v1804 = vmax.f32 %v1786, 0.0
        %v1805 = vld [vmem:[%s8] sm:$0xff]
        %v1806 = vld [vmem:[%s8 + $0x8] sm:$0xff]
        %v1807 = vld [vmem:[%s8 + $0x10] sm:$0xff]
        %v1808 = vld [vmem:[%s8 + $0x18] sm:$0xff]
        %v1809 = vld [vmem:[%s8 + $0x20] sm:$0xff]
        %v1810 = vld [vmem:[%s8 + $0x28] sm:$0xff]
        %v1811 = vld [vmem:[%s8 + $0x30] sm:$0xff]
        %v1812 = vld [vmem:[%s8 + $0x38] sm:$0xff]
        %v1813 = vld [vmem:[%s9] sm:$0x1]
        %v1815 = vlaneseq
        %v1816 = vshrl.u32 %v1815, 7
        %v1817 = vsub.s32 0, %v1816
        %v1818 = vrot.slane %v1813, %v1817
        %vm1820 = vcmask 523264
        %v1822 = vsel %vm1820, %v1789, 0
        %v1825 = vsel %vm1820, %v1790, 0
        %v1828 = vsel %vm1820, %v1791, 0
        %v1831 = vsel %vm1820, %v1792, 0
        %v1834 = vsel %vm1820, %v1793, 0
        %v1837 = vsel %vm1820, %v1794, 0
        %v1840 = vsel %vm1820, %v1795, 0
        %v1843 = vsel %vm1820, %v1796, 0
        %v1846 = vsel %vm1820, %v1797, 0
        %v1849 = vsel %vm1820, %v1798, 0
        %v1852 = vsel %vm1820, %v1799, 0
        %v1855 = vsel %vm1820, %v1800, 0
        %v1858 = vsel %vm1820, %v1801, 0
        %v1861 = vsel %vm1820, %v1802, 0
        %v1864 = vsel %vm1820, %v1803, 0
        %v1867 = vsel %vm1820, %v1804, 0
        %1869 = vmatprep.subr.mxu0 0.0
        %1870 = vmatpush1.msra.mxu0 %v1805
        %1871 = vmatprep.subr.mxu0 0.0
        %1872 = vmatpush1.msra.mxu0 %v1806
        %1873 = vmatprep.subr.mxu0 0.0
        %1874 = vmatpush1.msra.mxu0 %v1807
        %1875 = vmatprep.subr.mxu0 0.0
        %1876 = vmatpush1.msra.mxu0 %v1808
        %1877 = vmatprep.subr.mxu0 0.0
        %1878 = vmatpush1.msra.mxu0 %v1809
        %1879 = vmatprep.subr.mxu0 0.0
        %1880 = vmatpush1.msra.mxu0 %v1810
        %1881 = vmatprep.subr.mxu0 0.0
        %1882 = vmatpush1.msra.mxu0 %v1811
        %1883 = vmatprep.subr.mxu0 0.0
        %1884 = vmatpush1.msra.mxu0 %v1812
        %1885 = vmatprep.subr.mxu0 0.0
        %1886 = vmatpush1.msra.mxu0 0.0
        %1887 = vmatprep.subr.mxu0 0.0
        %1888 = vmatpush1.msra.mxu0 0.0
        %1889 = vmatprep.subr.mxu0 0.0
        %1890 = vmatpush1.msra.mxu0 0.0
        %1891 = vmatprep.subr.mxu0 0.0
        %1892 = vmatpush1.msra.mxu0 0.0
        %1893 = vmatprep.subr.mxu0 0.0
        %1894 = vmatpush1.msra.mxu0 0.0
        %1895 = vmatprep.subr.mxu0 0.0
        %1896 = vmatpush1.msra.mxu0 0.0
        %1897 = vmatprep.subr.mxu0 0.0
        %1898 = vmatpush1.msra.mxu0 0.0
        %1899 = vmatprep.subr.mxu0 0.0
        %1900 = vmatpush1.msra.mxu0 0.0
        %1901 = vmatprep.subr.mxu0 0.0
        %1902 = vmatpush1.msra.mxu0 0.0
        %1903 = vmatprep.subr.mxu0 0.0
        %1904 = vmatpush1.msra.mxu0 0.0
        %1905 = vmatprep.subr.mxu0 0.0
        %1906 = vmatpush1.msra.mxu0 0.0
        %1907 = vmatprep.subr.mxu0 0.0
        %1908 = vmatpush1.msra.mxu0 0.0
        %1909 = vmatprep.subr.mxu0 0.0
        %1910 = vmatpush1.msra.mxu0 0.0
        %1911 = vmatprep.subr.mxu0 0.0
        %1912 = vmatpush1.msra.mxu0 0.0
        %1913 = vmatprep.subr.mxu0 0.0
        %1914 = vmatpush1.msra.mxu0 0.0
        %1915 = vmatprep.subr.mxu0 0.0
        %1916 = vmatpush1.msra.mxu0 0.0
        %1917 = vmatprep.subr.mxu0 0.0
        %1918 = vmatpush1.msra.mxu0 0.0
        %1919 = vmatprep.subr.mxu0 0.0
        %1920 = vmatpush1.msra.mxu0 0.0
        %1921 = vmatprep.subr.mxu0 0.0
        %1922 = vmatpush1.msra.mxu0 0.0
        %1923 = vmatprep.subr.mxu0 0.0
        %1924 = vmatpush1.msra.mxu0 0.0
        %1925 = vmatprep.subr.mxu0 0.0
        %1926 = vmatpush1.msra.mxu0 0.0
        %1927 = vmatprep.subr.mxu0 0.0
        %1928 = vmatpush1.msra.mxu0 0.0
        %1929 = vmatprep.subr.mxu0 0.0
        %1930 = vmatpush1.msra.mxu0 0.0
        %1931 = vmatprep.subr.mxu0 0.0
        %1932 = vmatpush1.msra.mxu0 0.0
        %1933 = vmatprep.mubr.f32.mxu0 0.0
        %1934 = vmatmul.mubr.f32.gmra.mrb[0].mxu0 %v1822
        %v1935 = vpop.f32.mrb[0].mxu0
        %v1936 = vadd.f32 %v1818, %v1935
        %v1937 = vpop.f32.mrb[0].mxu0
        %1938 = vmatprep.mubr.f32.mxu0 0.0
        %1939 = vmatmul.mubr.f32.gmra.mrb[0].mxu0 %v1825
        %v1940 = vpop.f32.mrb[0].mxu0
        %v1941 = vadd.f32 %v1818, %v1940
        %v1942 = vpop.f32.mrb[0].mxu0
        %1943 = vmatprep.mubr.f32.mxu0 0.0
        %1944 = vmatmul.mubr.f32.gmra.mrb[0].mxu0 %v1828
        %v1945 = vpop.f32.mrb[0].mxu0
        %v1946 = vadd.f32 %v1818, %v1945
        %v1947 = vpop.f32.mrb[0].mxu0
        %1948 = vmatprep.mubr.f32.mxu0 0.0
        %1949 = vmatmul.mubr.f32.gmra.mrb[0].mxu0 %v1831
        %v1950 = vpop.f32.mrb[0].mxu0
        %v1951 = vadd.f32 %v1818, %v1950
        %v1952 = vpop.f32.mrb[0].mxu0
        %1953 = vmatprep.mubr.f32.mxu0 0.0
        %1954 = vmatmul.mubr.f32.gmra.mrb[0].mxu0 %v1834
        %v1955 = vpop.f32.mrb[0].mxu0
        %v1956 = vadd.f32 %v1818, %v1955
        %v1957 = vpop.f32.mrb[0].mxu0
        %1958 = vmatprep.mubr.f32.mxu0 0.0
        %1959 = vmatmul.mubr.f32.gmra.mrb[0].mxu0 %v1837
        %v1960 = vpop.f32.mrb[0].mxu0
        %v1961 = vadd.f32 %v1818, %v1960
        %v1962 = vpop.f32.mrb[0].mxu0
        %1963 = vmatprep.mubr.f32.mxu0 0.0
        %1964 = vmatmul.mubr.f32.gmra.mrb[0].mxu0 %v1840
        %v1965 = vpop.f32.mrb[0].mxu0
        %v1966 = vadd.f32 %v1818, %v1965
        %v1967 = vpop.f32.mrb[0].mxu0
        %1968 = vmatprep.mubr.f32.mxu0 0.0
        %1969 = vmatmul.mubr.f32.gmra.mrb[0].mxu0 %v1843
        %v1970 = vpop.f32.mrb[0].mxu0
        %v1971 = vadd.f32 %v1818, %v1970
        %v1972 = vpop.f32.mrb[0].mxu0
        %1973 = vmatprep.mubr.f32.mxu0 0.0
        %1974 = vmatmul.mubr.f32.gmra.mrb[0].mxu0 %v1846
        %v1975 = vpop.f32.mrb[0].mxu0
        %v1976 = vadd.f32 %v1818, %v1975
        %v1977 = vpop.f32.mrb[0].mxu0
        %1978 = vmatprep.mubr.f32.mxu0 0.0
        %1979 = vmatmul.mubr.f32.gmra.mrb[0].mxu0 %v1849
        %v1980 = vpop.f32.mrb[0].mxu0
        %v1981 = vadd.f32 %v1818, %v1980
        %v1982 = vpop.f32.mrb[0].mxu0
        %1983 = vmatprep.mubr.f32.mxu0 0.0
        %1984 = vmatmul.mubr.f32.gmra.mrb[0].mxu0 %v1852
        %v1985 = vpop.f32.mrb[0].mxu0
        %v1986 = vadd.f32 %v1818, %v1985
        %v1987 = vpop.f32.mrb[0].mxu0
        %1988 = vmatprep.mubr.f32.mxu0 0.0
        %1989 = vmatmul.mubr.f32.gmra.mrb[0].mxu0 %v1855
        %v1990 = vpop.f32.mrb[0].mxu0
        %v1991 = vadd.f32 %v1818, %v1990
        %v1992 = vpop.f32.mrb[0].mxu0
        %1993 = vmatprep.mubr.f32.mxu0 0.0
        %1994 = vmatmul.mubr.f32.gmra.mrb[0].mxu0 %v1858
        %v1995 = vpop.f32.mrb[0].mxu0
        %v1996 = vadd.f32 %v1818, %v1995
        %v1997 = vpop.f32.mrb[0].mxu0
        %1998 = vmatprep.mubr.f32.mxu0 0.0
        %1999 = vmatmul.mubr.f32.gmra.mrb[0].mxu0 %v1861
        %v2000 = vpop.f32.mrb[0].mxu0
        %v2001 = vadd.f32 %v1818, %v2000
        %v2002 = vpop.f32.mrb[0].mxu0
        %2003 = vmatprep.mubr.f32.mxu0 0.0
        %2004 = vmatmul.mubr.f32.gmra.mrb[0].mxu0 %v1864
        %v2005 = vpop.f32.mrb[0].mxu0
        %v2006 = vadd.f32 %v1818, %v2005
        %v2007 = vpop.f32.mrb[0].mxu0
        %2008 = vmatprep.mubr.f32.mxu0 0.0
        %2009 = vmatmul.mubr.f32.gmra.mrb[0].mxu0 %v1867
        %v2010 = vpop.f32.mrb[0].mxu0
        %v2011 = vadd.f32 %v1818, %v2010
        %v2012 = vpop.f32.mrb[0].mxu0
        %2013 = vdwg.mxu0
        %v2014 = vld [vmem:[%s10] sm:$0xff]
        %v2015 = vld [vmem:[%s10 + $0x8] sm:$0xff]
        %v2016 = vld [vmem:[%s10 + $0x10] sm:$0xff]
        %v2017 = vld [vmem:[%s10 + $0x18] sm:$0xff]
        %v2018 = vld [vmem:[%s10 + $0x20] sm:$0xff]
        %v2019 = vld [vmem:[%s10 + $0x28] sm:$0xff]
        %v2020 = vld [vmem:[%s10 + $0x30] sm:$0xff]
        %v2021 = vld [vmem:[%s10 + $0x38] sm:$0xff]
        %v2022 = vld [vmem:[%s11] sm:$0x1]
        %v2024 = vlaneseq
        %v2025 = vshrl.u32 %v2024, 7
        %v2026 = vsub.s32 0, %v2025
        %v2027 = vrot.slane %v2022, %v2026
        %2029 = vmatprep.subr.mxu0 0.0
        %2030 = vmatpush1.msra.mxu0 %v2014
        %2031 = vmatprep.subr.mxu0 0.0
        %2032 = vmatpush1.msra.mxu0 %v2015
        %2033 = vmatprep.subr.mxu0 0.0
        %2034 = vmatpush1.msra.mxu0 %v2016
        %2035 = vmatprep.subr.mxu0 0.0
        %2036 = vmatpush1.msra.mxu0 %v2017
        %2037 = vmatprep.subr.mxu0 0.0
        %2038 = vmatpush1.msra.mxu0 %v2018
        %2039 = vmatprep.subr.mxu0 0.0
        %2040 = vmatpush1.msra.mxu0 %v2019
        %2041 = vmatprep.subr.mxu0 0.0
        %2042 = vmatpush1.msra.mxu0 %v2020
        %2043 = vmatprep.subr.mxu0 0.0
        %2044 = vmatpush1.msra.mxu0 %v2021
        %2045 = vmatprep.subr.mxu0 0.0
        %2046 = vmatpush1.msra.mxu0 0.0
        %2047 = vmatprep.subr.mxu0 0.0
        %2048 = vmatpush1.msra.mxu0 0.0
        %2049 = vmatprep.subr.mxu0 0.0
        %2050 = vmatpush1.msra.mxu0 0.0
        %2051 = vmatprep.subr.mxu0 0.0
        %2052 = vmatpush1.msra.mxu0 0.0
        %2053 = vmatprep.subr.mxu0 0.0
        %2054 = vmatpush1.msra.mxu0 0.0
        %2055 = vmatprep.subr.mxu0 0.0
        %2056 = vmatpush1.msra.mxu0 0.0
        %2057 = vmatprep.subr.mxu0 0.0
        %2058 = vmatpush1.msra.mxu0 0.0
        %2059 = vmatprep.subr.mxu0 0.0
        %2060 = vmatpush1.msra.mxu0 0.0
        %2061 = vmatprep.subr.mxu0 0.0
        %2062 = vmatpush1.msra.mxu0 0.0
        %2063 = vmatprep.subr.mxu0 0.0
        %2064 = vmatpush1.msra.mxu0 0.0
        %2065 = vmatprep.subr.mxu0 0.0
        %2066 = vmatpush1.msra.mxu0 0.0
        %2067 = vmatprep.subr.mxu0 0.0
        %2068 = vmatpush1.msra.mxu0 0.0
        %2069 = vmatprep.subr.mxu0 0.0
        %2070 = vmatpush1.msra.mxu0 0.0
        %2071 = vmatprep.subr.mxu0 0.0
        %2072 = vmatpush1.msra.mxu0 0.0
        %2073 = vmatprep.subr.mxu0 0.0
        %2074 = vmatpush1.msra.mxu0 0.0
        %2075 = vmatprep.subr.mxu0 0.0
        %2076 = vmatpush1.msra.mxu0 0.0
        %2077 = vmatprep.subr.mxu0 0.0
        %2078 = vmatpush1.msra.mxu0 0.0
        %2079 = vmatprep.subr.mxu0 0.0
        %2080 = vmatpush1.msra.mxu0 0.0
        %2081 = vmatprep.subr.mxu0 0.0
        %2082 = vmatpush1.msra.mxu0 0.0
        %2083 = vmatprep.subr.mxu0 0.0
        %2084 = vmatpush1.msra.mxu0 0.0
        %2085 = vmatprep.subr.mxu0 0.0
        %2086 = vmatpush1.msra.mxu0 0.0
        %2087 = vmatprep.subr.mxu0 0.0
        %2088 = vmatpush1.msra.mxu0 0.0
        %2089 = vmatprep.subr.mxu0 0.0
        %2090 = vmatpush1.msra.mxu0 0.0
        %2091 = vmatprep.subr.mxu0 0.0
        %2092 = vmatpush1.msra.mxu0 0.0
        %2093 = vmatprep.mubr.f32.mxu0 0.0
        %2094 = vmatmul.mubr.f32.gmra.mrb[0].mxu0 %v1822
        %v2095 = vpop.f32.mrb[0].mxu0
        %v2096 = vadd.f32 %v2027, %v2095
        %v2097 = vpop.f32.mrb[0].mxu0
        %2098 = vmatprep.mubr.f32.mxu0 0.0
        %2099 = vmatmul.mubr.f32.gmra.mrb[0].mxu0 %v1825
        %v2100 = vpop.f32.mrb[0].mxu0
        %v2101 = vadd.f32 %v2027, %v2100
        %v2102 = vpop.f32.mrb[0].mxu0
        %2103 = vmatprep.mubr.f32.mxu0 0.0
        %2104 = vmatmul.mubr.f32.gmra.mrb[0].mxu0 %v1828
        %v2105 = vpop.f32.mrb[0].mxu0
        %v2106 = vadd.f32 %v2027, %v2105
        %v2107 = vpop.f32.mrb[0].mxu0
        %2108 = vmatprep.mubr.f32.mxu0 0.0
        %2109 = vmatmul.mubr.f32.gmra.mrb[0].mxu0 %v1831
        %v2110 = vpop.f32.mrb[0].mxu0
        %v2111 = vadd.f32 %v2027, %v2110
        %v2112 = vpop.f32.mrb[0].mxu0
        %2113 = vmatprep.mubr.f32.mxu0 0.0
        %2114 = vmatmul.mubr.f32.gmra.mrb[0].mxu0 %v1834
        %v2115 = vpop.f32.mrb[0].mxu0
        %v2116 = vadd.f32 %v2027, %v2115
        %v2117 = vpop.f32.mrb[0].mxu0
        %2118 = vmatprep.mubr.f32.mxu0 0.0
        %2119 = vmatmul.mubr.f32.gmra.mrb[0].mxu0 %v1837
        %v2120 = vpop.f32.mrb[0].mxu0
        %v2121 = vadd.f32 %v2027, %v2120
        %v2122 = vpop.f32.mrb[0].mxu0
        %2123 = vmatprep.mubr.f32.mxu0 0.0
        %2124 = vmatmul.mubr.f32.gmra.mrb[0].mxu0 %v1840
        %v2125 = vpop.f32.mrb[0].mxu0
        %v2126 = vadd.f32 %v2027, %v2125
        %v2127 = vpop.f32.mrb[0].mxu0
        %2128 = vmatprep.mubr.f32.mxu0 0.0
        %2129 = vmatmul.mubr.f32.gmra.mrb[0].mxu0 %v1843
        %v2130 = vpop.f32.mrb[0].mxu0
        %v2131 = vadd.f32 %v2027, %v2130
        %v2132 = vpop.f32.mrb[0].mxu0
        %2133 = vmatprep.mubr.f32.mxu0 0.0
        %2134 = vmatmul.mubr.f32.gmra.mrb[0].mxu0 %v1846
        %v2135 = vpop.f32.mrb[0].mxu0
        %v2136 = vadd.f32 %v2027, %v2135
        %v2137 = vpop.f32.mrb[0].mxu0
        %2138 = vmatprep.mubr.f32.mxu0 0.0
        %2139 = vmatmul.mubr.f32.gmra.mrb[0].mxu0 %v1849
        %v2140 = vpop.f32.mrb[0].mxu0
        %v2141 = vadd.f32 %v2027, %v2140
        %v2142 = vpop.f32.mrb[0].mxu0
        %2143 = vmatprep.mubr.f32.mxu0 0.0
        %2144 = vmatmul.mubr.f32.gmra.mrb[0].mxu0 %v1852
        %v2145 = vpop.f32.mrb[0].mxu0
        %v2146 = vadd.f32 %v2027, %v2145
        %v2147 = vpop.f32.mrb[0].mxu0
        %2148 = vmatprep.mubr.f32.mxu0 0.0
        %2149 = vmatmul.mubr.f32.gmra.mrb[0].mxu0 %v1855
        %v2150 = vpop.f32.mrb[0].mxu0
        %v2151 = vadd.f32 %v2027, %v2150
        %v2152 = vpop.f32.mrb[0].mxu0
        %2153 = vmatprep.mubr.f32.mxu0 0.0
        %2154 = vmatmul.mubr.f32.gmra.mrb[0].mxu0 %v1858
        %v2155 = vpop.f32.mrb[0].mxu0
        %v2156 = vadd.f32 %v2027, %v2155
        %v2157 = vpop.f32.mrb[0].mxu0
        %2158 = vmatprep.mubr.f32.mxu0 0.0
        %2159 = vmatmul.mubr.f32.gmra.mrb[0].mxu0 %v1861
        %v2160 = vpop.f32.mrb[0].mxu0
        %v2161 = vadd.f32 %v2027, %v2160
        %v2162 = vpop.f32.mrb[0].mxu0
        %2163 = vmatprep.mubr.f32.mxu0 0.0
        %2164 = vmatmul.mubr.f32.gmra.mrb[0].mxu0 %v1864
        %v2165 = vpop.f32.mrb[0].mxu0
        %v2166 = vadd.f32 %v2027, %v2165
        %v2167 = vpop.f32.mrb[0].mxu0
        %2168 = vmatprep.mubr.f32.mxu0 0.0
        %2169 = vmatmul.mubr.f32.gmra.mrb[0].mxu0 %v1867
        %v2170 = vpop.f32.mrb[0].mxu0
        %v2171 = vadd.f32 %v2027, %v2170
        %v2172 = vpop.f32.mrb[0].mxu0
        %2173 = vdwg.mxu0
        %v2174 = vld [vmem:[%s768] sm:$0xff]
        %v2175 = vld [vmem:[%s768 + $0x8] sm:$0xff]
        %v2176 = vld [vmem:[%s768 + $0x10] sm:$0xff]
        %v2177 = vld [vmem:[%s768 + $0x18] sm:$0xff]
        %v2178 = vld [vmem:[%s768 + $0x20] sm:$0xff]
        %v2179 = vld [vmem:[%s768 + $0x28] sm:$0xff]
        %v2180 = vld [vmem:[%s768 + $0x30] sm:$0xff]
        %v2181 = vld [vmem:[%s768 + $0x38] sm:$0xff]
        %v2182 = vld [vmem:[%s768 + $0x40] sm:$0xff]
        %v2183 = vld [vmem:[%s768 + $0x48] sm:$0xff]
        %v2184 = vld [vmem:[%s768 + $0x50] sm:$0xff]
        %v2185 = vld [vmem:[%s768 + $0x58] sm:$0xff]
        %v2186 = vld [vmem:[%s768 + $0x60] sm:$0xff]
        %v2187 = vld [vmem:[%s768 + $0x68] sm:$0xff]
        %v2188 = vld [vmem:[%s768 + $0x70] sm:$0xff]
        %v2189 = vld [vmem:[%s768 + $0x78] sm:$0xff]
        %v2190 = vmul.f32 %v2096, 0.5
        %v2191 = vmul.f32 %v2101, 0.5
        %v2192 = vmul.f32 %v2106, 0.5
        %v2193 = vmul.f32 %v2111, 0.5
        %v2194 = vmul.f32 %v2116, 0.5
        %v2195 = vmul.f32 %v2121, 0.5
        %v2196 = vmul.f32 %v2126, 0.5
        %v2197 = vmul.f32 %v2131, 0.5
        %v2198 = vmul.f32 %v2136, 0.5
        %v2199 = vmul.f32 %v2141, 0.5
        %v2200 = vmul.f32 %v2146, 0.5
        %v2201 = vmul.f32 %v2151, 0.5
        %v2202 = vmul.f32 %v2156, 0.5
        %v2203 = vmul.f32 %v2161, 0.5
        %v2204 = vmul.f32 %v2166, 0.5
        %v2205 = vmul.f32 %v2171, 0.5
        %v2206 = vmul.f32 %v2190, 1.442695
        %v2207 = vpow.pop %v2206
        %v2208 = vmul.f32 %v2191, 1.442695
        %v2209 = vpow.pop %v2208
        %v2210 = vmul.f32 %v2192, 1.442695
        %v2211 = vpow.pop %v2210
        %v2212 = vmul.f32 %v2193, 1.442695
        %v2213 = vpow.pop %v2212
        %v2214 = vmul.f32 %v2194, 1.442695
        %v2215 = vpow.pop %v2214
        %v2216 = vmul.f32 %v2195, 1.442695
        %v2217 = vpow.pop %v2216
        %v2218 = vmul.f32 %v2196, 1.442695
        %v2219 = vpow.pop %v2218
        %v2220 = vmul.f32 %v2197, 1.442695
        %v2221 = vpow.pop %v2220
        %v2222 = vmul.f32 %v2198, 1.442695
        %v2223 = vpow.pop %v2222
        %v2224 = vmul.f32 %v2199, 1.442695
        %v2225 = vpow.pop %v2224
        %v2226 = vmul.f32 %v2200, 1.442695
        %v2227 = vpow.pop %v2226
        %v2228 = vmul.f32 %v2201, 1.442695
        %v2229 = vpow.pop %v2228
        %v2230 = vmul.f32 %v2202, 1.442695
        %v2231 = vpow.pop %v2230
        %v2232 = vmul.f32 %v2203, 1.442695
        %v2233 = vpow.pop %v2232
        %v2234 = vmul.f32 %v2204, 1.442695
        %v2235 = vpow.pop %v2234
        %v2236 = vmul.f32 %v2205, 1.442695
        %v2237 = vpow.pop %v2236
        %v2238 = vmul.f32 %v2174, %v2207
        %v2239 = vmul.f32 %v2175, %v2209
        %v2240 = vmul.f32 %v2176, %v2211
        %v2241 = vmul.f32 %v2177, %v2213
        %v2242 = vmul.f32 %v2178, %v2215
        %v2243 = vmul.f32 %v2179, %v2217
        %v2244 = vmul.f32 %v2180, %v2219
        %v2245 = vmul.f32 %v2181, %v2221
        %v2246 = vmul.f32 %v2182, %v2223
        %v2247 = vmul.f32 %v2183, %v2225
        %v2248 = vmul.f32 %v2184, %v2227
        %v2249 = vmul.f32 %v2185, %v2229
        %v2250 = vmul.f32 %v2186, %v2231
        %v2251 = vmul.f32 %v2187, %v2233
        %v2252 = vmul.f32 %v2188, %v2235
        %v2253 = vmul.f32 %v2189, %v2237
        %v2254 = vadd.f32 %v1936, %v2238
        %v2255 = vadd.f32 %v1941, %v2239
        %v2256 = vadd.f32 %v1946, %v2240
        %v2257 = vadd.f32 %v1951, %v2241
        %v2258 = vadd.f32 %v1956, %v2242
        %v2259 = vadd.f32 %v1961, %v2243
        %v2260 = vadd.f32 %v1966, %v2244
        %v2261 = vadd.f32 %v1971, %v2245
        %v2262 = vadd.f32 %v1976, %v2246
        %v2263 = vadd.f32 %v1981, %v2247
        %v2264 = vadd.f32 %v1986, %v2248
        %v2265 = vadd.f32 %v1991, %v2249
        %v2266 = vadd.f32 %v1996, %v2250
        %v2267 = vadd.f32 %v2001, %v2251
        %v2268 = vadd.f32 %v2006, %v2252
        %v2269 = vadd.f32 %v2011, %v2253
        %v2270 = vld [vmem:[%s12] sm:$0xff]
        %v2271 = vld [vmem:[%s12 + $0x8] sm:$0xff]
        %v2272 = vld [vmem:[%s12 + $0x10] sm:$0xf]
        %v2273 = vld [vmem:[%s13] sm:$0x1]
        %v2275 = vlaneseq
        %v2276 = vshrl.u32 %v2275, 7
        %v2277 = vsub.s32 0, %v2276
        %v2278 = vrot.slane %v2273, %v2277
        %vm2280 = vcmask 162816
        %v2282 = vsel %vm2280, %v2254, 0
        %v2285 = vsel %vm2280, %v2255, 0
        %v2288 = vsel %vm2280, %v2256, 0
        %v2291 = vsel %vm2280, %v2257, 0
        %v2294 = vsel %vm2280, %v2258, 0
        %v2297 = vsel %vm2280, %v2259, 0
        %v2300 = vsel %vm2280, %v2260, 0
        %v2303 = vsel %vm2280, %v2261, 0
        %v2306 = vsel %vm2280, %v2262, 0
        %v2309 = vsel %vm2280, %v2263, 0
        %v2312 = vsel %vm2280, %v2264, 0
        %v2315 = vsel %vm2280, %v2265, 0
        %v2318 = vsel %vm2280, %v2266, 0
        %v2321 = vsel %vm2280, %v2267, 0
        %v2324 = vsel %vm2280, %v2268, 0
        %v2327 = vsel %vm2280, %v2269, 0
        %vm2329 = vcmask 1043456
        %v2331 = vsel %vm2329, %v2272, 0
        %2333 = vmatprep.subr.mxu0 0.0
        %2334 = vmatpush1.msra.mxu0 %v2270
        %2335 = vmatprep.subr.mxu0 0.0
        %2336 = vmatpush1.msra.mxu0 %v2271
        %2337 = vmatprep.subr.mxu0 0.0
        %2338 = vmatpush1.msra.mxu0 %v2331
        %2339 = vmatprep.subr.mxu0 0.0
        %2340 = vmatpush1.msra.mxu0 0.0
        %2341 = vmatprep.subr.mxu0 0.0
        %2342 = vmatpush1.msra.mxu0 0.0
        %2343 = vmatprep.subr.mxu0 0.0
        %2344 = vmatpush1.msra.mxu0 0.0
        %2345 = vmatprep.subr.mxu0 0.0
        %2346 = vmatpush1.msra.mxu0 0.0
        %2347 = vmatprep.subr.mxu0 0.0
        %2348 = vmatpush1.msra.mxu0 0.0
        %2349 = vmatprep.subr.mxu0 0.0
        %2350 = vmatpush1.msra.mxu0 0.0
        %2351 = vmatprep.subr.mxu0 0.0
        %2352 = vmatpush1.msra.mxu0 0.0
        %2353 = vmatprep.subr.mxu0 0.0
        %2354 = vmatpush1.msra.mxu0 0.0
        %2355 = vmatprep.subr.mxu0 0.0
        %2356 = vmatpush1.msra.mxu0 0.0
        %2357 = vmatprep.subr.mxu0 0.0
        %2358 = vmatpush1.msra.mxu0 0.0
        %2359 = vmatprep.subr.mxu0 0.0
        %2360 = vmatpush1.msra.mxu0 0.0
        %2361 = vmatprep.subr.mxu0 0.0
        %2362 = vmatpush1.msra.mxu0 0.0
        %2363 = vmatprep.subr.mxu0 0.0
        %2364 = vmatpush1.msra.mxu0 0.0
        %2365 = vmatprep.subr.mxu0 0.0
        %2366 = vmatpush1.msra.mxu0 0.0
        %2367 = vmatprep.subr.mxu0 0.0
        %2368 = vmatpush1.msra.mxu0 0.0
        %2369 = vmatprep.subr.mxu0 0.0
        %2370 = vmatpush1.msra.mxu0 0.0
        %2371 = vmatprep.subr.mxu0 0.0
        %2372 = vmatpush1.msra.mxu0 0.0
        %2373 = vmatprep.subr.mxu0 0.0
        %2374 = vmatpush1.msra.mxu0 0.0
        %2375 = vmatprep.subr.mxu0 0.0
        %2376 = vmatpush1.msra.mxu0 0.0
        %2377 = vmatprep.subr.mxu0 0.0
        %2378 = vmatpush1.msra.mxu0 0.0
        %2379 = vmatprep.subr.mxu0 0.0
        %2380 = vmatpush1.msra.mxu0 0.0
        %2381 = vmatprep.subr.mxu0 0.0
        %2382 = vmatpush1.msra.mxu0 0.0
        %2383 = vmatprep.subr.mxu0 0.0
        %2384 = vmatpush1.msra.mxu0 0.0
        %2385 = vmatprep.subr.mxu0 0.0
        %2386 = vmatpush1.msra.mxu0 0.0
        %2387 = vmatprep.subr.mxu0 0.0
        %2388 = vmatpush1.msra.mxu0 0.0
        %2389 = vmatprep.subr.mxu0 0.0
        %2390 = vmatpush1.msra.mxu0 0.0
        %2391 = vmatprep.subr.mxu0 0.0
        %2392 = vmatpush1.msra.mxu0 0.0
        %2393 = vmatprep.subr.mxu0 0.0
        %2394 = vmatpush1.msra.mxu0 0.0
        %2395 = vmatprep.subr.mxu0 0.0
        %2396 = vmatpush1.msra.mxu0 0.0
        %2397 = vmatprep.mubr.f32.mxu0 0.0
        %2398 = vmatmul.mubr.f32.gmra.mrb[0].mxu0 %v2282
        %v2399 = vpop.f32.mrb[0].mxu0
        %v2400 = vadd.f32 %v2278, %v2399
        %v2401 = vpop.f32.mrb[0].mxu0
        %2402 = vmatprep.mubr.f32.mxu0 0.0
        %2403 = vmatmul.mubr.f32.gmra.mrb[0].mxu0 %v2285
        %v2404 = vpop.f32.mrb[0].mxu0
        %v2405 = vadd.f32 %v2278, %v2404
        %v2406 = vpop.f32.mrb[0].mxu0
        %2407 = vmatprep.mubr.f32.mxu0 0.0
        %2408 = vmatmul.mubr.f32.gmra.mrb[0].mxu0 %v2288
        %v2409 = vpop.f32.mrb[0].mxu0
        %v2410 = vadd.f32 %v2278, %v2409
        %v2411 = vpop.f32.mrb[0].mxu0
        %2412 = vmatprep.mubr.f32.mxu0 0.0
        %2413 = vmatmul.mubr.f32.gmra.mrb[0].mxu0 %v2291
        %v2414 = vpop.f32.mrb[0].mxu0
        %v2415 = vadd.f32 %v2278, %v2414
        %v2416 = vpop.f32.mrb[0].mxu0
        %2417 = vmatprep.mubr.f32.mxu0 0.0
        %2418 = vmatmul.mubr.f32.gmra.mrb[0].mxu0 %v2294
        %v2419 = vpop.f32.mrb[0].mxu0
        %v2420 = vadd.f32 %v2278, %v2419
        %v2421 = vpop.f32.mrb[0].mxu0
        %2422 = vmatprep.mubr.f32.mxu0 0.0
        %2423 = vmatmul.mubr.f32.gmra.mrb[0].mxu0 %v2297
        %v2424 = vpop.f32.mrb[0].mxu0
        %v2425 = vadd.f32 %v2278, %v2424
        %v2426 = vpop.f32.mrb[0].mxu0
        %2427 = vmatprep.mubr.f32.mxu0 0.0
        %2428 = vmatmul.mubr.f32.gmra.mrb[0].mxu0 %v2300
        %v2429 = vpop.f32.mrb[0].mxu0
        %v2430 = vadd.f32 %v2278, %v2429
        %v2431 = vpop.f32.mrb[0].mxu0
        %2432 = vmatprep.mubr.f32.mxu0 0.0
        %2433 = vmatmul.mubr.f32.gmra.mrb[0].mxu0 %v2303
        %v2434 = vpop.f32.mrb[0].mxu0
        %v2435 = vadd.f32 %v2278, %v2434
        %v2436 = vpop.f32.mrb[0].mxu0
        %2437 = vmatprep.mubr.f32.mxu0 0.0
        %2438 = vmatmul.mubr.f32.gmra.mrb[0].mxu0 %v2306
        %v2439 = vpop.f32.mrb[0].mxu0
        %v2440 = vadd.f32 %v2278, %v2439
        %v2441 = vpop.f32.mrb[0].mxu0
        %2442 = vmatprep.mubr.f32.mxu0 0.0
        %2443 = vmatmul.mubr.f32.gmra.mrb[0].mxu0 %v2309
        %v2444 = vpop.f32.mrb[0].mxu0
        %v2445 = vadd.f32 %v2278, %v2444
        %v2446 = vpop.f32.mrb[0].mxu0
        %2447 = vmatprep.mubr.f32.mxu0 0.0
        %2448 = vmatmul.mubr.f32.gmra.mrb[0].mxu0 %v2312
        %v2449 = vpop.f32.mrb[0].mxu0
        %v2450 = vadd.f32 %v2278, %v2449
        %v2451 = vpop.f32.mrb[0].mxu0
        %2452 = vmatprep.mubr.f32.mxu0 0.0
        %2453 = vmatmul.mubr.f32.gmra.mrb[0].mxu0 %v2315
        %v2454 = vpop.f32.mrb[0].mxu0
        %v2455 = vadd.f32 %v2278, %v2454
        %v2456 = vpop.f32.mrb[0].mxu0
        %2457 = vmatprep.mubr.f32.mxu0 0.0
        %2458 = vmatmul.mubr.f32.gmra.mrb[0].mxu0 %v2318
        %v2459 = vpop.f32.mrb[0].mxu0
        %v2460 = vadd.f32 %v2278, %v2459
        %v2461 = vpop.f32.mrb[0].mxu0
        %2462 = vmatprep.mubr.f32.mxu0 0.0
        %2463 = vmatmul.mubr.f32.gmra.mrb[0].mxu0 %v2321
        %v2464 = vpop.f32.mrb[0].mxu0
        %v2465 = vadd.f32 %v2278, %v2464
        %v2466 = vpop.f32.mrb[0].mxu0
        %2467 = vmatprep.mubr.f32.mxu0 0.0
        %2468 = vmatmul.mubr.f32.gmra.mrb[0].mxu0 %v2324
        %v2469 = vpop.f32.mrb[0].mxu0
        %v2470 = vadd.f32 %v2278, %v2469
        %v2471 = vpop.f32.mrb[0].mxu0
        %2472 = vmatprep.mubr.f32.mxu0 0.0
        %2473 = vmatmul.mubr.f32.gmra.mrb[0].mxu0 %v2327
        %v2474 = vpop.f32.mrb[0].mxu0
        %v2475 = vadd.f32 %v2278, %v2474
        %v2476 = vpop.f32.mrb[0].mxu0
        %2477 = vdwg.mxu0
        %v2478 = vmax.f32 %v2400, 0.0
        %v2479 = vmax.f32 %v2405, 0.0
        %v2480 = vmax.f32 %v2410, 0.0
        %v2481 = vmax.f32 %v2415, 0.0
        %v2482 = vmax.f32 %v2420, 0.0
        %v2483 = vmax.f32 %v2425, 0.0
        %v2484 = vmax.f32 %v2430, 0.0
        %v2485 = vmax.f32 %v2435, 0.0
        %v2486 = vmax.f32 %v2440, 0.0
        %v2487 = vmax.f32 %v2445, 0.0
        %v2488 = vmax.f32 %v2450, 0.0
        %v2489 = vmax.f32 %v2455, 0.0
        %v2490 = vmax.f32 %v2460, 0.0
        %v2491 = vmax.f32 %v2465, 0.0
        %v2492 = vmax.f32 %v2470, 0.0
        %v2493 = vmax.f32 %v2475, 0.0
        %v2494 = vld [vmem:[%s14] sm:$0xff]
        %v2495 = vld [vmem:[%s14 + $0x8] sm:$0xff]
        %v2496 = vld [vmem:[%s14 + $0x10] sm:$0xff]
        %v2497 = vld [vmem:[%s14 + $0x18] sm:$0xff]
        %v2498 = vld [vmem:[%s14 + $0x20] sm:$0xff]
        %v2499 = vld [vmem:[%s14 + $0x28] sm:$0xff]
        %v2500 = vld [vmem:[%s14 + $0x30] sm:$0xff]
        %v2501 = vld [vmem:[%s14 + $0x38] sm:$0xff]
        %v2502 = vld [vmem:[%s15] sm:$0x1]
        %v2504 = vlaneseq
        %v2505 = vshrl.u32 %v2504, 7
        %v2506 = vsub.s32 0, %v2505
        %v2507 = vrot.slane %v2502, %v2506
        %v2510 = vsel %vm1820, %v2478, 0
        %v2513 = vsel %vm1820, %v2479, 0
        %v2516 = vsel %vm1820, %v2480, 0
        %v2519 = vsel %vm1820, %v2481, 0
        %v2522 = vsel %vm1820, %v2482, 0
        %v2525 = vsel %vm1820, %v2483, 0
        %v2528 = vsel %vm1820, %v2484, 0
        %v2531 = vsel %vm1820, %v2485, 0
        %v2534 = vsel %vm1820, %v2486, 0
        %v2537 = vsel %vm1820, %v2487, 0
        %v2540 = vsel %vm1820, %v2488, 0
        %v2543 = vsel %vm1820, %v2489, 0
        %v2546 = vsel %vm1820, %v2490, 0
        %v2549 = vsel %vm1820, %v2491, 0
        %v2552 = vsel %vm1820, %v2492, 0
        %v2555 = vsel %vm1820, %v2493, 0
        %2557 = vmatprep.subr.mxu0 0.0
        %2558 = vmatpush1.msra.mxu0 %v2494
        %2559 = vmatprep.subr.mxu0 0.0
        %2560 = vmatpush1.msra.mxu0 %v2495
        %2561 = vmatprep.subr.mxu0 0.0
        %2562 = vmatpush1.msra.mxu0 %v2496
        %2563 = vmatprep.subr.mxu0 0.0
        %2564 = vmatpush1.msra.mxu0 %v2497
        %2565 = vmatprep.subr.mxu0 0.0
        %2566 = vmatpush1.msra.mxu0 %v2498
        %2567 = vmatprep.subr.mxu0 0.0
        %2568 = vmatpush1.msra.mxu0 %v2499
        %2569 = vmatprep.subr.mxu0 0.0
        %2570 = vmatpush1.msra.mxu0 %v2500
        %2571 = vmatprep.subr.mxu0 0.0
        %2572 = vmatpush1.msra.mxu0 %v2501
        %2573 = vmatprep.subr.mxu0 0.0
        %2574 = vmatpush1.msra.mxu0 0.0
        %2575 = vmatprep.subr.mxu0 0.0
        %2576 = vmatpush1.msra.mxu0 0.0
        %2577 = vmatprep.subr.mxu0 0.0
        %2578 = vmatpush1.msra.mxu0 0.0
        %2579 = vmatprep.subr.mxu0 0.0
        %2580 = vmatpush1.msra.mxu0 0.0
        %2581 = vmatprep.subr.mxu0 0.0
        %2582 = vmatpush1.msra.mxu0 0.0
        %2583 = vmatprep.subr.mxu0 0.0
        %2584 = vmatpush1.msra.mxu0 0.0
        %2585 = vmatprep.subr.mxu0 0.0
        %2586 = vmatpush1.msra.mxu0 0.0
        %2587 = vmatprep.subr.mxu0 0.0
        %2588 = vmatpush1.msra.mxu0 0.0
        %2589 = vmatprep.subr.mxu0 0.0
        %2590 = vmatpush1.msra.mxu0 0.0
        %2591 = vmatprep.subr.mxu0 0.0
        %2592 = vmatpush1.msra.mxu0 0.0
        %2593 = vmatprep.subr.mxu0 0.0
        %2594 = vmatpush1.msra.mxu0 0.0
        %2595 = vmatprep.subr.mxu0 0.0
        %2596 = vmatpush1.msra.mxu0 0.0
        %2597 = vmatprep.subr.mxu0 0.0
        %2598 = vmatpush1.msra.mxu0 0.0
        %2599 = vmatprep.subr.mxu0 0.0
        %2600 = vmatpush1.msra.mxu0 0.0
        %2601 = vmatprep.subr.mxu0 0.0
        %2602 = vmatpush1.msra.mxu0 0.0
        %2603 = vmatprep.subr.mxu0 0.0
        %2604 = vmatpush1.msra.mxu0 0.0
        %2605 = vmatprep.subr.mxu0 0.0
        %2606 = vmatpush1.msra.mxu0 0.0
        %2607 = vmatprep.subr.mxu0 0.0
        %2608 = vmatpush1.msra.mxu0 0.0
        %2609 = vmatprep.subr.mxu0 0.0
        %2610 = vmatpush1.msra.mxu0 0.0
        %2611 = vmatprep.subr.mxu0 0.0
        %2612 = vmatpush1.msra.mxu0 0.0
        %2613 = vmatprep.subr.mxu0 0.0
        %2614 = vmatpush1.msra.mxu0 0.0
        %2615 = vmatprep.subr.mxu0 0.0
        %2616 = vmatpush1.msra.mxu0 0.0
        %2617 = vmatprep.subr.mxu0 0.0
        %2618 = vmatpush1.msra.mxu0 0.0
        %2619 = vmatprep.subr.mxu0 0.0
        %2620 = vmatpush1.msra.mxu0 0.0
        %2621 = vmatprep.mubr.f32.mxu0 0.0
        %2622 = vmatmul.mubr.f32.gmra.mrb[0].mxu0 %v2510
        %v2623 = vpop.f32.mrb[0].mxu0
        %v2624 = vadd.f32 %v2507, %v2623
        %v2625 = vpop.f32.mrb[0].mxu0
        %2626 = vmatprep.mubr.f32.mxu0 0.0
        %2627 = vmatmul.mubr.f32.gmra.mrb[0].mxu0 %v2513
        %v2628 = vpop.f32.mrb[0].mxu0
        %v2629 = vadd.f32 %v2507, %v2628
        %v2630 = vpop.f32.mrb[0].mxu0
        %2631 = vmatprep.mubr.f32.mxu0 0.0
        %2632 = vmatmul.mubr.f32.gmra.mrb[0].mxu0 %v2516
        %v2633 = vpop.f32.mrb[0].mxu0
        %v2634 = vadd.f32 %v2507, %v2633
        %v2635 = vpop.f32.mrb[0].mxu0
        %2636 = vmatprep.mubr.f32.mxu0 0.0
        %2637 = vmatmul.mubr.f32.gmra.mrb[0].mxu0 %v2519
        %v2638 = vpop.f32.mrb[0].mxu0
        %v2639 = vadd.f32 %v2507, %v2638
        %v2640 = vpop.f32.mrb[0].mxu0
        %2641 = vmatprep.mubr.f32.mxu0 0.0
        %2642 = vmatmul.mubr.f32.gmra.mrb[0].mxu0 %v2522
        %v2643 = vpop.f32.mrb[0].mxu0
        %v2644 = vadd.f32 %v2507, %v2643
        %v2645 = vpop.f32.mrb[0].mxu0
        %2646 = vmatprep.mubr.f32.mxu0 0.0
        %2647 = vmatmul.mubr.f32.gmra.mrb[0].mxu0 %v2525
        %v2648 = vpop.f32.mrb[0].mxu0
        %v2649 = vadd.f32 %v2507, %v2648
        %v2650 = vpop.f32.mrb[0].mxu0
        %2651 = vmatprep.mubr.f32.mxu0 0.0
        %2652 = vmatmul.mubr.f32.gmra.mrb[0].mxu0 %v2528
        %v2653 = vpop.f32.mrb[0].mxu0
        %v2654 = vadd.f32 %v2507, %v2653
        %v2655 = vpop.f32.mrb[0].mxu0
        %2656 = vmatprep.mubr.f32.mxu0 0.0
        %2657 = vmatmul.mubr.f32.gmra.mrb[0].mxu0 %v2531
        %v2658 = vpop.f32.mrb[0].mxu0
        %v2659 = vadd.f32 %v2507, %v2658
        %v2660 = vpop.f32.mrb[0].mxu0
        %2661 = vmatprep.mubr.f32.mxu0 0.0
        %2662 = vmatmul.mubr.f32.gmra.mrb[0].mxu0 %v2534
        %v2663 = vpop.f32.mrb[0].mxu0
        %v2664 = vadd.f32 %v2507, %v2663
        %v2665 = vpop.f32.mrb[0].mxu0
        %2666 = vmatprep.mubr.f32.mxu0 0.0
        %2667 = vmatmul.mubr.f32.gmra.mrb[0].mxu0 %v2537
        %v2668 = vpop.f32.mrb[0].mxu0
        %v2669 = vadd.f32 %v2507, %v2668
        %v2670 = vpop.f32.mrb[0].mxu0
        %2671 = vmatprep.mubr.f32.mxu0 0.0
        %2672 = vmatmul.mubr.f32.gmra.mrb[0].mxu0 %v2540
        %v2673 = vpop.f32.mrb[0].mxu0
        %v2674 = vadd.f32 %v2507, %v2673
        %v2675 = vpop.f32.mrb[0].mxu0
        %2676 = vmatprep.mubr.f32.mxu0 0.0
        %2677 = vmatmul.mubr.f32.gmra.mrb[0].mxu0 %v2543
        %v2678 = vpop.f32.mrb[0].mxu0
        %v2679 = vadd.f32 %v2507, %v2678
        %v2680 = vpop.f32.mrb[0].mxu0
        %2681 = vmatprep.mubr.f32.mxu0 0.0
        %2682 = vmatmul.mubr.f32.gmra.mrb[0].mxu0 %v2546
        %v2683 = vpop.f32.mrb[0].mxu0
        %v2684 = vadd.f32 %v2507, %v2683
        %v2685 = vpop.f32.mrb[0].mxu0
        %2686 = vmatprep.mubr.f32.mxu0 0.0
        %2687 = vmatmul.mubr.f32.gmra.mrb[0].mxu0 %v2549
        %v2688 = vpop.f32.mrb[0].mxu0
        %v2689 = vadd.f32 %v2507, %v2688
        %v2690 = vpop.f32.mrb[0].mxu0
        %2691 = vmatprep.mubr.f32.mxu0 0.0
        %2692 = vmatmul.mubr.f32.gmra.mrb[0].mxu0 %v2552
        %v2693 = vpop.f32.mrb[0].mxu0
        %v2694 = vadd.f32 %v2507, %v2693
        %v2695 = vpop.f32.mrb[0].mxu0
        %2696 = vmatprep.mubr.f32.mxu0 0.0
        %2697 = vmatmul.mubr.f32.gmra.mrb[0].mxu0 %v2555
        %v2698 = vpop.f32.mrb[0].mxu0
        %v2699 = vadd.f32 %v2507, %v2698
        %v2700 = vpop.f32.mrb[0].mxu0
        %2701 = vdwg.mxu0
        %v2702 = vxor.u32 %v2624, 2147483648
        %v2703 = vxor.u32 %v2629, 2147483648
        %v2704 = vxor.u32 %v2634, 2147483648
        %v2705 = vxor.u32 %v2639, 2147483648
        %v2706 = vxor.u32 %v2644, 2147483648
        %v2707 = vxor.u32 %v2649, 2147483648
        %v2708 = vxor.u32 %v2654, 2147483648
        %v2709 = vxor.u32 %v2659, 2147483648
        %v2710 = vxor.u32 %v2664, 2147483648
        %v2711 = vxor.u32 %v2669, 2147483648
        %v2712 = vxor.u32 %v2674, 2147483648
        %v2713 = vxor.u32 %v2679, 2147483648
        %v2714 = vxor.u32 %v2684, 2147483648
        %v2715 = vxor.u32 %v2689, 2147483648
        %v2716 = vxor.u32 %v2694, 2147483648
        %v2717 = vxor.u32 %v2699, 2147483648
        %v2718 = vmul.f32 %v2702, 1.442695
        %v2719 = vpow.pop %v2718
        %v2720 = vmul.f32 %v2703, 1.442695
        %v2721 = vpow.pop %v2720
        %v2722 = vmul.f32 %v2704, 1.442695
        %v2723 = vpow.pop %v2722
        %v2724 = vmul.f32 %v2705, 1.442695
        %v2725 = vpow.pop %v2724
        %v2726 = vmul.f32 %v2706, 1.442695
        %v2727 = vpow.pop %v2726
        %v2728 = vmul.f32 %v2707, 1.442695
        %v2729 = vpow.pop %v2728
        %v2730 = vmul.f32 %v2708, 1.442695
        %v2731 = vpow.pop %v2730
        %v2732 = vmul.f32 %v2709, 1.442695
        %v2733 = vpow.pop %v2732
        %v2734 = vmul.f32 %v2710, 1.442695
        %v2735 = vpow.pop %v2734
        %v2736 = vmul.f32 %v2711, 1.442695
        %v2737 = vpow.pop %v2736
        %v2738 = vmul.f32 %v2712, 1.442695
        %v2739 = vpow.pop %v2738
        %v2740 = vmul.f32 %v2713, 1.442695
        %v2741 = vpow.pop %v2740
        %v2742 = vmul.f32 %v2714, 1.442695
        %v2743 = vpow.pop %v2742
        %v2744 = vmul.f32 %v2715, 1.442695
        %v2745 = vpow.pop %v2744
        %v2746 = vmul.f32 %v2716, 1.442695
        %v2747 = vpow.pop %v2746
        %v2748 = vmul.f32 %v2717, 1.442695
        %v2749 = vpow.pop %v2748
        %v2750 = vadd.f32 %v2719, 1.0
        %v2751 = vadd.f32 %v2721, 1.0
        %v2752 = vadd.f32 %v2723, 1.0
        %v2753 = vadd.f32 %v2725, 1.0
        %v2754 = vadd.f32 %v2727, 1.0
        %v2755 = vadd.f32 %v2729, 1.0
        %v2756 = vadd.f32 %v2731, 1.0
        %v2757 = vadd.f32 %v2733, 1.0
        %v2758 = vadd.f32 %v2735, 1.0
        %v2759 = vadd.f32 %v2737, 1.0
        %v2760 = vadd.f32 %v2739, 1.0
        %v2761 = vadd.f32 %v2741, 1.0
        %v2762 = vadd.f32 %v2743, 1.0
        %v2763 = vadd.f32 %v2745, 1.0
        %v2764 = vadd.f32 %v2747, 1.0
        %v2765 = vadd.f32 %v2749, 1.0
        %v2766 = vrcp.pop %v2750
        %v2767 = vmul.f32 1.0, %v2766
        %v2768 = vrcp.pop %v2751
        %v2769 = vmul.f32 1.0, %v2768
        %v2770 = vrcp.pop %v2752
        %v2771 = vmul.f32 1.0, %v2770
        %v2772 = vrcp.pop %v2753
        %v2773 = vmul.f32 1.0, %v2772
        %v2774 = vrcp.pop %v2754
        %v2775 = vmul.f32 1.0, %v2774
        %v2776 = vrcp.pop %v2755
        %v2777 = vmul.f32 1.0, %v2776
        %v2778 = vrcp.pop %v2756
        %v2779 = vmul.f32 1.0, %v2778
        %v2780 = vrcp.pop %v2757
        %v2781 = vmul.f32 1.0, %v2780
        %v2782 = vrcp.pop %v2758
        %v2783 = vmul.f32 1.0, %v2782
        %v2784 = vrcp.pop %v2759
        %v2785 = vmul.f32 1.0, %v2784
        %v2786 = vrcp.pop %v2760
        %v2787 = vmul.f32 1.0, %v2786
        %v2788 = vrcp.pop %v2761
        %v2789 = vmul.f32 1.0, %v2788
        %v2790 = vrcp.pop %v2762
        %v2791 = vmul.f32 1.0, %v2790
        %v2792 = vrcp.pop %v2763
        %v2793 = vmul.f32 1.0, %v2792
        %v2794 = vrcp.pop %v2764
        %v2795 = vmul.f32 1.0, %v2794
        %v2796 = vrcp.pop %v2765
        %v2797 = vmul.f32 1.0, %v2796
        %v2798 = vld [vmem:[%s16] sm:$0xff]
        %v2799 = vld [vmem:[%s16 + $0x8] sm:$0xff]
        %v2800 = vld [vmem:[%s16 + $0x10] sm:$0xff]
        %v2801 = vld [vmem:[%s16 + $0x18] sm:$0xff]
        %v2802 = vld [vmem:[%s16 + $0x20] sm:$0xff]
        %v2803 = vld [vmem:[%s16 + $0x28] sm:$0xff]
        %v2804 = vld [vmem:[%s16 + $0x30] sm:$0xff]
        %v2805 = vld [vmem:[%s16 + $0x38] sm:$0xff]
        %v2806 = vld [vmem:[%s16 + $0x40] sm:$0xff]
        %v2807 = vld [vmem:[%s16 + $0x48] sm:$0xff]
        %v2808 = vld [vmem:[%s16 + $0x50] sm:$0xff]
        %v2809 = vld [vmem:[%s16 + $0x58] sm:$0xff]
        %v2810 = vld [vmem:[%s16 + $0x60] sm:$0xff]
        %v2811 = vld [vmem:[%s16 + $0x68] sm:$0xff]
        %v2812 = vld [vmem:[%s16 + $0x70] sm:$0xff]
        %v2813 = vld [vmem:[%s16 + $0x78] sm:$0xff]
        %v2814 = vld [vmem:[%s16 + $0x80] sm:$0xff]
        %v2815 = vld [vmem:[%s16 + $0x88] sm:$0xff]
        %v2816 = vld [vmem:[%s16 + $0x90] sm:$0xff]
        %v2817 = vld [vmem:[%s16 + $0x98] sm:$0xff]
        %v2818 = vld [vmem:[%s16 + $0xa0] sm:$0xff]
        %v2819 = vld [vmem:[%s16 + $0xa8] sm:$0xff]
        %v2820 = vld [vmem:[%s16 + $0xb0] sm:$0xff]
        %v2821 = vld [vmem:[%s16 + $0xb8] sm:$0xff]
        %v2822 = vld [vmem:[%s16 + $0xc0] sm:$0xff]
        %v2823 = vld [vmem:[%s16 + $0xc8] sm:$0xff]
        %v2824 = vld [vmem:[%s16 + $0xd0] sm:$0xff]
        %v2825 = vld [vmem:[%s16 + $0xd8] sm:$0xff]
        %v2826 = vld [vmem:[%s16 + $0xe0] sm:$0xff]
        %v2827 = vld [vmem:[%s16 + $0xe8] sm:$0xff]
        %v2828 = vld [vmem:[%s16 + $0xf0] sm:$0xff]
        %v2829 = vld [vmem:[%s16 + $0xf8] sm:$0xff]
        %v2830 = vld [vmem:[%s17] sm:$0x3]
        %v2832 = vlaneseq
        %v2833 = vshrl.u32 %v2832, 7
        %v2834 = vsub.s32 0, %v2833
        %v2835 = vrot.slane %v2830, %v2834
        %v2836 = vlaneseq
        %v2837 = vshrl.u32 %v2836, 7
        %v2838 = vsub.s32 1, %v2837
        %v2839 = vrot.slane %v2830, %v2838
        %2842 = vmatprep.subr.mxu0 %v2799
        %2843 = vmatpush1.msra.mxu0 %v2798
        %2844 = vmatprep.subr.mxu0 %v2801
        %2845 = vmatpush1.msra.mxu0 %v2800
        %2846 = vmatprep.subr.mxu0 %v2803
        %2847 = vmatpush1.msra.mxu0 %v2802
        %2848 = vmatprep.subr.mxu0 %v2805
        %2849 = vmatpush1.msra.mxu0 %v2804
        %2850 = vmatprep.subr.mxu0 %v2807
        %2851 = vmatpush1.msra.mxu0 %v2806
        %2852 = vmatprep.subr.mxu0 %v2809
        %2853 = vmatpush1.msra.mxu0 %v2808
        %2854 = vmatprep.subr.mxu0 %v2811
        %2855 = vmatpush1.msra.mxu0 %v2810
        %2856 = vmatprep.subr.mxu0 %v2813
        %2857 = vmatpush1.msra.mxu0 %v2812
        %2858 = vmatprep.subr.mxu0 %v2815
        %2859 = vmatpush1.msra.mxu0 %v2814
        %2860 = vmatprep.subr.mxu0 %v2817
        %2861 = vmatpush1.msra.mxu0 %v2816
        %2862 = vmatprep.subr.mxu0 %v2819
        %2863 = vmatpush1.msra.mxu0 %v2818
        %2864 = vmatprep.subr.mxu0 %v2821
        %2865 = vmatpush1.msra.mxu0 %v2820
        %2866 = vmatprep.subr.mxu0 %v2823
        %2867 = vmatpush1.msra.mxu0 %v2822
        %2868 = vmatprep.subr.mxu0 %v2825
        %2869 = vmatpush1.msra.mxu0 %v2824
        %2870 = vmatprep.subr.mxu0 %v2827
        %2871 = vmatpush1.msra.mxu0 %v2826
        %2872 = vmatprep.subr.mxu0 %v2829
        %2873 = vmatpush1.msra.mxu0 %v2828
        %2874 = vmatprep.subr.mxu0 0.0
        %2875 = vmatpush1.msra.mxu0 0.0
        %2876 = vmatprep.subr.mxu0 0.0
        %2877 = vmatpush1.msra.mxu0 0.0
        %2878 = vmatprep.subr.mxu0 0.0
        %2879 = vmatpush1.msra.mxu0 0.0
        %2880 = vmatprep.subr.mxu0 0.0
        %2881 = vmatpush1.msra.mxu0 0.0
        %2882 = vmatprep.subr.mxu0 0.0
        %2883 = vmatpush1.msra.mxu0 0.0
        %2884 = vmatprep.subr.mxu0 0.0
        %2885 = vmatpush1.msra.mxu0 0.0
        %2886 = vmatprep.subr.mxu0 0.0
        %2887 = vmatpush1.msra.mxu0 0.0
        %2888 = vmatprep.subr.mxu0 0.0
        %2889 = vmatpush1.msra.mxu0 0.0
        %2890 = vmatprep.subr.mxu0 0.0
        %2891 = vmatpush1.msra.mxu0 0.0
        %2892 = vmatprep.subr.mxu0 0.0
        %2893 = vmatpush1.msra.mxu0 0.0
        %2894 = vmatprep.subr.mxu0 0.0
        %2895 = vmatpush1.msra.mxu0 0.0
        %2896 = vmatprep.subr.mxu0 0.0
        %2897 = vmatpush1.msra.mxu0 0.0
        %2898 = vmatprep.subr.mxu0 0.0
        %2899 = vmatpush1.msra.mxu0 0.0
        %2900 = vmatprep.subr.mxu0 0.0
        %2901 = vmatpush1.msra.mxu0 0.0
        %2902 = vmatprep.subr.mxu0 0.0
        %2903 = vmatpush1.msra.mxu0 0.0
        %2904 = vmatprep.subr.mxu0 0.0
        %2905 = vmatpush1.msra.mxu0 0.0
        %2906 = vmatprep.mubr.f32.mxu0 0.0
        %2907 = vmatmul.mubr.f32.gmra.mrb[0].mxu0 %v2767
        %v2908 = vpop.f32.mrb[0].mxu0
        %v2909 = vadd.f32 %v2835, %v2908
        %v2910 = vpop.f32.mrb[0].mxu0
        %v2911 = vadd.f32 %v2839, %v2910
        %2912 = vmatprep.mubr.f32.mxu0 0.0
        %2913 = vmatmul.mubr.f32.gmra.mrb[0].mxu0 %v2769
        %v2914 = vpop.f32.mrb[0].mxu0
        %v2915 = vadd.f32 %v2835, %v2914
        %v2916 = vpop.f32.mrb[0].mxu0
        %v2917 = vadd.f32 %v2839, %v2916
        %2918 = vmatprep.mubr.f32.mxu0 0.0
        %2919 = vmatmul.mubr.f32.gmra.mrb[0].mxu0 %v2771
        %v2920 = vpop.f32.mrb[0].mxu0
        %v2921 = vadd.f32 %v2835, %v2920
        %v2922 = vpop.f32.mrb[0].mxu0
        %v2923 = vadd.f32 %v2839, %v2922
        %2924 = vmatprep.mubr.f32.mxu0 0.0
        %2925 = vmatmul.mubr.f32.gmra.mrb[0].mxu0 %v2773
        %v2926 = vpop.f32.mrb[0].mxu0
        %v2927 = vadd.f32 %v2835, %v2926
        %v2928 = vpop.f32.mrb[0].mxu0
        %v2929 = vadd.f32 %v2839, %v2928
        %2930 = vmatprep.mubr.f32.mxu0 0.0
        %2931 = vmatmul.mubr.f32.gmra.mrb[0].mxu0 %v2775
        %v2932 = vpop.f32.mrb[0].mxu0
        %v2933 = vadd.f32 %v2835, %v2932
        %v2934 = vpop.f32.mrb[0].mxu0
        %v2935 = vadd.f32 %v2839, %v2934
        %2936 = vmatprep.mubr.f32.mxu0 0.0
        %2937 = vmatmul.mubr.f32.gmra.mrb[0].mxu0 %v2777
        %v2938 = vpop.f32.mrb[0].mxu0
        %v2939 = vadd.f32 %v2835, %v2938
        %v2940 = vpop.f32.mrb[0].mxu0
        %v2941 = vadd.f32 %v2839, %v2940
        %2942 = vmatprep.mubr.f32.mxu0 0.0
        %2943 = vmatmul.mubr.f32.gmra.mrb[0].mxu0 %v2779
        %v2944 = vpop.f32.mrb[0].mxu0
        %v2945 = vadd.f32 %v2835, %v2944
        %v2946 = vpop.f32.mrb[0].mxu0
        %v2947 = vadd.f32 %v2839, %v2946
        %2948 = vmatprep.mubr.f32.mxu0 0.0
        %2949 = vmatmul.mubr.f32.gmra.mrb[0].mxu0 %v2781
        %v2950 = vpop.f32.mrb[0].mxu0
        %v2951 = vadd.f32 %v2835, %v2950
        %v2952 = vpop.f32.mrb[0].mxu0
        %v2953 = vadd.f32 %v2839, %v2952
        %2954 = vmatprep.mubr.f32.mxu0 0.0
        %2955 = vmatmul.mubr.f32.gmra.mrb[0].mxu0 %v2783
        %v2956 = vpop.f32.mrb[0].mxu0
        %v2957 = vadd.f32 %v2835, %v2956
        %v2958 = vpop.f32.mrb[0].mxu0
        %v2959 = vadd.f32 %v2839, %v2958
        %2960 = vmatprep.mubr.f32.mxu0 0.0
        %2961 = vmatmul.mubr.f32.gmra.mrb[0].mxu0 %v2785
        %v2962 = vpop.f32.mrb[0].mxu0
        %v2963 = vadd.f32 %v2835, %v2962
        %v2964 = vpop.f32.mrb[0].mxu0
        %v2965 = vadd.f32 %v2839, %v2964
        %2966 = vmatprep.mubr.f32.mxu0 0.0
        %2967 = vmatmul.mubr.f32.gmra.mrb[0].mxu0 %v2787
        %v2968 = vpop.f32.mrb[0].mxu0
        %v2969 = vadd.f32 %v2835, %v2968
        %v2970 = vpop.f32.mrb[0].mxu0
        %v2971 = vadd.f32 %v2839, %v2970
        %2972 = vmatprep.mubr.f32.mxu0 0.0
        %2973 = vmatmul.mubr.f32.gmra.mrb[0].mxu0 %v2789
        %v2974 = vpop.f32.mrb[0].mxu0
        %v2975 = vadd.f32 %v2835, %v2974
        %v2976 = vpop.f32.mrb[0].mxu0
        %v2977 = vadd.f32 %v2839, %v2976
        %2978 = vmatprep.mubr.f32.mxu0 0.0
        %2979 = vmatmul.mubr.f32.gmra.mrb[0].mxu0 %v2791
        %v2980 = vpop.f32.mrb[0].mxu0
        %v2981 = vadd.f32 %v2835, %v2980
        %v2982 = vpop.f32.mrb[0].mxu0
        %v2983 = vadd.f32 %v2839, %v2982
        %2984 = vmatprep.mubr.f32.mxu0 0.0
        %2985 = vmatmul.mubr.f32.gmra.mrb[0].mxu0 %v2793
        %v2986 = vpop.f32.mrb[0].mxu0
        %v2987 = vadd.f32 %v2835, %v2986
        %v2988 = vpop.f32.mrb[0].mxu0
        %v2989 = vadd.f32 %v2839, %v2988
        %2990 = vmatprep.mubr.f32.mxu0 0.0
        %2991 = vmatmul.mubr.f32.gmra.mrb[0].mxu0 %v2795
        %v2992 = vpop.f32.mrb[0].mxu0
        %v2993 = vadd.f32 %v2835, %v2992
        %v2994 = vpop.f32.mrb[0].mxu0
        %v2995 = vadd.f32 %v2839, %v2994
        %2996 = vmatprep.mubr.f32.mxu0 0.0
        %2997 = vmatmul.mubr.f32.gmra.mrb[0].mxu0 %v2797
        %v2998 = vpop.f32.mrb[0].mxu0
        %v2999 = vadd.f32 %v2835, %v2998
        %v3000 = vpop.f32.mrb[0].mxu0
        %v3001 = vadd.f32 %v2839, %v3000
        %3002 = vdwg.mxu0
        %v3003 = vmax.f32 %v2909, 0.0
        %v3004 = vmax.f32 %v2911, 0.0
        %v3005 = vmax.f32 %v2915, 0.0
        %v3006 = vmax.f32 %v2917, 0.0
        %v3007 = vmax.f32 %v2921, 0.0
        %v3008 = vmax.f32 %v2923, 0.0
        %v3009 = vmax.f32 %v2927, 0.0
        %v3010 = vmax.f32 %v2929, 0.0
        %v3011 = vmax.f32 %v2933, 0.0
        %v3012 = vmax.f32 %v2935, 0.0
        %v3013 = vmax.f32 %v2939, 0.0
        %v3014 = vmax.f32 %v2941, 0.0
        %v3015 = vmax.f32 %v2945, 0.0
        %v3016 = vmax.f32 %v2947, 0.0
        %v3017 = vmax.f32 %v2951, 0.0
        %v3018 = vmax.f32 %v2953, 0.0
        %v3019 = vmax.f32 %v2957, 0.0
        %v3020 = vmax.f32 %v2959, 0.0
        %v3021 = vmax.f32 %v2963, 0.0
        %v3022 = vmax.f32 %v2965, 0.0
        %v3023 = vmax.f32 %v2969, 0.0
        %v3024 = vmax.f32 %v2971, 0.0
        %v3025 = vmax.f32 %v2975, 0.0
        %v3026 = vmax.f32 %v2977, 0.0
        %v3027 = vmax.f32 %v2981, 0.0
        %v3028 = vmax.f32 %v2983, 0.0
        %v3029 = vmax.f32 %v2987, 0.0
        %v3030 = vmax.f32 %v2989, 0.0
        %v3031 = vmax.f32 %v2993, 0.0
        %v3032 = vmax.f32 %v2995, 0.0
        %v3033 = vmax.f32 %v2999, 0.0
        %v3034 = vmax.f32 %v3001, 0.0
        %v3035 = vld [vmem:[#allocation7] sm:$0xff]
        %v3036 = vld [vmem:[#allocation7 + $0x8] sm:$0xff]
        %v3037 = vld [vmem:[#allocation7 + $0x10] sm:$0xff]
        %v3038 = vld [vmem:[#allocation7 + $0x18] sm:$0xff]
        %v3039 = vld [vmem:[#allocation7 + $0x20] sm:$0xff]
        %v3040 = vld [vmem:[#allocation7 + $0x28] sm:$0xff]
        %v3041 = vld [vmem:[#allocation7 + $0x30] sm:$0xff]
        %v3042 = vld [vmem:[#allocation7 + $0x38] sm:$0xff]
        %v3043 = vld [vmem:[#allocation7 + $0x40] sm:$0xff]
        %v3044 = vld [vmem:[#allocation7 + $0x48] sm:$0xff]
        %v3045 = vld [vmem:[#allocation7 + $0x50] sm:$0xff]
        %v3046 = vld [vmem:[#allocation7 + $0x58] sm:$0xff]
        %v3047 = vld [vmem:[#allocation7 + $0x60] sm:$0xff]
        %v3048 = vld [vmem:[#allocation7 + $0x68] sm:$0xff]
        %v3049 = vld [vmem:[#allocation7 + $0x70] sm:$0xff]
        %v3050 = vld [vmem:[#allocation7 + $0x78] sm:$0xff]
        %v3051 = vld [vmem:[#allocation7 + $0x80] sm:$0xff]
        %v3052 = vld [vmem:[#allocation7 + $0x88] sm:$0xff]
        %v3053 = vld [vmem:[#allocation7 + $0x90] sm:$0xff]
        %v3054 = vld [vmem:[#allocation7 + $0x98] sm:$0xff]
        %v3055 = vld [vmem:[#allocation7 + $0xa0] sm:$0xff]
        %v3056 = vld [vmem:[#allocation7 + $0xa8] sm:$0xff]
        %v3057 = vld [vmem:[#allocation7 + $0xb0] sm:$0xff]
        %v3058 = vld [vmem:[#allocation7 + $0xb8] sm:$0xff]
        %v3059 = vld [vmem:[#allocation7 + $0xc0] sm:$0xff]
        %v3060 = vld [vmem:[#allocation7 + $0xc8] sm:$0xff]
        %v3061 = vld [vmem:[#allocation7 + $0xd0] sm:$0xff]
        %v3062 = vld [vmem:[#allocation7 + $0xd8] sm:$0xff]
        %v3063 = vld [vmem:[#allocation7 + $0xe0] sm:$0xff]
        %v3064 = vld [vmem:[#allocation7 + $0xe8] sm:$0xff]
        %v3065 = vld [vmem:[#allocation7 + $0xf0] sm:$0xff]
        %v3066 = vld [vmem:[#allocation7 + $0xf8] sm:$0xff]
        %v3067 = vld [vmem:[#allocation7 + $0x100] sm:$0xff]
        %v3068 = vld [vmem:[#allocation7 + $0x108] sm:$0xff]
        %v3069 = vld [vmem:[#allocation7 + $0x110] sm:$0xff]
        %v3070 = vld [vmem:[#allocation7 + $0x118] sm:$0xff]
        %v3071 = vld [vmem:[#allocation7 + $0x120] sm:$0xff]
        %v3072 = vld [vmem:[#allocation7 + $0x128] sm:$0xff]
        %v3073 = vld [vmem:[#allocation7 + $0x130] sm:$0xff]
        %v3074 = vld [vmem:[#allocation7 + $0x138] sm:$0xff]
        %v3075 = vld [vmem:[#allocation7 + $0x140] sm:$0xff]
        %v3076 = vld [vmem:[#allocation7 + $0x148] sm:$0xff]
        %v3077 = vld [vmem:[#allocation7 + $0x150] sm:$0xff]
        %v3078 = vld [vmem:[#allocation7 + $0x158] sm:$0xff]
        %v3079 = vld [vmem:[#allocation7 + $0x160] sm:$0xff]
        %v3080 = vld [vmem:[#allocation7 + $0x168] sm:$0xff]
        %v3081 = vld [vmem:[#allocation7 + $0x170] sm:$0xff]
        %v3082 = vld [vmem:[#allocation7 + $0x178] sm:$0xff]
        %v3083 = vld [vmem:[#allocation7 + $0x180] sm:$0xff]
        %v3084 = vld [vmem:[#allocation7 + $0x188] sm:$0xff]
        %v3085 = vld [vmem:[#allocation7 + $0x190] sm:$0xff]
        %v3086 = vld [vmem:[#allocation7 + $0x198] sm:$0xff]
        %v3087 = vld [vmem:[#allocation7 + $0x1a0] sm:$0xff]
        %v3088 = vld [vmem:[#allocation7 + $0x1a8] sm:$0xff]
        %v3089 = vld [vmem:[#allocation7 + $0x1b0] sm:$0xff]
        %v3090 = vld [vmem:[#allocation7 + $0x1b8] sm:$0xff]
        %v3091 = vld [vmem:[#allocation7 + $0x1c0] sm:$0xff]
        %v3092 = vld [vmem:[#allocation7 + $0x1c8] sm:$0xff]
        %v3093 = vld [vmem:[#allocation7 + $0x1d0] sm:$0xff]
        %v3094 = vld [vmem:[#allocation7 + $0x1d8] sm:$0xff]
        %v3095 = vld [vmem:[#allocation7 + $0x1e0] sm:$0xff]
        %v3096 = vld [vmem:[#allocation7 + $0x1e8] sm:$0xff]
        %v3097 = vld [vmem:[#allocation7 + $0x1f0] sm:$0xff]
        %v3098 = vld [vmem:[#allocation7 + $0x1f8] sm:$0xff]
        %v3099 = vld [vmem:[#allocation7 + $0x200] sm:$0xff]
        %v3100 = vld [vmem:[#allocation7 + $0x208] sm:$0xff]
        %v3101 = vld [vmem:[#allocation7 + $0x210] sm:$0xff]
        %v3102 = vld [vmem:[#allocation7 + $0x218] sm:$0xff]
        %v3103 = vld [vmem:[#allocation7 + $0x220] sm:$0xff]
        %v3104 = vld [vmem:[#allocation7 + $0x228] sm:$0xff]
        %v3105 = vld [vmem:[#allocation7 + $0x230] sm:$0xff]
        %v3106 = vld [vmem:[#allocation7 + $0x238] sm:$0xff]
        %v3107 = vld [vmem:[#allocation7 + $0x240] sm:$0xff]
        %v3108 = vld [vmem:[#allocation7 + $0x248] sm:$0xff]
        %v3109 = vld [vmem:[#allocation7 + $0x250] sm:$0xff]
        %v3110 = vld [vmem:[#allocation7 + $0x258] sm:$0xff]
        %v3111 = vld [vmem:[#allocation7 + $0x260] sm:$0xff]
        %v3112 = vld [vmem:[#allocation7 + $0x268] sm:$0xff]
        %v3113 = vld [vmem:[#allocation7 + $0x270] sm:$0xff]
        %v3114 = vld [vmem:[#allocation7 + $0x278] sm:$0xff]
        %v3115 = vld [vmem:[#allocation7 + $0x280] sm:$0xff]
        %v3116 = vld [vmem:[#allocation7 + $0x288] sm:$0xff]
        %v3117 = vld [vmem:[#allocation7 + $0x290] sm:$0xff]
        %v3118 = vld [vmem:[#allocation7 + $0x298] sm:$0xff]
        %v3119 = vld [vmem:[#allocation7 + $0x2a0] sm:$0xff]
        %v3120 = vld [vmem:[#allocation7 + $0x2a8] sm:$0xff]
        %v3121 = vld [vmem:[#allocation7 + $0x2b0] sm:$0xff]
        %v3122 = vld [vmem:[#allocation7 + $0x2b8] sm:$0xff]
        %v3123 = vld [vmem:[#allocation7 + $0x2c0] sm:$0xff]
        %v3124 = vld [vmem:[#allocation7 + $0x2c8] sm:$0xff]
        %v3125 = vld [vmem:[#allocation7 + $0x2d0] sm:$0xff]
        %v3126 = vld [vmem:[#allocation7 + $0x2d8] sm:$0xff]
        %v3127 = vld [vmem:[#allocation7 + $0x2e0] sm:$0xff]
        %v3128 = vld [vmem:[#allocation7 + $0x2e8] sm:$0xff]
        %v3129 = vld [vmem:[#allocation7 + $0x2f0] sm:$0xff]
        %v3130 = vld [vmem:[#allocation7 + $0x2f8] sm:$0xff]
        %v3131 = vld [vmem:[#allocation7 + $0x300] sm:$0xff]
        %v3132 = vld [vmem:[#allocation7 + $0x308] sm:$0xff]
        %v3133 = vld [vmem:[#allocation7 + $0x310] sm:$0xff]
        %v3134 = vld [vmem:[#allocation7 + $0x318] sm:$0xff]
        %v3135 = vld [vmem:[#allocation7 + $0x320] sm:$0xff]
        %v3136 = vld [vmem:[#allocation7 + $0x328] sm:$0xff]
        %v3137 = vld [vmem:[#allocation7 + $0x330] sm:$0xff]
        %v3138 = vld [vmem:[#allocation7 + $0x338] sm:$0xff]
        %v3139 = vld [vmem:[#allocation7 + $0x340] sm:$0xff]
        %v3140 = vld [vmem:[#allocation7 + $0x348] sm:$0xff]
        %v3141 = vld [vmem:[#allocation7 + $0x350] sm:$0xff]
        %v3142 = vld [vmem:[#allocation7 + $0x358] sm:$0xff]
        %v3143 = vld [vmem:[#allocation7 + $0x360] sm:$0xff]
        %v3144 = vld [vmem:[#allocation7 + $0x368] sm:$0xff]
        %v3145 = vld [vmem:[#allocation7 + $0x370] sm:$0xff]
        %v3146 = vld [vmem:[#allocation7 + $0x378] sm:$0xff]
        %v3147 = vld [vmem:[#allocation7 + $0x380] sm:$0xff]
        %v3148 = vld [vmem:[#allocation7 + $0x388] sm:$0xff]
        %v3149 = vld [vmem:[#allocation7 + $0x390] sm:$0xff]
        %v3150 = vld [vmem:[#allocation7 + $0x398] sm:$0xff]
        %v3151 = vld [vmem:[#allocation7 + $0x3a0] sm:$0xff]
        %v3152 = vld [vmem:[#allocation7 + $0x3a8] sm:$0xff]
        %v3153 = vld [vmem:[#allocation7 + $0x3b0] sm:$0xff]
        %v3154 = vld [vmem:[#allocation7 + $0x3b8] sm:$0xff]
        %v3155 = vld [vmem:[#allocation7 + $0x3c0] sm:$0xff]
        %v3156 = vld [vmem:[#allocation7 + $0x3c8] sm:$0xff]
        %v3157 = vld [vmem:[#allocation7 + $0x3d0] sm:$0xff]
        %v3158 = vld [vmem:[#allocation7 + $0x3d8] sm:$0xff]
        %v3159 = vld [vmem:[#allocation7 + $0x3e0] sm:$0xff]
        %v3160 = vld [vmem:[#allocation7 + $0x3e8] sm:$0xff]
        %v3161 = vld [vmem:[#allocation7 + $0x3f0] sm:$0xff]
        %v3162 = vld [vmem:[#allocation7 + $0x3f8] sm:$0xff]
        %v3163 = vld [vmem:[%s19] sm:$0xf]
        %v3165 = vlaneseq
        %v3166 = vshrl.u32 %v3165, 7
        %v3167 = vsub.s32 0, %v3166
        %v3168 = vrot.slane %v3163, %v3167
        %v3169 = vlaneseq
        %v3170 = vshrl.u32 %v3169, 7
        %v3171 = vsub.s32 1, %v3170
        %v3172 = vrot.slane %v3163, %v3171
        %v3173 = vlaneseq
        %v3174 = vshrl.u32 %v3173, 7
        %v3175 = vsub.s32 2, %v3174
        %v3176 = vrot.slane %v3163, %v3175
        %v3177 = vlaneseq
        %v3178 = vshrl.u32 %v3177, 7
        %v3179 = vsub.s32 3, %v3178
        %v3180 = vrot.slane %v3163, %v3179
        %3185 = vmatprep.subr.mxu0 %v3036
        %3186 = vmatpush1.msra.mxu0 %v3035
        %3187 = vmatprep.subr.mxu0 %v3040
        %3188 = vmatpush1.msra.mxu0 %v3039
        %3189 = vmatprep.subr.mxu0 %v3044
        %3190 = vmatpush1.msra.mxu0 %v3043
        %3191 = vmatprep.subr.mxu0 %v3048
        %3192 = vmatpush1.msra.mxu0 %v3047
        %3193 = vmatprep.subr.mxu0 %v3052
        %3194 = vmatpush1.msra.mxu0 %v3051
        %3195 = vmatprep.subr.mxu0 %v3056
        %3196 = vmatpush1.msra.mxu0 %v3055
        %3197 = vmatprep.subr.mxu0 %v3060
        %3198 = vmatpush1.msra.mxu0 %v3059
        %3199 = vmatprep.subr.mxu0 %v3064
        %3200 = vmatpush1.msra.mxu0 %v3063
        %3201 = vmatprep.subr.mxu0 %v3068
        %3202 = vmatpush1.msra.mxu0 %v3067
        %3203 = vmatprep.subr.mxu0 %v3072
        %3204 = vmatpush1.msra.mxu0 %v3071
        %3205 = vmatprep.subr.mxu0 %v3076
        %3206 = vmatpush1.msra.mxu0 %v3075
        %3207 = vmatprep.subr.mxu0 %v3080
        %3208 = vmatpush1.msra.mxu0 %v3079
        %3209 = vmatprep.subr.mxu0 %v3084
        %3210 = vmatpush1.msra.mxu0 %v3083
        %3211 = vmatprep.subr.mxu0 %v3088
        %3212 = vmatpush1.msra.mxu0 %v3087
        %3213 = vmatprep.subr.mxu0 %v3092
        %3214 = vmatpush1.msra.mxu0 %v3091
        %3215 = vmatprep.subr.mxu0 %v3096
        %3216 = vmatpush1.msra.mxu0 %v3095
        %3217 = vmatprep.subr.mxu0 %v3100
        %3218 = vmatpush1.msra.mxu0 %v3099
        %3219 = vmatprep.subr.mxu0 %v3104
        %3220 = vmatpush1.msra.mxu0 %v3103
        %3221 = vmatprep.subr.mxu0 %v3108
        %3222 = vmatpush1.msra.mxu0 %v3107
        %3223 = vmatprep.subr.mxu0 %v3112
        %3224 = vmatpush1.msra.mxu0 %v3111
        %3225 = vmatprep.subr.mxu0 %v3116
        %3226 = vmatpush1.msra.mxu0 %v3115
        %3227 = vmatprep.subr.mxu0 %v3120
        %3228 = vmatpush1.msra.mxu0 %v3119
        %3229 = vmatprep.subr.mxu0 %v3124
        %3230 = vmatpush1.msra.mxu0 %v3123
        %3231 = vmatprep.subr.mxu0 %v3128
        %3232 = vmatpush1.msra.mxu0 %v3127
        %3233 = vmatprep.subr.mxu0 %v3132
        %3234 = vmatpush1.msra.mxu0 %v3131
        %3235 = vmatprep.subr.mxu0 %v3136
        %3236 = vmatpush1.msra.mxu0 %v3135
        %3237 = vmatprep.subr.mxu0 %v3140
        %3238 = vmatpush1.msra.mxu0 %v3139
        %3239 = vmatprep.subr.mxu0 %v3144
        %3240 = vmatpush1.msra.mxu0 %v3143
        %3241 = vmatprep.subr.mxu0 %v3148
        %3242 = vmatpush1.msra.mxu0 %v3147
        %3243 = vmatprep.subr.mxu0 %v3152
        %3244 = vmatpush1.msra.mxu0 %v3151
        %3245 = vmatprep.subr.mxu0 %v3156
        %3246 = vmatpush1.msra.mxu0 %v3155
        %3247 = vmatprep.subr.mxu0 %v3160
        %3248 = vmatpush1.msra.mxu0 %v3159
        %3249 = vmatprep.mubr.f32.mxu0 %v3004
        %3250 = vmatmul.mubr.f32.gmra.mrb[0].mxu0 %v3003
        %v3251 = vpop.f32.mrb[0].mxu0
        %v3252 = vadd.f32 %v3168, %v3251
        %v3253 = vpop.f32.mrb[0].mxu0
        %v3254 = vadd.f32 %v3172, %v3253
        %3255 = vmatprep.mubr.f32.mxu0 %v3006
        %3256 = vmatmul.mubr.f32.gmra.mrb[0].mxu0 %v3005
        %v3257 = vpop.f32.mrb[0].mxu0
        %v3258 = vadd.f32 %v3168, %v3257
        %v3259 = vpop.f32.mrb[0].mxu0
        %v3260 = vadd.f32 %v3172, %v3259
        %3261 = vmatprep.mubr.f32.mxu0 %v3008
        %3262 = vmatmul.mubr.f32.gmra.mrb[0].mxu0 %v3007
        %v3263 = vpop.f32.mrb[0].mxu0
        %v3264 = vadd.f32 %v3168, %v3263
        %v3265 = vpop.f32.mrb[0].mxu0
        %v3266 = vadd.f32 %v3172, %v3265
        %3267 = vmatprep.mubr.f32.mxu0 %v3010
        %3268 = vmatmul.mubr.f32.gmra.mrb[0].mxu0 %v3009
        %v3269 = vpop.f32.mrb[0].mxu0
        %v3270 = vadd.f32 %v3168, %v3269
        %v3271 = vpop.f32.mrb[0].mxu0
        %v3272 = vadd.f32 %v3172, %v3271
        %3273 = vmatprep.mubr.f32.mxu0 %v3012
        %3274 = vmatmul.mubr.f32.gmra.mrb[0].mxu0 %v3011
        %v3275 = vpop.f32.mrb[0].mxu0
        %v3276 = vadd.f32 %v3168, %v3275
        %v3277 = vpop.f32.mrb[0].mxu0
        %v3278 = vadd.f32 %v3172, %v3277
        %3279 = vmatprep.mubr.f32.mxu0 %v3014
        %3280 = vmatmul.mubr.f32.gmra.mrb[0].mxu0 %v3013
        %v3281 = vpop.f32.mrb[0].mxu0
        %v3282 = vadd.f32 %v3168, %v3281
        %v3283 = vpop.f32.mrb[0].mxu0
        %v3284 = vadd.f32 %v3172, %v3283
        %3285 = vmatprep.mubr.f32.mxu0 %v3016
        %3286 = vmatmul.mubr.f32.gmra.mrb[0].mxu0 %v3015
        %v3287 = vpop.f32.mrb[0].mxu0
        %v3288 = vadd.f32 %v3168, %v3287
        %v3289 = vpop.f32.mrb[0].mxu0
        %v3290 = vadd.f32 %v3172, %v3289
        %3291 = vmatprep.mubr.f32.mxu0 %v3018
        %3292 = vmatmul.mubr.f32.gmra.mrb[0].mxu0 %v3017
        %v3293 = vpop.f32.mrb[0].mxu0
        %v3294 = vadd.f32 %v3168, %v3293
        %v3295 = vpop.f32.mrb[0].mxu0
        %v3296 = vadd.f32 %v3172, %v3295
        %3297 = vmatprep.mubr.f32.mxu0 %v3020
        %3298 = vmatmul.mubr.f32.gmra.mrb[0].mxu0 %v3019
        %v3299 = vpop.f32.mrb[0].mxu0
        %v3300 = vadd.f32 %v3168, %v3299
        %v3301 = vpop.f32.mrb[0].mxu0
        %v3302 = vadd.f32 %v3172, %v3301
        %3303 = vmatprep.mubr.f32.mxu0 %v3022
        %3304 = vmatmul.mubr.f32.gmra.mrb[0].mxu0 %v3021
        %v3305 = vpop.f32.mrb[0].mxu0
        %v3306 = vadd.f32 %v3168, %v3305
        %v3307 = vpop.f32.mrb[0].mxu0
        %v3308 = vadd.f32 %v3172, %v3307
        %3309 = vmatprep.mubr.f32.mxu0 %v3024
        %3310 = vmatmul.mubr.f32.gmra.mrb[0].mxu0 %v3023
        %v3311 = vpop.f32.mrb[0].mxu0
        %v3312 = vadd.f32 %v3168, %v3311
        %v3313 = vpop.f32.mrb[0].mxu0
        %v3314 = vadd.f32 %v3172, %v3313
        %3315 = vmatprep.mubr.f32.mxu0 %v3026
        %3316 = vmatmul.mubr.f32.gmra.mrb[0].mxu0 %v3025
        %v3317 = vpop.f32.mrb[0].mxu0
        %v3318 = vadd.f32 %v3168, %v3317
        %v3319 = vpop.f32.mrb[0].mxu0
        %v3320 = vadd.f32 %v3172, %v3319
        %3321 = vmatprep.mubr.f32.mxu0 %v3028
        %3322 = vmatmul.mubr.f32.gmra.mrb[0].mxu0 %v3027
        %v3323 = vpop.f32.mrb[0].mxu0
        %v3324 = vadd.f32 %v3168, %v3323
        %v3325 = vpop.f32.mrb[0].mxu0
        %v3326 = vadd.f32 %v3172, %v3325
        %3327 = vmatprep.mubr.f32.mxu0 %v3030
        %3328 = vmatmul.mubr.f32.gmra.mrb[0].mxu0 %v3029
        %v3329 = vpop.f32.mrb[0].mxu0
        %v3330 = vadd.f32 %v3168, %v3329
        %v3331 = vpop.f32.mrb[0].mxu0
        %v3332 = vadd.f32 %v3172, %v3331
        %3333 = vmatprep.mubr.f32.mxu0 %v3032
        %3334 = vmatmul.mubr.f32.gmra.mrb[0].mxu0 %v3031
        %v3335 = vpop.f32.mrb[0].mxu0
        %v3336 = vadd.f32 %v3168, %v3335
        %v3337 = vpop.f32.mrb[0].mxu0
        %v3338 = vadd.f32 %v3172, %v3337
        %3339 = vmatprep.mubr.f32.mxu0 %v3034
        %3340 = vmatmul.mubr.f32.gmra.mrb[0].mxu0 %v3033
        %v3341 = vpop.f32.mrb[0].mxu0
        %v3342 = vadd.f32 %v3168, %v3341
        %v3343 = vpop.f32.mrb[0].mxu0
        %v3344 = vadd.f32 %v3172, %v3343
        %3345 = vdwg.mxu0
        %3346 = vmatprep.subr.mxu0 %v3038
        %3347 = vmatpush1.msra.mxu0 %v3037
        %3348 = vmatprep.subr.mxu0 %v3042
        %3349 = vmatpush1.msra.mxu0 %v3041
        %3350 = vmatprep.subr.mxu0 %v3046
        %3351 = vmatpush1.msra.mxu0 %v3045
        %3352 = vmatprep.subr.mxu0 %v3050
        %3353 = vmatpush1.msra.mxu0 %v3049
        %3354 = vmatprep.subr.mxu0 %v3054
        %3355 = vmatpush1.msra.mxu0 %v3053
        %3356 = vmatprep.subr.mxu0 %v3058
        %3357 = vmatpush1.msra.mxu0 %v3057
        %3358 = vmatprep.subr.mxu0 %v3062
        %3359 = vmatpush1.msra.mxu0 %v3061
        %3360 = vmatprep.subr.mxu0 %v3066
        %3361 = vmatpush1.msra.mxu0 %v3065
        %3362 = vmatprep.subr.mxu0 %v3070
        %3363 = vmatpush1.msra.mxu0 %v3069
        %3364 = vmatprep.subr.mxu0 %v3074
        %3365 = vmatpush1.msra.mxu0 %v3073
        %3366 = vmatprep.subr.mxu0 %v3078
        %3367 = vmatpush1.msra.mxu0 %v3077
        %3368 = vmatprep.subr.mxu0 %v3082
        %3369 = vmatpush1.msra.mxu0 %v3081
        %3370 = vmatprep.subr.mxu0 %v3086
        %3371 = vmatpush1.msra.mxu0 %v3085
        %3372 = vmatprep.subr.mxu0 %v3090
        %3373 = vmatpush1.msra.mxu0 %v3089
        %3374 = vmatprep.subr.mxu0 %v3094
        %3375 = vmatpush1.msra.mxu0 %v3093
        %3376 = vmatprep.subr.mxu0 %v3098
        %3377 = vmatpush1.msra.mxu0 %v3097
        %3378 = vmatprep.subr.mxu0 %v3102
        %3379 = vmatpush1.msra.mxu0 %v3101
        %3380 = vmatprep.subr.mxu0 %v3106
        %3381 = vmatpush1.msra.mxu0 %v3105
        %3382 = vmatprep.subr.mxu0 %v3110
        %3383 = vmatpush1.msra.mxu0 %v3109
        %3384 = vmatprep.subr.mxu0 %v3114
        %3385 = vmatpush1.msra.mxu0 %v3113
        %3386 = vmatprep.subr.mxu0 %v3118
        %3387 = vmatpush1.msra.mxu0 %v3117
        %3388 = vmatprep.subr.mxu0 %v3122
        %3389 = vmatpush1.msra.mxu0 %v3121
        %3390 = vmatprep.subr.mxu0 %v3126
        %3391 = vmatpush1.msra.mxu0 %v3125
        %3392 = vmatprep.subr.mxu0 %v3130
        %3393 = vmatpush1.msra.mxu0 %v3129
        %3394 = vmatprep.subr.mxu0 %v3134
        %3395 = vmatpush1.msra.mxu0 %v3133
        %3396 = vmatprep.subr.mxu0 %v3138
        %3397 = vmatpush1.msra.mxu0 %v3137
        %3398 = vmatprep.subr.mxu0 %v3142
        %3399 = vmatpush1.msra.mxu0 %v3141
        %3400 = vmatprep.subr.mxu0 %v3146
        %3401 = vmatpush1.msra.mxu0 %v3145
        %3402 = vmatprep.subr.mxu0 %v3150
        %3403 = vmatpush1.msra.mxu0 %v3149
        %3404 = vmatprep.subr.mxu0 %v3154
        %3405 = vmatpush1.msra.mxu0 %v3153
        %3406 = vmatprep.subr.mxu0 %v3158
        %3407 = vmatpush1.msra.mxu0 %v3157
        %3408 = vmatprep.subr.mxu0 %v3162
        %3409 = vmatpush1.msra.mxu0 %v3161
        %3410 = vmatprep.mubr.f32.mxu0 %v3004
        %3411 = vmatmul.mubr.f32.gmra.mrb[0].mxu0 %v3003
        %v3412 = vpop.f32.mrb[0].mxu0
        %v3413 = vadd.f32 %v3176, %v3412
        %v3414 = vpop.f32.mrb[0].mxu0
        %v3415 = vadd.f32 %v3180, %v3414
        %3416 = vmatprep.mubr.f32.mxu0 %v3006
        %3417 = vmatmul.mubr.f32.gmra.mrb[0].mxu0 %v3005
        %v3418 = vpop.f32.mrb[0].mxu0
        %v3419 = vadd.f32 %v3176, %v3418
        %v3420 = vpop.f32.mrb[0].mxu0
        %v3421 = vadd.f32 %v3180, %v3420
        %3422 = vmatprep.mubr.f32.mxu0 %v3008
        %3423 = vmatmul.mubr.f32.gmra.mrb[0].mxu0 %v3007
        %v3424 = vpop.f32.mrb[0].mxu0
        %v3425 = vadd.f32 %v3176, %v3424
        %v3426 = vpop.f32.mrb[0].mxu0
        %v3427 = vadd.f32 %v3180, %v3426
        %3428 = vmatprep.mubr.f32.mxu0 %v3010
        %3429 = vmatmul.mubr.f32.gmra.mrb[0].mxu0 %v3009
        %v3430 = vpop.f32.mrb[0].mxu0
        %v3431 = vadd.f32 %v3176, %v3430
        %v3432 = vpop.f32.mrb[0].mxu0
        %v3433 = vadd.f32 %v3180, %v3432
        %3434 = vmatprep.mubr.f32.mxu0 %v3012
        %3435 = vmatmul.mubr.f32.gmra.mrb[0].mxu0 %v3011
        %v3436 = vpop.f32.mrb[0].mxu0
        %v3437 = vadd.f32 %v3176, %v3436
        %v3438 = vpop.f32.mrb[0].mxu0
        %v3439 = vadd.f32 %v3180, %v3438
        %3440 = vmatprep.mubr.f32.mxu0 %v3014
        %3441 = vmatmul.mubr.f32.gmra.mrb[0].mxu0 %v3013
        %v3442 = vpop.f32.mrb[0].mxu0
        %v3443 = vadd.f32 %v3176, %v3442
        %v3444 = vpop.f32.mrb[0].mxu0
        %v3445 = vadd.f32 %v3180, %v3444
        %3446 = vmatprep.mubr.f32.mxu0 %v3016
        %3447 = vmatmul.mubr.f32.gmra.mrb[0].mxu0 %v3015
        %v3448 = vpop.f32.mrb[0].mxu0
        %v3449 = vadd.f32 %v3176, %v3448
        %v3450 = vpop.f32.mrb[0].mxu0
        %v3451 = vadd.f32 %v3180, %v3450
        %3452 = vmatprep.mubr.f32.mxu0 %v3018
        %3453 = vmatmul.mubr.f32.gmra.mrb[0].mxu0 %v3017
        %v3454 = vpop.f32.mrb[0].mxu0
        %v3455 = vadd.f32 %v3176, %v3454
        %v3456 = vpop.f32.mrb[0].mxu0
        %v3457 = vadd.f32 %v3180, %v3456
        %3458 = vmatprep.mubr.f32.mxu0 %v3020
        %3459 = vmatmul.mubr.f32.gmra.mrb[0].mxu0 %v3019
        %v3460 = vpop.f32.mrb[0].mxu0
        %v3461 = vadd.f32 %v3176, %v3460
        %v3462 = vpop.f32.mrb[0].mxu0
        %v3463 = vadd.f32 %v3180, %v3462
        %3464 = vmatprep.mubr.f32.mxu0 %v3022
        %3465 = vmatmul.mubr.f32.gmra.mrb[0].mxu0 %v3021
        %v3466 = vpop.f32.mrb[0].mxu0
        %v3467 = vadd.f32 %v3176, %v3466
        %v3468 = vpop.f32.mrb[0].mxu0
        %v3469 = vadd.f32 %v3180, %v3468
        %3470 = vmatprep.mubr.f32.mxu0 %v3024
        %3471 = vmatmul.mubr.f32.gmra.mrb[0].mxu0 %v3023
        %v3472 = vpop.f32.mrb[0].mxu0
        %v3473 = vadd.f32 %v3176, %v3472
        %v3474 = vpop.f32.mrb[0].mxu0
        %v3475 = vadd.f32 %v3180, %v3474
        %3476 = vmatprep.mubr.f32.mxu0 %v3026
        %3477 = vmatmul.mubr.f32.gmra.mrb[0].mxu0 %v3025
        %v3478 = vpop.f32.mrb[0].mxu0
        %v3479 = vadd.f32 %v3176, %v3478
        %v3480 = vpop.f32.mrb[0].mxu0
        %v3481 = vadd.f32 %v3180, %v3480
        %3482 = vmatprep.mubr.f32.mxu0 %v3028
        %3483 = vmatmul.mubr.f32.gmra.mrb[0].mxu0 %v3027
        %v3484 = vpop.f32.mrb[0].mxu0
        %v3485 = vadd.f32 %v3176, %v3484
        %v3486 = vpop.f32.mrb[0].mxu0
        %v3487 = vadd.f32 %v3180, %v3486
        %3488 = vmatprep.mubr.f32.mxu0 %v3030
        %3489 = vmatmul.mubr.f32.gmra.mrb[0].mxu0 %v3029
        %v3490 = vpop.f32.mrb[0].mxu0
        %v3491 = vadd.f32 %v3176, %v3490
        %v3492 = vpop.f32.mrb[0].mxu0
        %v3493 = vadd.f32 %v3180, %v3492
        %3494 = vmatprep.mubr.f32.mxu0 %v3032
        %3495 = vmatmul.mubr.f32.gmra.mrb[0].mxu0 %v3031
        %v3496 = vpop.f32.mrb[0].mxu0
        %v3497 = vadd.f32 %v3176, %v3496
        %v3498 = vpop.f32.mrb[0].mxu0
        %v3499 = vadd.f32 %v3180, %v3498
        %3500 = vmatprep.mubr.f32.mxu0 %v3034
        %3501 = vmatmul.mubr.f32.gmra.mrb[0].mxu0 %v3033
        %v3502 = vpop.f32.mrb[0].mxu0
        %v3503 = vadd.f32 %v3176, %v3502
        %v3504 = vpop.f32.mrb[0].mxu0
        %v3505 = vadd.f32 %v3180, %v3504
        %3506 = vdwg.mxu0
        %v3507 = vxor.u32 %v3252, 2147483648
        %v3508 = vxor.u32 %v3254, 2147483648
        %v3509 = vxor.u32 %v3413, 2147483648
        %v3510 = vxor.u32 %v3415, 2147483648
        %v3511 = vxor.u32 %v3258, 2147483648
        %v3512 = vxor.u32 %v3260, 2147483648
        %v3513 = vxor.u32 %v3419, 2147483648
        %v3514 = vxor.u32 %v3421, 2147483648
        %v3515 = vxor.u32 %v3264, 2147483648
        %v3516 = vxor.u32 %v3266, 2147483648
        %v3517 = vxor.u32 %v3425, 2147483648
        %v3518 = vxor.u32 %v3427, 2147483648
        %v3519 = vxor.u32 %v3270, 2147483648
        %v3520 = vxor.u32 %v3272, 2147483648
        %v3521 = vxor.u32 %v3431, 2147483648
        %v3522 = vxor.u32 %v3433, 2147483648
        %v3523 = vxor.u32 %v3276, 2147483648
        %v3524 = vxor.u32 %v3278, 2147483648
        %v3525 = vxor.u32 %v3437, 2147483648
        %v3526 = vxor.u32 %v3439, 2147483648
        %v3527 = vxor.u32 %v3282, 2147483648
        %v3528 = vxor.u32 %v3284, 2147483648
        %v3529 = vxor.u32 %v3443, 2147483648
        %v3530 = vxor.u32 %v3445, 2147483648
        %v3531 = vxor.u32 %v3288, 2147483648
        %v3532 = vxor.u32 %v3290, 2147483648
        %v3533 = vxor.u32 %v3449, 2147483648
        %v3534 = vxor.u32 %v3451, 2147483648
        %v3535 = vxor.u32 %v3294, 2147483648
        %v3536 = vxor.u32 %v3296, 2147483648
        %v3537 = vxor.u32 %v3455, 2147483648
        %v3538 = vxor.u32 %v3457, 2147483648
        %v3539 = vxor.u32 %v3300, 2147483648
        %v3540 = vxor.u32 %v3302, 2147483648
        %v3541 = vxor.u32 %v3461, 2147483648
        %v3542 = vxor.u32 %v3463, 2147483648
        %v3543 = vxor.u32 %v3306, 2147483648
        %v3544 = vxor.u32 %v3308, 2147483648
        %v3545 = vxor.u32 %v3467, 2147483648
        %v3546 = vxor.u32 %v3469, 2147483648
        %v3547 = vxor.u32 %v3312, 2147483648
        %v3548 = vxor.u32 %v3314, 2147483648
        %v3549 = vxor.u32 %v3473, 2147483648
        %v3550 = vxor.u32 %v3475, 2147483648
        %v3551 = vxor.u32 %v3318, 2147483648
        %v3552 = vxor.u32 %v3320, 2147483648
        %v3553 = vxor.u32 %v3479, 2147483648
        %v3554 = vxor.u32 %v3481, 2147483648
        %v3555 = vxor.u32 %v3324, 2147483648
        %v3556 = vxor.u32 %v3326, 2147483648
        %v3557 = vxor.u32 %v3485, 2147483648
        %v3558 = vxor.u32 %v3487, 2147483648
        %v3559 = vxor.u32 %v3330, 2147483648
        %v3560 = vxor.u32 %v3332, 2147483648
        %v3561 = vxor.u32 %v3491, 2147483648
        %v3562 = vxor.u32 %v3493, 2147483648
        %v3563 = vxor.u32 %v3336, 2147483648
        %v3564 = vxor.u32 %v3338, 2147483648
        %v3565 = vxor.u32 %v3497, 2147483648
        %v3566 = vxor.u32 %v3499, 2147483648
        %v3567 = vxor.u32 %v3342, 2147483648
        %v3568 = vxor.u32 %v3344, 2147483648
        %v3569 = vxor.u32 %v3503, 2147483648
        %v3570 = vxor.u32 %v3505, 2147483648
        %v3571 = vmul.f32 %v3507, 1.442695
        %v3572 = vpow.pop %v3571
        %v3573 = vmul.f32 %v3508, 1.442695
        %v3574 = vpow.pop %v3573
        %v3575 = vmul.f32 %v3509, 1.442695
        %v3576 = vpow.pop %v3575
        %v3577 = vmul.f32 %v3510, 1.442695
        %v3578 = vpow.pop %v3577
        %v3579 = vmul.f32 %v3511, 1.442695
        %v3580 = vpow.pop %v3579
        %v3581 = vmul.f32 %v3512, 1.442695
        %v3582 = vpow.pop %v3581
        %v3583 = vmul.f32 %v3513, 1.442695
        %v3584 = vpow.pop %v3583
        %v3585 = vmul.f32 %v3514, 1.442695
        %v3586 = vpow.pop %v3585
        %v3587 = vmul.f32 %v3515, 1.442695
        %v3588 = vpow.pop %v3587
        %v3589 = vmul.f32 %v3516, 1.442695
        %v3590 = vpow.pop %v3589
        %v3591 = vmul.f32 %v3517, 1.442695
        %v3592 = vpow.pop %v3591
        %v3593 = vmul.f32 %v3518, 1.442695
        %v3594 = vpow.pop %v3593
        %v3595 = vmul.f32 %v3519, 1.442695
        %v3596 = vpow.pop %v3595
        %v3597 = vmul.f32 %v3520, 1.442695
        %v3598 = vpow.pop %v3597
        %v3599 = vmul.f32 %v3521, 1.442695
        %v3600 = vpow.pop %v3599
        %v3601 = vmul.f32 %v3522, 1.442695
        %v3602 = vpow.pop %v3601
        %v3603 = vmul.f32 %v3523, 1.442695
        %v3604 = vpow.pop %v3603
        %v3605 = vmul.f32 %v3524, 1.442695
        %v3606 = vpow.pop %v3605
        %v3607 = vmul.f32 %v3525, 1.442695
        %v3608 = vpow.pop %v3607
        %v3609 = vmul.f32 %v3526, 1.442695
        %v3610 = vpow.pop %v3609
        %v3611 = vmul.f32 %v3527, 1.442695
        %v3612 = vpow.pop %v3611
        %v3613 = vmul.f32 %v3528, 1.442695
        %v3614 = vpow.pop %v3613
        %v3615 = vmul.f32 %v3529, 1.442695
        %v3616 = vpow.pop %v3615
        %v3617 = vmul.f32 %v3530, 1.442695
        %v3618 = vpow.pop %v3617
        %v3619 = vmul.f32 %v3531, 1.442695
        %v3620 = vpow.pop %v3619
        %v3621 = vmul.f32 %v3532, 1.442695
        %v3622 = vpow.pop %v3621
        %v3623 = vmul.f32 %v3533, 1.442695
        %v3624 = vpow.pop %v3623
        %v3625 = vmul.f32 %v3534, 1.442695
        %v3626 = vpow.pop %v3625
        %v3627 = vmul.f32 %v3535, 1.442695
        %v3628 = vpow.pop %v3627
        %v3629 = vmul.f32 %v3536, 1.442695
        %v3630 = vpow.pop %v3629
        %v3631 = vmul.f32 %v3537, 1.442695
        %v3632 = vpow.pop %v3631
        %v3633 = vmul.f32 %v3538, 1.442695
        %v3634 = vpow.pop %v3633
        %v3635 = vmul.f32 %v3539, 1.442695
        %v3636 = vpow.pop %v3635
        %v3637 = vmul.f32 %v3540, 1.442695
        %v3638 = vpow.pop %v3637
        %v3639 = vmul.f32 %v3541, 1.442695
        %v3640 = vpow.pop %v3639
        %v3641 = vmul.f32 %v3542, 1.442695
        %v3642 = vpow.pop %v3641
        %v3643 = vmul.f32 %v3543, 1.442695
        %v3644 = vpow.pop %v3643
        %v3645 = vmul.f32 %v3544, 1.442695
        %v3646 = vpow.pop %v3645
        %v3647 = vmul.f32 %v3545, 1.442695
        %v3648 = vpow.pop %v3647
        %v3649 = vmul.f32 %v3546, 1.442695
        %v3650 = vpow.pop %v3649
        %v3651 = vmul.f32 %v3547, 1.442695
        %v3652 = vpow.pop %v3651
        %v3653 = vmul.f32 %v3548, 1.442695
        %v3654 = vpow.pop %v3653
        %v3655 = vmul.f32 %v3549, 1.442695
        %v3656 = vpow.pop %v3655
        %v3657 = vmul.f32 %v3550, 1.442695
        %v3658 = vpow.pop %v3657
        %v3659 = vmul.f32 %v3551, 1.442695
        %v3660 = vpow.pop %v3659
        %v3661 = vmul.f32 %v3552, 1.442695
        %v3662 = vpow.pop %v3661
        %v3663 = vmul.f32 %v3553, 1.442695
        %v3664 = vpow.pop %v3663
        %v3665 = vmul.f32 %v3554, 1.442695
        %v3666 = vpow.pop %v3665
        %v3667 = vmul.f32 %v3555, 1.442695
        %v3668 = vpow.pop %v3667
        %v3669 = vmul.f32 %v3556, 1.442695
        %v3670 = vpow.pop %v3669
        %v3671 = vmul.f32 %v3557, 1.442695
        %v3672 = vpow.pop %v3671
        %v3673 = vmul.f32 %v3558, 1.442695
        %v3674 = vpow.pop %v3673
        %v3675 = vmul.f32 %v3559, 1.442695
        %v3676 = vpow.pop %v3675
        %v3677 = vmul.f32 %v3560, 1.442695
        %v3678 = vpow.pop %v3677
        %v3679 = vmul.f32 %v3561, 1.442695
        %v3680 = vpow.pop %v3679
        %v3681 = vmul.f32 %v3562, 1.442695
        %v3682 = vpow.pop %v3681
        %v3683 = vmul.f32 %v3563, 1.442695
        %v3684 = vpow.pop %v3683
        %v3685 = vmul.f32 %v3564, 1.442695
        %v3686 = vpow.pop %v3685
        %v3687 = vmul.f32 %v3565, 1.442695
        %v3688 = vpow.pop %v3687
        %v3689 = vmul.f32 %v3566, 1.442695
        %v3690 = vpow.pop %v3689
        %v3691 = vmul.f32 %v3567, 1.442695
        %v3692 = vpow.pop %v3691
        %v3693 = vmul.f32 %v3568, 1.442695
        %v3694 = vpow.pop %v3693
        %v3695 = vmul.f32 %v3569, 1.442695
        %v3696 = vpow.pop %v3695
        %v3697 = vmul.f32 %v3570, 1.442695
        %v3698 = vpow.pop %v3697
        %v3699 = vadd.f32 %v3572, 1.0
        %v3700 = vadd.f32 %v3574, 1.0
        %v3701 = vadd.f32 %v3576, 1.0
        %v3702 = vadd.f32 %v3578, 1.0
        %v3703 = vadd.f32 %v3580, 1.0
        %v3704 = vadd.f32 %v3582, 1.0
        %v3705 = vadd.f32 %v3584, 1.0
        %v3706 = vadd.f32 %v3586, 1.0
        %v3707 = vadd.f32 %v3588, 1.0
        %v3708 = vadd.f32 %v3590, 1.0
        %v3709 = vadd.f32 %v3592, 1.0
        %v3710 = vadd.f32 %v3594, 1.0
        %v3711 = vadd.f32 %v3596, 1.0
        %v3712 = vadd.f32 %v3598, 1.0
        %v3713 = vadd.f32 %v3600, 1.0
        %v3714 = vadd.f32 %v3602, 1.0
        %v3715 = vadd.f32 %v3604, 1.0
        %v3716 = vadd.f32 %v3606, 1.0
        %v3717 = vadd.f32 %v3608, 1.0
        %v3718 = vadd.f32 %v3610, 1.0
        %v3719 = vadd.f32 %v3612, 1.0
        %v3720 = vadd.f32 %v3614, 1.0
        %v3721 = vadd.f32 %v3616, 1.0
        %v3722 = vadd.f32 %v3618, 1.0
        %v3723 = vadd.f32 %v3620, 1.0
        %v3724 = vadd.f32 %v3622, 1.0
        %v3725 = vadd.f32 %v3624, 1.0
        %v3726 = vadd.f32 %v3626, 1.0
        %v3727 = vadd.f32 %v3628, 1.0
        %v3728 = vadd.f32 %v3630, 1.0
        %v3729 = vadd.f32 %v3632, 1.0
        %v3730 = vadd.f32 %v3634, 1.0
        %v3731 = vadd.f32 %v3636, 1.0
        %v3732 = vadd.f32 %v3638, 1.0
        %v3733 = vadd.f32 %v3640, 1.0
        %v3734 = vadd.f32 %v3642, 1.0
        %v3735 = vadd.f32 %v3644, 1.0
        %v3736 = vadd.f32 %v3646, 1.0
        %v3737 = vadd.f32 %v3648, 1.0
        %v3738 = vadd.f32 %v3650, 1.0
        %v3739 = vadd.f32 %v3652, 1.0
        %v3740 = vadd.f32 %v3654, 1.0
        %v3741 = vadd.f32 %v3656, 1.0
        %v3742 = vadd.f32 %v3658, 1.0
        %v3743 = vadd.f32 %v3660, 1.0
        %v3744 = vadd.f32 %v3662, 1.0
        %v3745 = vadd.f32 %v3664, 1.0
        %v3746 = vadd.f32 %v3666, 1.0
        %v3747 = vadd.f32 %v3668, 1.0
        %v3748 = vadd.f32 %v3670, 1.0
        %v3749 = vadd.f32 %v3672, 1.0
        %v3750 = vadd.f32 %v3674, 1.0
        %v3751 = vadd.f32 %v3676, 1.0
        %v3752 = vadd.f32 %v3678, 1.0
        %v3753 = vadd.f32 %v3680, 1.0
        %v3754 = vadd.f32 %v3682, 1.0
        %v3755 = vadd.f32 %v3684, 1.0
        %v3756 = vadd.f32 %v3686, 1.0
        %v3757 = vadd.f32 %v3688, 1.0
        %v3758 = vadd.f32 %v3690, 1.0
        %v3759 = vadd.f32 %v3692, 1.0
        %v3760 = vadd.f32 %v3694, 1.0
        %v3761 = vadd.f32 %v3696, 1.0
        %v3762 = vadd.f32 %v3698, 1.0
        %v3763 = vrcp.pop %v3699
        %v3764 = vmul.f32 1.0, %v3763
        %v3765 = vrcp.pop %v3700
        %v3766 = vmul.f32 1.0, %v3765
        %v3767 = vrcp.pop %v3701
        %v3768 = vmul.f32 1.0, %v3767
        %v3769 = vrcp.pop %v3702
        %v3770 = vmul.f32 1.0, %v3769
        %v3771 = vrcp.pop %v3703
        %v3772 = vmul.f32 1.0, %v3771
        %v3773 = vrcp.pop %v3704
        %v3774 = vmul.f32 1.0, %v3773
        %v3775 = vrcp.pop %v3705
        %v3776 = vmul.f32 1.0, %v3775
        %v3777 = vrcp.pop %v3706
        %v3778 = vmul.f32 1.0, %v3777
        %v3779 = vrcp.pop %v3707
        %v3780 = vmul.f32 1.0, %v3779
        %v3781 = vrcp.pop %v3708
        %v3782 = vmul.f32 1.0, %v3781
        %v3783 = vrcp.pop %v3709
        %v3784 = vmul.f32 1.0, %v3783
        %v3785 = vrcp.pop %v3710
        %v3786 = vmul.f32 1.0, %v3785
        %v3787 = vrcp.pop %v3711
        %v3788 = vmul.f32 1.0, %v3787
        %v3789 = vrcp.pop %v3712
        %v3790 = vmul.f32 1.0, %v3789
        %v3791 = vrcp.pop %v3713
        %v3792 = vmul.f32 1.0, %v3791
        %v3793 = vrcp.pop %v3714
        %v3794 = vmul.f32 1.0, %v3793
        %v3795 = vrcp.pop %v3715
        %v3796 = vmul.f32 1.0, %v3795
        %v3797 = vrcp.pop %v3716
        %v3798 = vmul.f32 1.0, %v3797
        %v3799 = vrcp.pop %v3717
        %v3800 = vmul.f32 1.0, %v3799
        %v3801 = vrcp.pop %v3718
        %v3802 = vmul.f32 1.0, %v3801
        %v3803 = vrcp.pop %v3719
        %v3804 = vmul.f32 1.0, %v3803
        %v3805 = vrcp.pop %v3720
        %v3806 = vmul.f32 1.0, %v3805
        %v3807 = vrcp.pop %v3721
        %v3808 = vmul.f32 1.0, %v3807
        %v3809 = vrcp.pop %v3722
        %v3810 = vmul.f32 1.0, %v3809
        %v3811 = vrcp.pop %v3723
        %v3812 = vmul.f32 1.0, %v3811
        %v3813 = vrcp.pop %v3724
        %v3814 = vmul.f32 1.0, %v3813
        %v3815 = vrcp.pop %v3725
        %v3816 = vmul.f32 1.0, %v3815
        %v3817 = vrcp.pop %v3726
        %v3818 = vmul.f32 1.0, %v3817
        %v3819 = vrcp.pop %v3727
        %v3820 = vmul.f32 1.0, %v3819
        %v3821 = vrcp.pop %v3728
        %v3822 = vmul.f32 1.0, %v3821
        %v3823 = vrcp.pop %v3729
        %v3824 = vmul.f32 1.0, %v3823
        %v3825 = vrcp.pop %v3730
        %v3826 = vmul.f32 1.0, %v3825
        %v3827 = vrcp.pop %v3731
        %v3828 = vmul.f32 1.0, %v3827
        %v3829 = vrcp.pop %v3732
        %v3830 = vmul.f32 1.0, %v3829
        %v3831 = vrcp.pop %v3733
        %v3832 = vmul.f32 1.0, %v3831
        %v3833 = vrcp.pop %v3734
        %v3834 = vmul.f32 1.0, %v3833
        %v3835 = vrcp.pop %v3735
        %v3836 = vmul.f32 1.0, %v3835
        %v3837 = vrcp.pop %v3736
        %v3838 = vmul.f32 1.0, %v3837
        %v3839 = vrcp.pop %v3737
        %v3840 = vmul.f32 1.0, %v3839
        %v3841 = vrcp.pop %v3738
        %v3842 = vmul.f32 1.0, %v3841
        %v3843 = vrcp.pop %v3739
        %v3844 = vmul.f32 1.0, %v3843
        %v3845 = vrcp.pop %v3740
        %v3846 = vmul.f32 1.0, %v3845
        %v3847 = vrcp.pop %v3741
        %v3848 = vmul.f32 1.0, %v3847
        %v3849 = vrcp.pop %v3742
        %v3850 = vmul.f32 1.0, %v3849
        %v3851 = vrcp.pop %v3743
        %v3852 = vmul.f32 1.0, %v3851
        %v3853 = vrcp.pop %v3744
        %v3854 = vmul.f32 1.0, %v3853
        %v3855 = vrcp.pop %v3745
        %v3856 = vmul.f32 1.0, %v3855
        %v3857 = vrcp.pop %v3746
        %v3858 = vmul.f32 1.0, %v3857
        %v3859 = vrcp.pop %v3747
        %v3860 = vmul.f32 1.0, %v3859
        %v3861 = vrcp.pop %v3748
        %v3862 = vmul.f32 1.0, %v3861
        %v3863 = vrcp.pop %v3749
        %v3864 = vmul.f32 1.0, %v3863
        %v3865 = vrcp.pop %v3750
        %v3866 = vmul.f32 1.0, %v3865
        %v3867 = vrcp.pop %v3751
        %v3868 = vmul.f32 1.0, %v3867
        %v3869 = vrcp.pop %v3752
        %v3870 = vmul.f32 1.0, %v3869
        %v3871 = vrcp.pop %v3753
        %v3872 = vmul.f32 1.0, %v3871
        %v3873 = vrcp.pop %v3754
        %v3874 = vmul.f32 1.0, %v3873
        %v3875 = vrcp.pop %v3755
        %v3876 = vmul.f32 1.0, %v3875
        %v3877 = vrcp.pop %v3756
        %v3878 = vmul.f32 1.0, %v3877
        %v3879 = vrcp.pop %v3757
        %v3880 = vmul.f32 1.0, %v3879
        %v3881 = vrcp.pop %v3758
        %v3882 = vmul.f32 1.0, %v3881
        %v3883 = vrcp.pop %v3759
        %v3884 = vmul.f32 1.0, %v3883
        %v3885 = vrcp.pop %v3760
        %v3886 = vmul.f32 1.0, %v3885
        %v3887 = vrcp.pop %v3761
        %v3888 = vmul.f32 1.0, %v3887
        %v3889 = vrcp.pop %v3762
        %v3890 = vmul.f32 1.0, %v3889
        %3891 = vst [vmem:[%s748] sm:$0xff] %v3764
        %3892 = vst [vmem:[%s748 + $0x8] sm:$0xff] %v3766
        %3893 = vst [vmem:[%s748 + $0x10] sm:$0xff] %v3768
        %3894 = vst [vmem:[%s748 + $0x18] sm:$0xff] %v3770
        %3895 = vst [vmem:[%s748 + $0x20] sm:$0xff] %v3772
        %3896 = vst [vmem:[%s748 + $0x28] sm:$0xff] %v3774
        %3897 = vst [vmem:[%s748 + $0x30] sm:$0xff] %v3776
        %3898 = vst [vmem:[%s748 + $0x38] sm:$0xff] %v3778
        %3899 = vst [vmem:[%s748 + $0x40] sm:$0xff] %v3780
        %3900 = vst [vmem:[%s748 + $0x48] sm:$0xff] %v3782
        %3901 = vst [vmem:[%s748 + $0x50] sm:$0xff] %v3784
        %3902 = vst [vmem:[%s748 + $0x58] sm:$0xff] %v3786
        %3903 = vst [vmem:[%s748 + $0x60] sm:$0xff] %v3788
        %3904 = vst [vmem:[%s748 + $0x68] sm:$0xff] %v3790
        %3905 = vst [vmem:[%s748 + $0x70] sm:$0xff] %v3792
        %3906 = vst [vmem:[%s748 + $0x78] sm:$0xff] %v3794
        %3907 = vst [vmem:[%s748 + $0x80] sm:$0xff] %v3796
        %3908 = vst [vmem:[%s748 + $0x88] sm:$0xff] %v3798
        %3909 = vst [vmem:[%s748 + $0x90] sm:$0xff] %v3800
        %3910 = vst [vmem:[%s748 + $0x98] sm:$0xff] %v3802
        %3911 = vst [vmem:[%s748 + $0xa0] sm:$0xff] %v3804
        %3912 = vst [vmem:[%s748 + $0xa8] sm:$0xff] %v3806
        %3913 = vst [vmem:[%s748 + $0xb0] sm:$0xff] %v3808
        %3914 = vst [vmem:[%s748 + $0xb8] sm:$0xff] %v3810
        %3915 = vst [vmem:[%s748 + $0xc0] sm:$0xff] %v3812
        %3916 = vst [vmem:[%s748 + $0xc8] sm:$0xff] %v3814
        %3917 = vst [vmem:[%s748 + $0xd0] sm:$0xff] %v3816
        %3918 = vst [vmem:[%s748 + $0xd8] sm:$0xff] %v3818
        %3919 = vst [vmem:[%s748 + $0xe0] sm:$0xff] %v3820
        %3920 = vst [vmem:[%s748 + $0xe8] sm:$0xff] %v3822
        %3921 = vst [vmem:[%s748 + $0xf0] sm:$0xff] %v3824
        %3922 = vst [vmem:[%s748 + $0xf8] sm:$0xff] %v3826
        %3923 = vst [vmem:[%s748 + $0x100] sm:$0xff] %v3828
        %3924 = vst [vmem:[%s748 + $0x108] sm:$0xff] %v3830
        %3925 = vst [vmem:[%s748 + $0x110] sm:$0xff] %v3832
        %3926 = vst [vmem:[%s748 + $0x118] sm:$0xff] %v3834
        %3927 = vst [vmem:[%s748 + $0x120] sm:$0xff] %v3836
        %3928 = vst [vmem:[%s748 + $0x128] sm:$0xff] %v3838
        %3929 = vst [vmem:[%s748 + $0x130] sm:$0xff] %v3840
        %3930 = vst [vmem:[%s748 + $0x138] sm:$0xff] %v3842
        %3931 = vst [vmem:[%s748 + $0x140] sm:$0xff] %v3844
        %3932 = vst [vmem:[%s748 + $0x148] sm:$0xff] %v3846
        %3933 = vst [vmem:[%s748 + $0x150] sm:$0xff] %v3848
        %3934 = vst [vmem:[%s748 + $0x158] sm:$0xff] %v3850
        %3935 = vst [vmem:[%s748 + $0x160] sm:$0xff] %v3852
        %3936 = vst [vmem:[%s748 + $0x168] sm:$0xff] %v3854
        %3937 = vst [vmem:[%s748 + $0x170] sm:$0xff] %v3856
        %3938 = vst [vmem:[%s748 + $0x178] sm:$0xff] %v3858
        %3939 = vst [vmem:[%s748 + $0x180] sm:$0xff] %v3860
        %3940 = vst [vmem:[%s748 + $0x188] sm:$0xff] %v3862
        %3941 = vst [vmem:[%s748 + $0x190] sm:$0xff] %v3864
        %3942 = vst [vmem:[%s748 + $0x198] sm:$0xff] %v3866
        %3943 = vst [vmem:[%s748 + $0x1a0] sm:$0xff] %v3868
        %3944 = vst [vmem:[%s748 + $0x1a8] sm:$0xff] %v3870
        %3945 = vst [vmem:[%s748 + $0x1b0] sm:$0xff] %v3872
        %3946 = vst [vmem:[%s748 + $0x1b8] sm:$0xff] %v3874
        %3947 = vst [vmem:[%s748 + $0x1c0] sm:$0xff] %v3876
        %3948 = vst [vmem:[%s748 + $0x1c8] sm:$0xff] %v3878
        %3949 = vst [vmem:[%s748 + $0x1d0] sm:$0xff] %v3880
        %3950 = vst [vmem:[%s748 + $0x1d8] sm:$0xff] %v3882
        %3951 = vst [vmem:[%s748 + $0x1e0] sm:$0xff] %v3884
        %3952 = vst [vmem:[%s748 + $0x1e8] sm:$0xff] %v3886
        %3953 = vst [vmem:[%s748 + $0x1f0] sm:$0xff] %v3888
        %3954 = vst [vmem:[%s748 + $0x1f8] sm:$0xff] %v3890
        %3955 = vst.msk [vmem:[%s775] sm:$0xff] %vm2280, %v1936
        %3956 = vst.msk [vmem:[%s775 + $0x8] sm:$0xff] %vm2280, %v1941
        %3957 = vst.msk [vmem:[%s775 + $0x10] sm:$0xff] %vm2280, %v1946
        %3958 = vst.msk [vmem:[%s775 + $0x18] sm:$0xff] %vm2280, %v1951
        %3959 = vst.msk [vmem:[%s775 + $0x20] sm:$0xff] %vm2280, %v1956
        %3960 = vst.msk [vmem:[%s775 + $0x28] sm:$0xff] %vm2280, %v1961
        %3961 = vst.msk [vmem:[%s775 + $0x30] sm:$0xff] %vm2280, %v1966
        %3962 = vst.msk [vmem:[%s775 + $0x38] sm:$0xff] %vm2280, %v1971
        %3963 = vst.msk [vmem:[%s775 + $0x40] sm:$0xff] %vm2280, %v1976
        %3964 = vst.msk [vmem:[%s775 + $0x48] sm:$0xff] %vm2280, %v1981
        %3965 = vst.msk [vmem:[%s775 + $0x50] sm:$0xff] %vm2280, %v1986
        %3966 = vst.msk [vmem:[%s775 + $0x58] sm:$0xff] %vm2280, %v1991
        %3967 = vst.msk [vmem:[%s775 + $0x60] sm:$0xff] %vm2280, %v1996
        %3968 = vst.msk [vmem:[%s775 + $0x68] sm:$0xff] %vm2280, %v2001
        %3969 = vst.msk [vmem:[%s775 + $0x70] sm:$0xff] %vm2280, %v2006
        %3970 = vst.msk [vmem:[%s775 + $0x78] sm:$0xff] %vm2280, %v2011
        %3971 = vst.msk [vmem:[%s781] sm:$0xff] %vm2280, %v2096
        %3972 = vst.msk [vmem:[%s781 + $0x8] sm:$0xff] %vm2280, %v2101
        %3973 = vst.msk [vmem:[%s781 + $0x10] sm:$0xff] %vm2280, %v2106
        %3974 = vst.msk [vmem:[%s781 + $0x18] sm:$0xff] %vm2280, %v2111
        %3975 = vst.msk [vmem:[%s781 + $0x20] sm:$0xff] %vm2280, %v2116
        %3976 = vst.msk [vmem:[%s781 + $0x28] sm:$0xff] %vm2280, %v2121
        %3977 = vst.msk [vmem:[%s781 + $0x30] sm:$0xff] %vm2280, %v2126
        %3978 = vst.msk [vmem:[%s781 + $0x38] sm:$0xff] %vm2280, %v2131
        %3979 = vst.msk [vmem:[%s781 + $0x40] sm:$0xff] %vm2280, %v2136
        %3980 = vst.msk [vmem:[%s781 + $0x48] sm:$0xff] %vm2280, %v2141
        %3981 = vst.msk [vmem:[%s781 + $0x50] sm:$0xff] %vm2280, %v2146
        %3982 = vst.msk [vmem:[%s781 + $0x58] sm:$0xff] %vm2280, %v2151
        %3983 = vst.msk [vmem:[%s781 + $0x60] sm:$0xff] %vm2280, %v2156
        %3984 = vst.msk [vmem:[%s781 + $0x68] sm:$0xff] %vm2280, %v2161
        %3985 = vst.msk [vmem:[%s781 + $0x70] sm:$0xff] %vm2280, %v2166
        %3986 = vst.msk [vmem:[%s781 + $0x78] sm:$0xff] %vm2280, %v2171
        %s3987 = sand.u32 %s479, 1
        %s3988 = scalar_lea.sflag [#allocation4], %s3987
        %s3989 = sand.u32 %s479, 1
        %s3990 = smul.addr %s3989, 512
        %s3991 = scalar_lea.vmem [#allocation8], %s3990
        %s3992 = smul.u32 16, %s41
        %p3993 = scmp.lt.s32.totalorder %s3992, 31
        %s3994 = scalar_select %p3993, %s3992, 31
        %s3995 = smul.addr %s3994, 8
        %s3996 = scalar_lea.vmem %s21, %s3995
        %s3997 = smul.u32 16, %s41
        %p3998 = scmp.lt.s32.totalorder %s3997, 31
        %s3999 = scalar_select %p3998, %s3997, 31
        %s4000 = smul.addr %s3999, 8
        %s4001 = scalar_lea.vmem %s22, %s4000
        // Predicated region
        $region113: #{tpu_custom_call.1} parent=99 // pred_check
          %p4002 = pneg %p489
        $region114: #{tpu_custom_call.1} parent=99 // pred_check_branch
          %4004 = sbr.rel (%p4002) target = $region116
        $region115: #{tpu_custom_call.1} parent=99 // pred_region
          %s4005 = smul.u32 16, %s41
          %s4007 = ssub.s32 8192, 8192
          %4008 = vsyncadd %s3988, %s4007
          %s4009 = smul.addr %s4005, 4
          %s4010 = smul.addr %s4009, 128
          %s4011 = scalar_lea.hbm %s20, %s4010
          %s4012 = sshll.u32 %s3991, 4
          %s4013 = int_to_ptr.vmem [resolvable:$true] %s4012
          %4018 = dma.vmem_to_hbm [thread:$0]  %s4013, 8192, %s4011, %s3988, 512, 512, 32
        $region116: #{tpu_custom_call.1} parent=99 // pred_fallthru
          _
        // Predicated region
        $region117: #{tpu_custom_call.1} parent=99 // pred_check
          %p4019 = pneg %p515
        $region118: #{tpu_custom_call.1} parent=99 // pred_check_branch
          %4021 = sbr.rel (%p4019) target = $region120
        $region119: #{tpu_custom_call.1} parent=99 // pred_region
          %s4022 = smul.u32 16, %s41
        $region120: #{tpu_custom_call.1} parent=99 // pred_fallthru
          _
        // Predicated region
        $region121: #{tpu_custom_call.1} parent=99 // pred_check
          %p4023 = pneg %p541
        $region122: #{tpu_custom_call.1} parent=99 // pred_check_branch
          %4025 = sbr.rel (%p4023) target = $region124
        $region123: #{tpu_custom_call.1} parent=99 // pred_region
          %s4026 = smul.u32 16, %s41
        $region124: #{tpu_custom_call.1} parent=99 // pred_fallthru
          _
      $region100: #{tpu_custom_call.1} parent=5 // pred_fallthru
        _
      %p4027 = scmp.le.s32.totalorder 2, %s36
      // Predicated region
      $region125: #{tpu_custom_call.1} parent=5 // pred_check
        %p4028 = pneg %p4027
      $region126: #{tpu_custom_call.1} parent=5 // pred_check_branch
        %4030 = sbr.rel (%p4028) target = $region128
      $region127: #{tpu_custom_call.1} parent=5 // pred_region
        %s4031 = ssub.s32 %s36, 2
        // Predicated region
        $region129: #{tpu_custom_call.1} parent=127 // pred_check
          %p4032 = pneg %p495
        $region130: #{tpu_custom_call.1} parent=127 // pred_check_branch
          %4034 = sbr.rel (%p4032) target = $region132
        $region131: #{tpu_custom_call.1} parent=127 // pred_region
          %s4035 = sand.u32 %s480, 1
          %s4036 = scalar_lea.sflag [#allocation4], %s4035
          %s4037 = sand.u32 %s480, 1
          %s4038 = smul.addr %s4037, 512
          %s4039 = scalar_lea.vmem [#allocation8], %s4038
          %4040 = dma.done %s4036, 8192
        $region132: #{tpu_custom_call.1} parent=127 // pred_fallthru
          _
        // Predicated region
        $region133: #{tpu_custom_call.1} parent=127 // pred_check
          %p4041 = pneg %p521
        $region134: #{tpu_custom_call.1} parent=127 // pred_check_branch
          %4043 = sbr.rel (%p4041) target = $region136
        $region135: #{tpu_custom_call.1} parent=127 // pred_region
          %s4044 = smul.u32 16, %s42
          %p4045 = scmp.lt.s32.totalorder %s4044, 31
          %s4046 = scalar_select %p4045, %s4044, 31
          %s4047 = smul.addr %s4046, 8
          %s4048 = scalar_lea.vmem %s21, %s4047
        $region136: #{tpu_custom_call.1} parent=127 // pred_fallthru
          _
        // Predicated region
        $region137: #{tpu_custom_call.1} parent=127 // pred_check
          %p4049 = pneg %p547
        $region138: #{tpu_custom_call.1} parent=127 // pred_check_branch
          %4051 = sbr.rel (%p4049) target = $region140
        $region139: #{tpu_custom_call.1} parent=127 // pred_region
          %s4052 = smul.u32 16, %s42
          %p4053 = scmp.lt.s32.totalorder %s4052, 31
          %s4054 = scalar_select %p4053, %s4052, 31
          %s4055 = smul.addr %s4054, 8
          %s4056 = scalar_lea.vmem %s22, %s4055
        $region140: #{tpu_custom_call.1} parent=127 // pred_fallthru
          _
      $region128: #{tpu_custom_call.1} parent=5 // pred_fallthru
        _
    $region6: #{tpu_custom_call.1} parent=1 // loop_footer
      %s40 = sadd.s32 1, %s36
    $region7: #{tpu_custom_call.1} parent=1 // loop_footer_branch
      %35 = sbr.rel target = $region3
    $region8: #{tpu_custom_call.1} parent=1 // loop_exit
      _
    %4057 = vsyncpa [#allocation3], 1
    %s4058 = scalar_lea.sflag [#allocation3], 1
    %4059 = vsyncpa %s4058, 1
    %4060 = vsyncpa [#allocation6], 1
    %4061 = vsyncpa [#allocation4], 1
    %s4062 = scalar_lea.sflag [#allocation4], 1
    %4063 = vsyncpa %s4062, 1

</llo_original>
